<compile_context>
chip_gen: v5e
topology: v5e:2x2
jax: 0.10.0
libtpu: 0.0.40
codegen_flags: <defaults>
</compile_context>

<pallas_src>
import jax
import jax.numpy as jnp
from jax.experimental import pallas as pl
from jax.experimental.pallas import tpu as pltpu

NUM_CLASSES = 10
IN_FEATURES = 3 * 32 * 32          # 3072
HIDDEN = [128, 256, 512, 256]
OUT_PAD = 128                      # last layer padded to a lane-dense width


# --------------------------------------------------------------------------
# Kernel
# --------------------------------------------------------------------------
def mlp_kernel(x_ref,
               w1_ref, b1_ref,
               w2_ref, b2_ref,
               w3_ref, b3_ref,
               w4_ref, b4_ref,
               w5_ref, b5_ref,
               o_ref):
    """Full MLP chain (5 x Linear+ReLU) fused, operating on one batch tile.

    x arrives f32 and is cast to bf16 on the VPU (cast hides under the MXU
    slot); matmuls run bf16 x bf16 with f32 accumulation; biases are added in
    f32.  The torch module applies ReLU after EVERY Linear, including the last
    one, so we do the same here.
    """
    def dense_relu(h, w_ref, b_ref, out_dtype):
        y = jnp.dot(h, w_ref[...], preferred_element_type=jnp.float32)
        y = jnp.maximum(y + b_ref[...], 0.0)          # bias broadcast + ReLU
        return y.astype(out_dtype)

    h = x_ref[...].astype(jnp.bfloat16)               # (bt, 3072) f32 -> bf16 in-kernel
    h = dense_relu(h, w1_ref, b1_ref, jnp.bfloat16)   # (bt, 128)
    h = dense_relu(h, w2_ref, b2_ref, jnp.bfloat16)   # (bt, 256)
    h = dense_relu(h, w3_ref, b3_ref, jnp.bfloat16)   # (bt, 512)
    h = dense_relu(h, w4_ref, b4_ref, jnp.bfloat16)   # (bt, 256)
    h = dense_relu(h, w5_ref, b5_ref, jnp.float32)    # (bt, 128) padded logits
    o_ref[...] = h


def _batch_tile_index(i):
    return (i, 0)


def _resident_index(i):
    # Weights/biases use the same block every grid step -> DMA'd once, resident.
    return (0, 0)


# --------------------------------------------------------------------------
# Tiling / call setup
# --------------------------------------------------------------------------
def _max_batch_tile():
    """Per-generation cap on the batch tile (driven by VMEM per TensorCore)."""
    try:
        kind = jax.devices()[0].device_kind.lower()
    except Exception:
        return 512
    if "v5" in kind or "v6" in kind:
        return 1024          # 128 MiB VMEM: big tiles amortize per-step overhead
    return 512               # v7x (64 MiB VMEM) / unknown: conservative cap


def _choose_batch_tiling(batch):
    """Pick (b_tile, n_tiles).

    Priorities: (1) >= 2 grid steps so dimension_semantics=("parallel",)
    actually shards across v7x's two TensorCores, (2) minimal dead-row
    padding, (3) even tile count, (4) the largest tile (per-step overhead and
    DMA efficiency on v5e/v6e).  Tiles are multiples of 16 (bf16 sublanes).
    """
    max_tile = _max_batch_tile()
    if batch <= 16:
        return 16, 1
    best = None
    for n in range(1, pl.cdiv(batch, 16) + 1):
        tile = ((pl.cdiv(batch, n) + 15) // 16) * 16
        if tile > max_tile:
            continue
        pad = n * tile - batch
        key = (0 if n >= 2 else 1, pad, n % 2, -tile)
        if best is None or key < best[0]:
            best = (key, tile, n)
    if best is None:                     # unreachable (n = cdiv(batch,16) -> tile=16)
        tile = max_tile
        return tile, pl.cdiv(batch, tile)
    return best[1], best[2]


def prepare_params(params_f32):
    """ONE-TIME conversion of f32 master params into kernel-ready operands.

    w1..w4 -> bf16; biases stay f32 (added post f32-accumulate); last layer is
    zero-padded to a lane-dense 128-wide output so the kernel's stores are
    unmasked `vst`s.  Do NOT call this per forward pass.
    """
    (w1, b1), (w2, b2), (w3, b3), (w4, b4), (w5, b5) = params_f32
    prepped = [(w.astype(jnp.bfloat16), b.astype(jnp.float32))
               for w, b in ((w1, b1), (w2, b2), (w3, b3), (w4, b4))]
    w5p = jnp.zeros((HIDDEN[-1], OUT_PAD), jnp.bfloat16).at[:, :NUM_CLASSES].set(
        w5.astype(jnp.bfloat16))
    b5p = jnp.zeros((1, OUT_PAD), jnp.float32).at[:, :NUM_CLASSES].set(
        b5.astype(jnp.float32))
    prepped.append((w5p, b5p))
    return prepped


def _call_kernel(operands, b_pad, b_tile, n_tiles, single_buffer_weights):
    in_specs = [pl.BlockSpec((b_tile, IN_FEATURES), _batch_tile_index)]
    for op in operands[1:]:
        if single_buffer_weights:
            # Block index never changes -> a second buffer + its prologue DMA
            # is pure waste (matters most on v7x's 64 MiB VMEM).
            spec = pl.BlockSpec(op.shape, _resident_index,
                                pipeline_mode=pl.Buffered(1))
        else:
            spec = pl.BlockSpec(op.shape, _resident_index)
        in_specs.append(spec)
    out_spec = pl.BlockSpec((b_tile, OUT_PAD), _batch_tile_index)

    weight_bytes = sum(int(op.size) * op.dtype.itemsize for op in operands[1:])
    wbuf = 1 if single_buffer_weights else 2
    vmem_bytes = (2 * b_tile * IN_FEATURES * 4        # double-buffered f32 x tiles
                  + b_tile * IN_FEATURES * 2          # in-kernel bf16 copy of x
                  + 2 * b_tile * OUT_PAD * 4          # double-buffered f32 out tiles
                  + wbuf * weight_bytes               # resident weights/biases
                  + 6 * b_tile * max(HIDDEN) * 4      # intermediate activations slack
                  + (4 << 20))                        # compiler scratch headroom
    vmem_limit = int(min(max(vmem_bytes, 16 << 20), 96 << 20))

    dims_in = [IN_FEATURES] + HIDDEN
    dims_out = HIDDEN + [OUT_PAD]
    flops = 2 * b_pad * sum(di * do for di, do in zip(dims_in, dims_out))
    bytes_accessed = (b_pad * IN_FEATURES * 4 + weight_bytes + b_pad * OUT_PAD * 4)

    return pl.pallas_call(
        mlp_kernel,
        out_shape=jax.ShapeDtypeStruct((b_pad, OUT_PAD), jnp.float32),
        grid=(n_tiles,),
        in_specs=in_specs,
        out_specs=out_spec,
        compiler_params=pltpu.CompilerParams(
            dimension_semantics=("parallel",),
            vmem_limit_bytes=vmem_limit),
        cost_estimate=pl.CostEstimate(
            flops=flops, transcendentals=0, bytes_accessed=bytes_accessed),
    )(*operands)


_WEIGHT_SINGLE_BUFFER = None   # resolved on first call; kept for robustness


def simple_nn_forward(x_nchw, prepared_params):
    """x_nchw: (B, 3, 32, 32) float32. prepared_params: output of prepare_params.

    Returns (B, NUM_CLASSES) float32 logits (post-ReLU, matching the torch module).
    """
    global _WEIGHT_SINGLE_BUFFER
    B = x_nchw.shape[0]
    b_tile, n_tiles = _choose_batch_tiling(B)
    b_pad = b_tile * n_tiles

    # Flatten like torch.nn.Flatten (NCHW row-major).  Keep f32: the bf16 cast
    # happens inside the kernel, halving wrapper-side HBM traffic.
    x_flat = x_nchw.reshape(B, -1)
    if b_pad != B:
        x_flat = jnp.pad(x_flat, ((0, b_pad - B), (0, 0)))

    operands = [x_flat]
    for w, b in prepared_params:
        operands.extend((w, b))

    if _WEIGHT_SINGLE_BUFFER is None:
        try:
            out_padded = _call_kernel(operands, b_pad, b_tile, n_tiles, True)
            jax.block_until_ready(out_padded)
            _WEIGHT_SINGLE_BUFFER = True
        except Exception:
            # pl.Buffered(1) not accepted on this jax/libtpu -> default pipeline.
            _WEIGHT_SINGLE_BUFFER = False
            out_padded = _call_kernel(operands, b_pad, b_tile, n_tiles, False)
    else:
        out_padded = _call_kernel(operands, b_pad, b_tile, n_tiles,
                                  _WEIGHT_SINGLE_BUFFER)

    # Padded rows / padded class lanes are garbage (ReLU(bias)); slice them off.
    return out_padded[:B, :NUM_CLASSES]


# --------------------------------------------------------------------------
# Test harness
# --------------------------------------------------------------------------
def init_params(key):
    """Deterministic init mirroring the torch module's layer shapes (f32 masters)."""
    dims = [IN_FEATURES] + HIDDEN + [NUM_CLASSES]
    params = []
    for i in range(len(dims) - 1):
        key, kw, kb = jax.random.split(key, 3)
        bound = 1.0 / jnp.sqrt(dims[i])
        w = jax.random.uniform(kw, (dims[i], dims[i + 1]), jnp.float32, -bound, bound)
        b = jax.random.uniform(kb, (1, dims[i + 1]), jnp.float32, -bound, bound)
        params.append((w, b))
    return params


def reference_forward(x_nchw, params):
    """Pure-JAX reference with identical precision choices (bf16 in, f32 accumulate)."""
    h = x_nchw.reshape(x_nchw.shape[0], -1).astype(jnp.bfloat16)
    n = len(params)
    for idx, (w, b) in enumerate(params):
        y = jnp.dot(h, w.astype(jnp.bfloat16), preferred_element_type=jnp.float32)
        y = jnp.maximum(y + b, 0.0)
        h = y.astype(jnp.bfloat16) if idx < n - 1 else y
    return h


if __name__ == "__main__":
    key = jax.random.PRNGKey(0)
    key, kx = jax.random.split(key)
    B = 2
    x = jax.random.normal(kx, (B, 3, 32, 32), jnp.float32)

    params = init_params(jax.random.PRNGKey(0))
    prepared = prepare_params(params)          # one-time kernel-ready conversion

    out = jax.block_until_ready(simple_nn_forward(x, prepared))
    ref = reference_forward(x, params)

    assert out.shape == (B, NUM_CLASSES), out.shape
    err = jnp.max(jnp.abs(out - ref))
    assert jnp.allclose(out, ref, atol=2e-3, rtol=2e-3), f"mismatch, max abs err {err}"

    print("KERNEL_OK")
</pallas_src>

<mosaic_0001>
module attributes {stable_mosaic.version = 11 : i64} {
  func.func @mlp_kernel(%arg0: i32, %arg1: memref<16x3072xf32, #tpu.memory_space<vmem>>, %arg2: memref<3072x128xbf16, #tpu.memory_space<vmem>>, %arg3: memref<1x128xf32, #tpu.memory_space<vmem>>, %arg4: memref<128x256xbf16, #tpu.memory_space<vmem>>, %arg5: memref<1x256xf32, #tpu.memory_space<vmem>>, %arg6: memref<256x512xbf16, #tpu.memory_space<vmem>>, %arg7: memref<1x512xf32, #tpu.memory_space<vmem>>, %arg8: memref<512x256xbf16, #tpu.memory_space<vmem>>, %arg9: memref<1x256xf32, #tpu.memory_space<vmem>>, %arg10: memref<256x128xbf16, #tpu.memory_space<vmem>>, %arg11: memref<1x128xf32, #tpu.memory_space<vmem>>, %arg12: memref<16x128xf32, #tpu.memory_space<vmem>>) attributes {dimension_semantics = [#tpu.dimension_semantics<parallel>], iteration_bounds = array<i64: 1>, scalar_prefetch = 0 : i64, scratch_operands = 0 : i64, tpu.core_type = #tpu.core_type<tc>, window_params = [{transform_indices = @transform_0, window_bounds = array<i64: 16, 3072>}, {pipeline_mode = #tpu.pipeline_mode<synchronous>, transform_indices = @transform_1, window_bounds = array<i64: 3072, 128>}, {pipeline_mode = #tpu.pipeline_mode<synchronous>, transform_indices = @transform_2, window_bounds = array<i64: 1, 128>}, {pipeline_mode = #tpu.pipeline_mode<synchronous>, transform_indices = @transform_3, window_bounds = array<i64: 128, 256>}, {pipeline_mode = #tpu.pipeline_mode<synchronous>, transform_indices = @transform_4, window_bounds = array<i64: 1, 256>}, {pipeline_mode = #tpu.pipeline_mode<synchronous>, transform_indices = @transform_5, window_bounds = array<i64: 256, 512>}, {pipeline_mode = #tpu.pipeline_mode<synchronous>, transform_indices = @transform_6, window_bounds = array<i64: 1, 512>}, {pipeline_mode = #tpu.pipeline_mode<synchronous>, transform_indices = @transform_7, window_bounds = array<i64: 512, 256>}, {pipeline_mode = #tpu.pipeline_mode<synchronous>, transform_indices = @transform_8, window_bounds = array<i64: 1, 256>}, {pipeline_mode = #tpu.pipeline_mode<synchronous>, transform_indices = @transform_9, window_bounds = array<i64: 256, 128>}, {pipeline_mode = #tpu.pipeline_mode<synchronous>, transform_indices = @transform_10, window_bounds = array<i64: 1, 128>}, {transform_indices = @transform_11, window_bounds = array<i64: 16, 128>}]} {
    %c0 = arith.constant 0 : index
    %c0_0 = arith.constant 0 : index
    %0 = vector.load %arg1[%c0, %c0_0] : memref<16x3072xf32, #tpu.memory_space<vmem>>, vector<16x3072xf32>
    %1 = arith.truncf %0 : vector<16x3072xf32> to vector<16x3072xbf16>
    %c0_1 = arith.constant 0 : index
    %c0_2 = arith.constant 0 : index
    %2 = vector.load %arg2[%c0_1, %c0_2] : memref<3072x128xbf16, #tpu.memory_space<vmem>>, vector<3072x128xbf16>
    %cst = arith.constant dense<0.000000e+00> : vector<16x128xf32>
    %3 = tpu.matmul %1, %2, %cst {dimension_numbers = #tpu.dot_dimension_numbers<[1], [0], [0], [1], [0, 0, 1, 1], [], []>} : vector<16x3072xbf16>, vector<3072x128xbf16>, vector<16x128xf32> -> vector<16x128xf32>
    %c0_3 = arith.constant 0 : index
    %c0_4 = arith.constant 0 : index
    %4 = vector.load %arg3[%c0_3, %c0_4] : memref<1x128xf32, #tpu.memory_space<vmem>>, vector<1x128xf32>
    %5 = vector.broadcast %4 : vector<1x128xf32> to vector<16x128xf32>
    %6 = arith.addf %3, %5 : vector<16x128xf32>
    %cst_5 = arith.constant 0.000000e+00 : f32
    %7 = vector.broadcast %cst_5 : f32 to vector<16x128xf32>
    %8 = arith.maximumf %6, %7 : vector<16x128xf32>
    %9 = arith.truncf %8 : vector<16x128xf32> to vector<16x128xbf16>
    %c0_6 = arith.constant 0 : index
    %c0_7 = arith.constant 0 : index
    %10 = vector.load %arg4[%c0_6, %c0_7] : memref<128x256xbf16, #tpu.memory_space<vmem>>, vector<128x256xbf16>
    %cst_8 = arith.constant dense<0.000000e+00> : vector<16x256xf32>
    %11 = tpu.matmul %9, %10, %cst_8 {dimension_numbers = #tpu.dot_dimension_numbers<[1], [0], [0], [1], [0, 0, 1, 1], [], []>} : vector<16x128xbf16>, vector<128x256xbf16>, vector<16x256xf32> -> vector<16x256xf32>
    %c0_9 = arith.constant 0 : index
    %c0_10 = arith.constant 0 : index
    %12 = vector.load %arg5[%c0_9, %c0_10] : memref<1x256xf32, #tpu.memory_space<vmem>>, vector<1x256xf32>
    %13 = vector.broadcast %12 : vector<1x256xf32> to vector<16x256xf32>
    %14 = arith.addf %11, %13 : vector<16x256xf32>
    %cst_11 = arith.constant 0.000000e+00 : f32
    %15 = vector.broadcast %cst_11 : f32 to vector<16x256xf32>
    %16 = arith.maximumf %14, %15 : vector<16x256xf32>
    %17 = arith.truncf %16 : vector<16x256xf32> to vector<16x256xbf16>
    %c0_12 = arith.constant 0 : index
    %c0_13 = arith.constant 0 : index
    %18 = vector.load %arg6[%c0_12, %c0_13] : memref<256x512xbf16, #tpu.memory_space<vmem>>, vector<256x512xbf16>
    %cst_14 = arith.constant dense<0.000000e+00> : vector<16x512xf32>
    %19 = tpu.matmul %17, %18, %cst_14 {dimension_numbers = #tpu.dot_dimension_numbers<[1], [0], [0], [1], [0, 0, 1, 1], [], []>} : vector<16x256xbf16>, vector<256x512xbf16>, vector<16x512xf32> -> vector<16x512xf32>
    %c0_15 = arith.constant 0 : index
    %c0_16 = arith.constant 0 : index
    %20 = vector.load %arg7[%c0_15, %c0_16] : memref<1x512xf32, #tpu.memory_space<vmem>>, vector<1x512xf32>
    %21 = vector.broadcast %20 : vector<1x512xf32> to vector<16x512xf32>
    %22 = arith.addf %19, %21 : vector<16x512xf32>
    %cst_17 = arith.constant 0.000000e+00 : f32
    %23 = vector.broadcast %cst_17 : f32 to vector<16x512xf32>
    %24 = arith.maximumf %22, %23 : vector<16x512xf32>
    %25 = arith.truncf %24 : vector<16x512xf32> to vector<16x512xbf16>
    %c0_18 = arith.constant 0 : index
    %c0_19 = arith.constant 0 : index
    %26 = vector.load %arg8[%c0_18, %c0_19] : memref<512x256xbf16, #tpu.memory_space<vmem>>, vector<512x256xbf16>
    %cst_20 = arith.constant dense<0.000000e+00> : vector<16x256xf32>
    %27 = tpu.matmul %25, %26, %cst_20 {dimension_numbers = #tpu.dot_dimension_numbers<[1], [0], [0], [1], [0, 0, 1, 1], [], []>} : vector<16x512xbf16>, vector<512x256xbf16>, vector<16x256xf32> -> vector<16x256xf32>
    %c0_21 = arith.constant 0 : index
    %c0_22 = arith.constant 0 : index
    %28 = vector.load %arg9[%c0_21, %c0_22] : memref<1x256xf32, #tpu.memory_space<vmem>>, vector<1x256xf32>
    %29 = vector.broadcast %28 : vector<1x256xf32> to vector<16x256xf32>
    %30 = arith.addf %27, %29 : vector<16x256xf32>
    %cst_23 = arith.constant 0.000000e+00 : f32
    %31 = vector.broadcast %cst_23 : f32 to vector<16x256xf32>
    %32 = arith.maximumf %30, %31 : vector<16x256xf32>
    %33 = arith.truncf %32 : vector<16x256xf32> to vector<16x256xbf16>
    %c0_24 = arith.constant 0 : index
    %c0_25 = arith.constant 0 : index
    %34 = vector.load %arg10[%c0_24, %c0_25] : memref<256x128xbf16, #tpu.memory_space<vmem>>, vector<256x128xbf16>
    %cst_26 = arith.constant dense<0.000000e+00> : vector<16x128xf32>
    %35 = tpu.matmul %33, %34, %cst_26 {dimension_numbers = #tpu.dot_dimension_numbers<[1], [0], [0], [1], [0, 0, 1, 1], [], []>} : vector<16x256xbf16>, vector<256x128xbf16>, vector<16x128xf32> -> vector<16x128xf32>
    %c0_27 = arith.constant 0 : index
    %c0_28 = arith.constant 0 : index
    %36 = vector.load %arg11[%c0_27, %c0_28] : memref<1x128xf32, #tpu.memory_space<vmem>>, vector<1x128xf32>
    %37 = vector.broadcast %36 : vector<1x128xf32> to vector<16x128xf32>
    %38 = arith.addf %35, %37 : vector<16x128xf32>
    %cst_29 = arith.constant 0.000000e+00 : f32
    %39 = vector.broadcast %cst_29 : f32 to vector<16x128xf32>
    %40 = arith.maximumf %38, %39 : vector<16x128xf32>
    %c0_30 = arith.constant 0 : index
    %c0_31 = arith.constant 0 : index
    %41 = vector.load %arg12[%c0_30, %c0_31] : memref<16x128xf32, #tpu.memory_space<vmem>>, vector<16x128xf32>
    tpu.vector_store %arg12[%c0_30, %c0_31], %40 {strides = array<i32>} : memref<16x128xf32, #tpu.memory_space<vmem>>, vector<16x128xf32>,
    return
  }
  func.func @transform_0(%arg0: i32) -> (i32, i32) {
    %c0_i32 = arith.constant 0 : i32
    %c0_i32_0 = arith.constant 0 : i32
    return %arg0, %c0_i32 : i32, i32
  }
  func.func @transform_1(%arg0: i32) -> (i32, i32) {
    %c0_i32 = arith.constant 0 : i32
    %c0_i32_0 = arith.constant 0 : i32
    %c0_i32_1 = arith.constant 0 : i32
    return %c0_i32, %c0_i32_0 : i32, i32
  }
  func.func @transform_2(%arg0: i32) -> (i32, i32) {
    %c0_i32 = arith.constant 0 : i32
    %c0_i32_0 = arith.constant 0 : i32
    %c0_i32_1 = arith.constant 0 : i32
    return %c0_i32, %c0_i32_0 : i32, i32
  }
  func.func @transform_3(%arg0: i32) -> (i32, i32) {
    %c0_i32 = arith.constant 0 : i32
    %c0_i32_0 = arith.constant 0 : i32
    %c0_i32_1 = arith.constant 0 : i32
    return %c0_i32, %c0_i32_0 : i32, i32
  }
  func.func @transform_4(%arg0: i32) -> (i32, i32) {
    %c0_i32 = arith.constant 0 : i32
    %c0_i32_0 = arith.constant 0 : i32
    %c0_i32_1 = arith.constant 0 : i32
    return %c0_i32, %c0_i32_0 : i32, i32
  }
  func.func @transform_5(%arg0: i32) -> (i32, i32) {
    %c0_i32 = arith.constant 0 : i32
    %c0_i32_0 = arith.constant 0 : i32
    %c0_i32_1 = arith.constant 0 : i32
    return %c0_i32, %c0_i32_0 : i32, i32
  }
  func.func @transform_6(%arg0: i32) -> (i32, i32) {
    %c0_i32 = arith.constant 0 : i32
    %c0_i32_0 = arith.constant 0 : i32
    %c0_i32_1 = arith.constant 0 : i32
    return %c0_i32, %c0_i32_0 : i32, i32
  }
  func.func @transform_7(%arg0: i32) -> (i32, i32) {
    %c0_i32 = arith.constant 0 : i32
    %c0_i32_0 = arith.constant 0 : i32
    %c0_i32_1 = arith.constant 0 : i32
    return %c0_i32, %c0_i32_0 : i32, i32
  }
  func.func @transform_8(%arg0: i32) -> (i32, i32) {
    %c0_i32 = arith.constant 0 : i32
    %c0_i32_0 = arith.constant 0 : i32
    %c0_i32_1 = arith.constant 0 : i32
    return %c0_i32, %c0_i32_0 : i32, i32
  }
  func.func @transform_9(%arg0: i32) -> (i32, i32) {
    %c0_i32 = arith.constant 0 : i32
    %c0_i32_0 = arith.constant 0 : i32
    %c0_i32_1 = arith.constant 0 : i32
    return %c0_i32, %c0_i32_0 : i32, i32
  }
  func.func @transform_10(%arg0: i32) -> (i32, i32) {
    %c0_i32 = arith.constant 0 : i32
    %c0_i32_0 = arith.constant 0 : i32
    %c0_i32_1 = arith.constant 0 : i32
    return %c0_i32, %c0_i32_0 : i32, i32
  }
  func.func @transform_11(%arg0: i32) -> (i32, i32) {
    %c0_i32 = arith.constant 0 : i32
    %c0_i32_0 = arith.constant 0 : i32
    return %arg0, %c0_i32 : i32, i32
  }
}

module attributes {stable_mosaic.version = 11 : i64} {
  func.func @mlp_kernel(%arg0: i32, %arg1: memref<16x3072xf32, #tpu.memory_space<vmem>>, %arg2: memref<3072x128xbf16, #tpu.memory_space<vmem>>, %arg3: memref<1x128xf32, #tpu.memory_space<vmem>>, %arg4: memref<128x256xbf16, #tpu.memory_space<vmem>>, %arg5: memref<1x256xf32, #tpu.memory_space<vmem>>, %arg6: memref<256x512xbf16, #tpu.memory_space<vmem>>, %arg7: memref<1x512xf32, #tpu.memory_space<vmem>>, %arg8: memref<512x256xbf16, #tpu.memory_space<vmem>>, %arg9: memref<1x256xf32, #tpu.memory_space<vmem>>, %arg10: memref<256x128xbf16, #tpu.memory_space<vmem>>, %arg11: memref<1x128xf32, #tpu.memory_space<vmem>>, %arg12: memref<16x128xf32, #tpu.memory_space<vmem>>) attributes {dimension_semantics = [#tpu.dimension_semantics<parallel>], iteration_bounds = array<i64: 1>, scalar_prefetch = 0 : i64, scratch_operands = 0 : i64, tpu.core_type = #tpu.core_type<tc>, window_params = [{transform_indices = @transform_0, window_bounds = array<i64: 16, 3072>}, {pipeline_mode = #tpu.pipeline_mode<synchronous>, transform_indices = @transform_1, window_bounds = array<i64: 3072, 128>}, {pipeline_mode = #tpu.pipeline_mode<synchronous>, transform_indices = @transform_2, window_bounds = array<i64: 1, 128>}, {pipeline_mode = #tpu.pipeline_mode<synchronous>, transform_indices = @transform_3, window_bounds = array<i64: 128, 256>}, {pipeline_mode = #tpu.pipeline_mode<synchronous>, transform_indices = @transform_4, window_bounds = array<i64: 1, 256>}, {pipeline_mode = #tpu.pipeline_mode<synchronous>, transform_indices = @transform_5, window_bounds = array<i64: 256, 512>}, {pipeline_mode = #tpu.pipeline_mode<synchronous>, transform_indices = @transform_6, window_bounds = array<i64: 1, 512>}, {pipeline_mode = #tpu.pipeline_mode<synchronous>, transform_indices = @transform_7, window_bounds = array<i64: 512, 256>}, {pipeline_mode = #tpu.pipeline_mode<synchronous>, transform_indices = @transform_8, window_bounds = array<i64: 1, 256>}, {pipeline_mode = #tpu.pipeline_mode<synchronous>, transform_indices = @transform_9, window_bounds = array<i64: 256, 128>}, {pipeline_mode = #tpu.pipeline_mode<synchronous>, transform_indices = @transform_10, window_bounds = array<i64: 1, 128>}, {transform_indices = @transform_11, window_bounds = array<i64: 16, 128>}]} {
    %c0 = arith.constant 0 : index
    %c0_0 = arith.constant 0 : index
    %0 = vector.load %arg1[%c0, %c0_0] : memref<16x3072xf32, #tpu.memory_space<vmem>>, vector<16x3072xf32>
    %1 = arith.truncf %0 : vector<16x3072xf32> to vector<16x3072xbf16>
    %c0_1 = arith.constant 0 : index
    %c0_2 = arith.constant 0 : index
    %2 = vector.load %arg2[%c0_1, %c0_2] : memref<3072x128xbf16, #tpu.memory_space<vmem>>, vector<3072x128xbf16>
    %cst = arith.constant dense<0.000000e+00> : vector<16x128xf32>
    %3 = tpu.matmul %1, %2, %cst {dimension_numbers = #tpu.dot_dimension_numbers<[1], [0], [0], [1], [0, 0, 1, 1], [], []>} : vector<16x3072xbf16>, vector<3072x128xbf16>, vector<16x128xf32> -> vector<16x128xf32>
    %c0_3 = arith.constant 0 : index
    %c0_4 = arith.constant 0 : index
    %4 = vector.load %arg3[%c0_3, %c0_4] : memref<1x128xf32, #tpu.memory_space<vmem>>, vector<1x128xf32>
    %5 = vector.broadcast %4 : vector<1x128xf32> to vector<16x128xf32>
    %6 = arith.addf %3, %5 : vector<16x128xf32>
    %cst_5 = arith.constant 0.000000e+00 : f32
    %7 = vector.broadcast %cst_5 : f32 to vector<16x128xf32>
    %8 = arith.maximumf %6, %7 : vector<16x128xf32>
    %9 = arith.truncf %8 : vector<16x128xf32> to vector<16x128xbf16>
    %c0_6 = arith.constant 0 : index
    %c0_7 = arith.constant 0 : index
    %10 = vector.load %arg4[%c0_6, %c0_7] : memref<128x256xbf16, #tpu.memory_space<vmem>>, vector<128x256xbf16>
    %cst_8 = arith.constant dense<0.000000e+00> : vector<16x256xf32>
    %11 = tpu.matmul %9, %10, %cst_8 {dimension_numbers = #tpu.dot_dimension_numbers<[1], [0], [0], [1], [0, 0, 1, 1], [], []>} : vector<16x128xbf16>, vector<128x256xbf16>, vector<16x256xf32> -> vector<16x256xf32>
    %c0_9 = arith.constant 0 : index
    %c0_10 = arith.constant 0 : index
    %12 = vector.load %arg5[%c0_9, %c0_10] : memref<1x256xf32, #tpu.memory_space<vmem>>, vector<1x256xf32>
    %13 = vector.broadcast %12 : vector<1x256xf32> to vector<16x256xf32>
    %14 = arith.addf %11, %13 : vector<16x256xf32>
    %cst_11 = arith.constant 0.000000e+00 : f32
    %15 = vector.broadcast %cst_11 : f32 to vector<16x256xf32>
    %16 = arith.maximumf %14, %15 : vector<16x256xf32>
    %17 = arith.truncf %16 : vector<16x256xf32> to vector<16x256xbf16>
    %c0_12 = arith.constant 0 : index
    %c0_13 = arith.constant 0 : index
    %18 = vector.load %arg6[%c0_12, %c0_13] : memref<256x512xbf16, #tpu.memory_space<vmem>>, vector<256x512xbf16>
    %cst_14 = arith.constant dense<0.000000e+00> : vector<16x512xf32>
    %19 = tpu.matmul %17, %18, %cst_14 {dimension_numbers = #tpu.dot_dimension_numbers<[1], [0], [0], [1], [0, 0, 1, 1], [], []>} : vector<16x256xbf16>, vector<256x512xbf16>, vector<16x512xf32> -> vector<16x512xf32>
    %c0_15 = arith.constant 0 : index
    %c0_16 = arith.constant 0 : index
    %20 = vector.load %arg7[%c0_15, %c0_16] : memref<1x512xf32, #tpu.memory_space<vmem>>, vector<1x512xf32>
    %21 = vector.broadcast %20 : vector<1x512xf32> to vector<16x512xf32>
    %22 = arith.addf %19, %21 : vector<16x512xf32>
    %cst_17 = arith.constant 0.000000e+00 : f32
    %23 = vector.broadcast %cst_17 : f32 to vector<16x512xf32>
    %24 = arith.maximumf %22, %23 : vector<16x512xf32>
    %25 = arith.truncf %24 : vector<16x512xf32> to vector<16x512xbf16>
    %c0_18 = arith.constant 0 : index
    %c0_19 = arith.constant 0 : index
    %26 = vector.load %arg8[%c0_18, %c0_19] : memref<512x256xbf16, #tpu.memory_space<vmem>>, vector<512x256xbf16>
    %cst_20 = arith.constant dense<0.000000e+00> : vector<16x256xf32>
    %27 = tpu.matmul %25, %26, %cst_20 {dimension_numbers = #tpu.dot_dimension_numbers<[1], [0], [0], [1], [0, 0, 1, 1], [], []>} : vector<16x512xbf16>, vector<512x256xbf16>, vector<16x256xf32> -> vector<16x256xf32>
    %c0_21 = arith.constant 0 : index
    %c0_22 = arith.constant 0 : index
    %28 = vector.load %arg9[%c0_21, %c0_22] : memref<1x256xf32, #tpu.memory_space<vmem>>, vector<1x256xf32>
    %29 = vector.broadcast %28 : vector<1x256xf32> to vector<16x256xf32>
    %30 = arith.addf %27, %29 : vector<16x256xf32>
    %cst_23 = arith.constant 0.000000e+00 : f32
    %31 = vector.broadcast %cst_23 : f32 to vector<16x256xf32>
    %32 = arith.maximumf %30, %31 : vector<16x256xf32>
    %33 = arith.truncf %32 : vector<16x256xf32> to vector<16x256xbf16>
    %c0_24 = arith.constant 0 : index
    %c0_25 = arith.constant 0 : index
    %34 = vector.load %arg10[%c0_24, %c0_25] : memref<256x128xbf16, #tpu.memory_space<vmem>>, vector<256x128xbf16>
    %cst_26 = arith.constant dense<0.000000e+00> : vector<16x128xf32>
    %35 = tpu.matmul %33, %34, %cst_26 {dimension_numbers = #tpu.dot_dimension_numbers<[1], [0], [0], [1], [0, 0, 1, 1], [], []>} : vector<16x256xbf16>, vector<256x128xbf16>, vector<16x128xf32> -> vector<16x128xf32>
    %c0_27 = arith.constant 0 : index
    %c0_28 = arith.constant 0 : index
    %36 = vector.load %arg11[%c0_27, %c0_28] : memref<1x128xf32, #tpu.memory_space<vmem>>, vector<1x128xf32>
    %37 = vector.broadcast %36 : vector<1x128xf32> to vector<16x128xf32>
    %38 = arith.addf %35, %37 : vector<16x128xf32>
    %cst_29 = arith.constant 0.000000e+00 : f32
    %39 = vector.broadcast %cst_29 : f32 to vector<16x128xf32>
    %40 = arith.maximumf %38, %39 : vector<16x128xf32>
    %c0_30 = arith.constant 0 : index
    %c0_31 = arith.constant 0 : index
    %41 = vector.load %arg12[%c0_30, %c0_31] : memref<16x128xf32, #tpu.memory_space<vmem>>, vector<16x128xf32>
    tpu.vector_store %arg12[%c0_30, %c0_31], %40 {strides = array<i32>} : memref<16x128xf32, #tpu.memory_space<vmem>>, vector<16x128xf32>,
    return
  }
  func.func @transform_0(%arg0: i32) -> (i32, i32) {
    %c0_i32 = arith.constant 0 : i32
    %c0_i32_0 = arith.constant 0 : i32
    return %arg0, %c0_i32 : i32, i32
  }
  func.func @transform_1(%arg0: i32) -> (i32, i32) {
    %c0_i32 = arith.constant 0 : i32
    %c0_i32_0 = arith.constant 0 : i32
    %c0_i32_1 = arith.constant 0 : i32
    return %c0_i32, %c0_i32_0 : i32, i32
  }
  func.func @transform_2(%arg0: i32) -> (i32, i32) {
    %c0_i32 = arith.constant 0 : i32
    %c0_i32_0 = arith.constant 0 : i32
    %c0_i32_1 = arith.constant 0 : i32
    return %c0_i32, %c0_i32_0 : i32, i32
  }
  func.func @transform_3(%arg0: i32) -> (i32, i32) {
    %c0_i32 = arith.constant 0 : i32
    %c0_i32_0 = arith.constant 0 : i32
    %c0_i32_1 = arith.constant 0 : i32
    return %c0_i32, %c0_i32_0 : i32, i32
  }
  func.func @transform_4(%arg0: i32) -> (i32, i32) {
    %c0_i32 = arith.constant 0 : i32
    %c0_i32_0 = arith.constant 0 : i32
    %c0_i32_1 = arith.constant 0 : i32
    return %c0_i32, %c0_i32_0 : i32, i32
  }
  func.func @transform_5(%arg0: i32) -> (i32, i32) {
    %c0_i32 = arith.constant 0 : i32
    %c0_i32_0 = arith.constant 0 : i32
    %c0_i32_1 = arith.constant 0 : i32
    return %c0_i32, %c0_i32_0 : i32, i32
  }
  func.func @transform_6(%arg0: i32) -> (i32, i32) {
    %c0_i32 = arith.constant 0 : i32
    %c0_i32_0 = arith.constant 0 : i32
    %c0_i32_1 = arith.constant 0 : i32
    return %c0_i32, %c0_i32_0 : i32, i32
  }
  func.func @transform_7(%arg0: i32) -> (i32, i32) {
    %c0_i32 = arith.constant 0 : i32
    %c0_i32_0 = arith.constant 0 : i32
    %c0_i32_1 = arith.constant 0 : i32
    return %c0_i32, %c0_i32_0 : i32, i32
  }
  func.func @transform_8(%arg0: i32) -> (i32, i32) {
    %c0_i32 = arith.constant 0 : i32
    %c0_i32_0 = arith.constant 0 : i32
    %c0_i32_1 = arith.constant 0 : i32
    return %c0_i32, %c0_i32_0 : i32, i32
  }
  func.func @transform_9(%arg0: i32) -> (i32, i32) {
    %c0_i32 = arith.constant 0 : i32
    %c0_i32_0 = arith.constant 0 : i32
    %c0_i32_1 = arith.constant 0 : i32
    return %c0_i32, %c0_i32_0 : i32, i32
  }
  func.func @transform_10(%arg0: i32) -> (i32, i32) {
    %c0_i32 = arith.constant 0 : i32
    %c0_i32_0 = arith.constant 0 : i32
    %c0_i32_1 = arith.constant 0 : i32
    return %c0_i32, %c0_i32_0 : i32, i32
  }
  func.func @transform_11(%arg0: i32) -> (i32, i32) {
    %c0_i32 = arith.constant 0 : i32
    %c0_i32_0 = arith.constant 0 : i32
    return %arg0, %c0_i32 : i32, i32
  }
}

</mosaic_0001>

<llo_original>
// kernel: tpu_custom_call.1
$region0: #{tpu_custom_call.1}
  #allocation0 [shape = 'u32[]', space=smem, size = 0x4, offset = 0x4, fixed_abs, tag = 'smem constant byte address 0x4 - core index']
  #allocation1 [shape = 'u32[72,128]{1,0:T(1,128)}', space=vmem, size = 0x9000, scoped, tag = 'internal scratch']
  %s0 = inlined_call_operand.hbm [shape: f32[16,3072], index: 0, kind: input, shape index: {}]
  %s1 = inlined_call_operand.hbm [shape: bf16[3072,128], index: 1, kind: input, shape index: {}]
  %s2 = inlined_call_operand.hbm [shape: f32[1,128], index: 2, kind: input, shape index: {}]
  %s3 = inlined_call_operand.hbm [shape: bf16[128,256], index: 3, kind: input, shape index: {}]
  %s4 = inlined_call_operand.hbm [shape: f32[1,256], index: 4, kind: input, shape index: {}]
  %s5 = inlined_call_operand.hbm [shape: bf16[256,512], index: 5, kind: input, shape index: {}]
  %s6 = inlined_call_operand.vmem [shape: f32[1,512], index: 6, kind: input, shape index: {}]
  %s7 = inlined_call_operand.hbm [shape: bf16[512,256], index: 7, kind: input, shape index: {}]
  %s8 = inlined_call_operand.vmem [shape: f32[1,256], index: 8, kind: input, shape index: {}]
  %s9 = inlined_call_operand.hbm [shape: bf16[256,128], index: 9, kind: input, shape index: {}]
  %s10 = inlined_call_operand.vmem [shape: f32[1,128], index: 10, kind: input, shape index: {}]
  %s11 = inlined_call_operand.hbm [shape: f32[16,128], index: 11, kind: output, shape index: {}]
  %s12 = sld [smem:[#allocation0]]
  $region86: #{tpu_custom_call.1} parent=0
    _
  %s14 = ssub.s32 1, %s12
  %s15 = scalar_select 0, %s14, %s12
  $region1: #{tpu_custom_call.1} parent=0
    #allocation2 [shape = 'u8[196608]{0}', space=vmem, size = 0x30000, scoped, tag = 'input window, operand 0, single buffered']
    #allocation3 [shape = 's32[1]{0}', space=sflag, size = 0x4, scoped, tag = 'scoped memory for tpu_custom_call.1']
    #allocation4 [shape = 's32[1]{0}', space=sflag, size = 0x4, scoped, tag = 'scoped memory for tpu_custom_call.1']
    #allocation5 [shape = 'u8[786432]{0}', space=vmem, size = 0xc0000, scoped, tag = 'input window, operand 1, single buffered']
    #allocation6 [shape = 's32[1]{0}', space=sflag, size = 0x4, scoped, tag = 'scoped memory for tpu_custom_call.1']
    #allocation7 [shape = 'u8[512]{0}', space=vmem, size = 0x400, scoped, tag = 'input window, operand 2, single buffered']
    #allocation8 [shape = 'u8[65536]{0}', space=vmem, size = 0x10000, scoped, tag = 'input window, operand 3, single buffered']
    #allocation9 [shape = 's32[1]{0}', space=sflag, size = 0x4, scoped, tag = 'scoped memory for tpu_custom_call.1']
    #allocation10 [shape = 'u8[1024]{0}', space=vmem, size = 0x400, scoped, tag = 'input window, operand 4, single buffered']
    #allocation11 [shape = 'u8[262144]{0}', space=vmem, size = 0x40000, scoped, tag = 'input window, operand 5, single buffered']
    #allocation12 [shape = 's32[1]{0}', space=sflag, size = 0x4, scoped, tag = 'scoped memory for tpu_custom_call.1']
    #allocation13 [shape = 'u8[262144]{0}', space=vmem, size = 0x40000, scoped, tag = 'input window, operand 7, single buffered']
    #allocation14 [shape = 'u8[65536]{0}', space=vmem, size = 0x10000, scoped, tag = 'input window, operand 9, single buffered']
    #allocation15 [shape = 's32[1]{0}', space=sflag, size = 0x4, scoped, tag = 'scoped memory for tpu_custom_call.1']
    #allocation16 [shape = 'u8[8192]{0}', space=vmem, size = 0x2000, scoped, tag = 'output window, operand 0, single buffered']
    %16 = vsyncpa [#allocation3], 0
    %17 = vsyncpa [#allocation6], 0
    %18 = vsyncpa [#allocation9], 0
    %19 = vsyncpa [#allocation12], 0
    %20 = vsyncpa [#allocation15], 0
    %21 = vsyncpa [#allocation4], 0
    // Predicated region
    $region2: #{tpu_custom_call.1} parent=1 // pred_check
      _
    $region3: #{tpu_custom_call.1} parent=1 // pred_check_branch
      %23 = sbr.rel (0) target = $region5
    $region4: #{tpu_custom_call.1} parent=1 // pred_region
      %25 = vsyncadd [#allocation3], 0
      %s26 = sshll.u32 %s0, 4
      %s27 = int_to_ptr.hbm [resolvable:$true] %s26
      %s28 = sshll.u32 [#allocation2], 4
      %s29 = int_to_ptr.vmem [resolvable:$true] %s28
      %34 = dma.hbm_to_vmem [thread:$0]  %s27, 6144, %s29, [#allocation3], 3072, 3072, 192
    $region5: #{tpu_custom_call.1} parent=1 // pred_fallthru
      _
    // Predicated region
    $region6: #{tpu_custom_call.1} parent=1 // pred_check
      _
    $region7: #{tpu_custom_call.1} parent=1 // pred_check_branch
      %36 = sbr.rel (0) target = $region9
    $region8: #{tpu_custom_call.1} parent=1 // pred_region
      %38 = vsyncadd [#allocation6], 0
      %s39 = sshll.u32 %s1, 4
      %s40 = int_to_ptr.hbm [resolvable:$true] %s39
      %s41 = sshll.u32 [#allocation5], 4
      %s42 = int_to_ptr.vmem [resolvable:$true] %s41
      %47 = dma.hbm_to_vmem [thread:$0]  %s40, 24576, %s42, [#allocation6], 64, 64, 4
    $region9: #{tpu_custom_call.1} parent=1 // pred_fallthru
      _
    // Predicated region
    $region10: #{tpu_custom_call.1} parent=1 // pred_check
      _
    $region11: #{tpu_custom_call.1} parent=1 // pred_check_branch
      %49 = sbr.rel (0) target = $region13
    $region12: #{tpu_custom_call.1} parent=1 // pred_region
      %51 = vsyncadd [#allocation6], 0
      %s53 = sshll.u32 %s2, 4
      %s54 = int_to_ptr.hbm [resolvable:$true] %s53
      %s55 = sshll.u32 [#allocation7], 4
      %s56 = int_to_ptr.vmem [resolvable:$true] %s55
      %58 = dma.hbm_to_vmem [thread:$0]  %s54, 16, %s56, [#allocation6]
    $region13: #{tpu_custom_call.1} parent=1 // pred_fallthru
      _
    // Predicated region
    $region14: #{tpu_custom_call.1} parent=1 // pred_check
      _
    $region15: #{tpu_custom_call.1} parent=1 // pred_check_branch
      %60 = sbr.rel (0) target = $region17
    $region16: #{tpu_custom_call.1} parent=1 // pred_region
      %62 = vsyncadd [#allocation9], 0
      %s63 = sshll.u32 %s3, 4
      %s64 = int_to_ptr.hbm [resolvable:$true] %s63
      %s65 = sshll.u32 [#allocation8], 4
      %s66 = int_to_ptr.vmem [resolvable:$true] %s65
      %71 = dma.hbm_to_vmem [thread:$0]  %s64, 2048, %s66, [#allocation9], 128, 128, 8
    $region17: #{tpu_custom_call.1} parent=1 // pred_fallthru
      _
    // Predicated region
    $region18: #{tpu_custom_call.1} parent=1 // pred_check
      _
    $region19: #{tpu_custom_call.1} parent=1 // pred_check_branch
      %73 = sbr.rel (0) target = $region21
    $region20: #{tpu_custom_call.1} parent=1 // pred_region
      %75 = vsyncadd [#allocation9], 0
      %s77 = sshll.u32 %s4, 4
      %s78 = int_to_ptr.hbm [resolvable:$true] %s77
      %s79 = sshll.u32 [#allocation10], 4
      %s80 = int_to_ptr.vmem [resolvable:$true] %s79
      %82 = dma.hbm_to_vmem [thread:$0]  %s78, 32, %s80, [#allocation9]
    $region21: #{tpu_custom_call.1} parent=1 // pred_fallthru
      _
    // Predicated region
    $region22: #{tpu_custom_call.1} parent=1 // pred_check
      _
    $region23: #{tpu_custom_call.1} parent=1 // pred_check_branch
      %84 = sbr.rel (0) target = $region25
    $region24: #{tpu_custom_call.1} parent=1 // pred_region
      %86 = vsyncadd [#allocation12], 0
      %s87 = sshll.u32 %s5, 4
      %s88 = int_to_ptr.hbm [resolvable:$true] %s87
      %s89 = sshll.u32 [#allocation11], 4
      %s90 = int_to_ptr.vmem [resolvable:$true] %s89
      %95 = dma.hbm_to_vmem [thread:$0]  %s88, 8192, %s90, [#allocation12], 256, 256, 16
    $region25: #{tpu_custom_call.1} parent=1 // pred_fallthru
      _
    // Predicated region
    $region26: #{tpu_custom_call.1} parent=1 // pred_check
      _
    $region27: #{tpu_custom_call.1} parent=1 // pred_check_branch
      %97 = sbr.rel (0) target = $region29
    $region28: #{tpu_custom_call.1} parent=1 // pred_region
      _
    $region29: #{tpu_custom_call.1} parent=1 // pred_fallthru
      _
    // Predicated region
    $region30: #{tpu_custom_call.1} parent=1 // pred_check
      _
    $region31: #{tpu_custom_call.1} parent=1 // pred_check_branch
      %99 = sbr.rel (0) target = $region33
    $region32: #{tpu_custom_call.1} parent=1 // pred_region
      %101 = vsyncadd [#allocation12], 0
      %s102 = sshll.u32 %s7, 4
      %s103 = int_to_ptr.hbm [resolvable:$true] %s102
      %s104 = sshll.u32 [#allocation13], 4
      %s105 = int_to_ptr.vmem [resolvable:$true] %s104
      %110 = dma.hbm_to_vmem [thread:$0]  %s103, 8192, %s105, [#allocation12], 128, 128, 8
    $region33: #{tpu_custom_call.1} parent=1 // pred_fallthru
      _
    // Predicated region
    $region34: #{tpu_custom_call.1} parent=1 // pred_check
      _
    $region35: #{tpu_custom_call.1} parent=1 // pred_check_branch
      %112 = sbr.rel (0) target = $region37
    $region36: #{tpu_custom_call.1} parent=1 // pred_region
      _
    $region37: #{tpu_custom_call.1} parent=1 // pred_fallthru
      _
    // Predicated region
    $region38: #{tpu_custom_call.1} parent=1 // pred_check
      _
    $region39: #{tpu_custom_call.1} parent=1 // pred_check_branch
      %114 = sbr.rel (0) target = $region41
    $region40: #{tpu_custom_call.1} parent=1 // pred_region
      %116 = vsyncadd [#allocation15], 0
      %s117 = sshll.u32 %s9, 4
      %s118 = int_to_ptr.hbm [resolvable:$true] %s117
      %s119 = sshll.u32 [#allocation14], 4
      %s120 = int_to_ptr.vmem [resolvable:$true] %s119
      %125 = dma.hbm_to_vmem [thread:$0]  %s118, 2048, %s120, [#allocation15], 64, 64, 4
    $region41: #{tpu_custom_call.1} parent=1 // pred_fallthru
      _
    // Predicated region
    $region42: #{tpu_custom_call.1} parent=1 // pred_check
      _
    $region43: #{tpu_custom_call.1} parent=1 // pred_check_branch
      %127 = sbr.rel (0) target = $region45
    $region44: #{tpu_custom_call.1} parent=1 // pred_region
      _
    $region45: #{tpu_custom_call.1} parent=1 // pred_fallthru
      _
    // Predicated region
    $region46: #{tpu_custom_call.1} parent=1 // pred_check
      _
    $region47: #{tpu_custom_call.1} parent=1 // pred_check_branch
      %129 = sbr.rel (0) target = $region49
    $region48: #{tpu_custom_call.1} parent=1 // pred_region
      %131 = dma.done [#allocation3], 6144
    $region49: #{tpu_custom_call.1} parent=1 // pred_fallthru
      _
    // Predicated region
    $region50: #{tpu_custom_call.1} parent=1 // pred_check
      _
    $region51: #{tpu_custom_call.1} parent=1 // pred_check_branch
      %133 = sbr.rel (0) target = $region53
    $region52: #{tpu_custom_call.1} parent=1 // pred_region
      %135 = dma.done [#allocation6], 24576
    $region53: #{tpu_custom_call.1} parent=1 // pred_fallthru
      _
    // Predicated region
    $region54: #{tpu_custom_call.1} parent=1 // pred_check
      _
    $region55: #{tpu_custom_call.1} parent=1 // pred_check_branch
      %137 = sbr.rel (0) target = $region57
    $region56: #{tpu_custom_call.1} parent=1 // pred_region
      %139 = dma.done [#allocation6], 16
    $region57: #{tpu_custom_call.1} parent=1 // pred_fallthru
      _
    // Predicated region
    $region58: #{tpu_custom_call.1} parent=1 // pred_check
      _
    $region59: #{tpu_custom_call.1} parent=1 // pred_check_branch
      %141 = sbr.rel (0) target = $region61
    $region60: #{tpu_custom_call.1} parent=1 // pred_region
      %143 = dma.done [#allocation9], 2048
    $region61: #{tpu_custom_call.1} parent=1 // pred_fallthru
      _
    // Predicated region
    $region62: #{tpu_custom_call.1} parent=1 // pred_check
      _
    $region63: #{tpu_custom_call.1} parent=1 // pred_check_branch
      %145 = sbr.rel (0) target = $region65
    $region64: #{tpu_custom_call.1} parent=1 // pred_region
      %147 = dma.done [#allocation9], 32
    $region65: #{tpu_custom_call.1} parent=1 // pred_fallthru
      _
    // Predicated region
    $region66: #{tpu_custom_call.1} parent=1 // pred_check
      _
    $region67: #{tpu_custom_call.1} parent=1 // pred_check_branch
      %149 = sbr.rel (0) target = $region69
    $region68: #{tpu_custom_call.1} parent=1 // pred_region
      %151 = dma.done [#allocation12], 8192
    $region69: #{tpu_custom_call.1} parent=1 // pred_fallthru
      _
    // Predicated region
    $region70: #{tpu_custom_call.1} parent=1 // pred_check
      _
    $region71: #{tpu_custom_call.1} parent=1 // pred_check_branch
      %153 = sbr.rel (0) target = $region73
    $region72: #{tpu_custom_call.1} parent=1 // pred_region
      %155 = dma.done [#allocation12], 8192
    $region73: #{tpu_custom_call.1} parent=1 // pred_fallthru
      _
    // Predicated region
    $region74: #{tpu_custom_call.1} parent=1 // pred_check
      _
    $region75: #{tpu_custom_call.1} parent=1 // pred_check_branch
      %157 = sbr.rel (0) target = $region77
    $region76: #{tpu_custom_call.1} parent=1 // pred_region
      %159 = dma.done [#allocation15], 2048
    $region77: #{tpu_custom_call.1} parent=1 // pred_fallthru
      _
    %v160 = vld [vmem:[#allocation2] sm:$0xff]
    %v161 = vld [vmem:[#allocation2 + $0x8] sm:$0xff]
    %v162 = vld [vmem:[#allocation2 + $0x10] sm:$0xff]
    %v163 = vld [vmem:[#allocation2 + $0x18] sm:$0xff]
    %v164 = vld [vmem:[#allocation2 + $0x20] sm:$0xff]
    %v165 = vld [vmem:[#allocation2 + $0x28] sm:$0xff]
    %v166 = vld [vmem:[#allocation2 + $0x30] sm:$0xff]
    %v167 = vld [vmem:[#allocation2 + $0x38] sm:$0xff]
    %v168 = vld [vmem:[#allocation2 + $0x40] sm:$0xff]
    %v169 = vld [vmem:[#allocation2 + $0x48] sm:$0xff]
    %v170 = vld [vmem:[#allocation2 + $0x50] sm:$0xff]
    %v171 = vld [vmem:[#allocation2 + $0x58] sm:$0xff]
    %v172 = vld [vmem:[#allocation2 + $0x60] sm:$0xff]
    %v173 = vld [vmem:[#allocation2 + $0x68] sm:$0xff]
    %v174 = vld [vmem:[#allocation2 + $0x70] sm:$0xff]
    %v175 = vld [vmem:[#allocation2 + $0x78] sm:$0xff]
    %v176 = vld [vmem:[#allocation2 + $0x80] sm:$0xff]
    %v177 = vld [vmem:[#allocation2 + $0x88] sm:$0xff]
    %v178 = vld [vmem:[#allocation2 + $0x90] sm:$0xff]
    %v179 = vld [vmem:[#allocation2 + $0x98] sm:$0xff]
    %v180 = vld [vmem:[#allocation2 + $0xa0] sm:$0xff]
    %v181 = vld [vmem:[#allocation2 + $0xa8] sm:$0xff]
    %v182 = vld [vmem:[#allocation2 + $0xb0] sm:$0xff]
    %v183 = vld [vmem:[#allocation2 + $0xb8] sm:$0xff]
    %v184 = vld [vmem:[#allocation2 + $0xc0] sm:$0xff]
    %v185 = vld [vmem:[#allocation2 + $0xc8] sm:$0xff]
    %v186 = vld [vmem:[#allocation2 + $0xd0] sm:$0xff]
    %v187 = vld [vmem:[#allocation2 + $0xd8] sm:$0xff]
    %v188 = vld [vmem:[#allocation2 + $0xe0] sm:$0xff]
    %v189 = vld [vmem:[#allocation2 + $0xe8] sm:$0xff]
    %v190 = vld [vmem:[#allocation2 + $0xf0] sm:$0xff]
    %v191 = vld [vmem:[#allocation2 + $0xf8] sm:$0xff]
    %v192 = vld [vmem:[#allocation2 + $0x100] sm:$0xff]
    %v193 = vld [vmem:[#allocation2 + $0x108] sm:$0xff]
    %v194 = vld [vmem:[#allocation2 + $0x110] sm:$0xff]
    %v195 = vld [vmem:[#allocation2 + $0x118] sm:$0xff]
    %v196 = vld [vmem:[#allocation2 + $0x120] sm:$0xff]
    %v197 = vld [vmem:[#allocation2 + $0x128] sm:$0xff]
    %v198 = vld [vmem:[#allocation2 + $0x130] sm:$0xff]
    %v199 = vld [vmem:[#allocation2 + $0x138] sm:$0xff]
    %v200 = vld [vmem:[#allocation2 + $0x140] sm:$0xff]
    %v201 = vld [vmem:[#allocation2 + $0x148] sm:$0xff]
    %v202 = vld [vmem:[#allocation2 + $0x150] sm:$0xff]
    %v203 = vld [vmem:[#allocation2 + $0x158] sm:$0xff]
    %v204 = vld [vmem:[#allocation2 + $0x160] sm:$0xff]
    %v205 = vld [vmem:[#allocation2 + $0x168] sm:$0xff]
    %v206 = vld [vmem:[#allocation2 + $0x170] sm:$0xff]
    %v207 = vld [vmem:[#allocation2 + $0x178] sm:$0xff]
    %v208 = vpack.c.bf16 %v184, %v160
    %v209 = vpack.c.bf16 %v185, %v161
    %v210 = vpack.c.bf16 %v186, %v162
    %v211 = vpack.c.bf16 %v187, %v163
    %v212 = vpack.c.bf16 %v188, %v164
    %v213 = vpack.c.bf16 %v189, %v165
    %v214 = vpack.c.bf16 %v190, %v166
    %v215 = vpack.c.bf16 %v191, %v167
    %v216 = vpack.c.bf16 %v192, %v168
    %v217 = vpack.c.bf16 %v193, %v169
    %v218 = vpack.c.bf16 %v194, %v170
    %v219 = vpack.c.bf16 %v195, %v171
    %v220 = vpack.c.bf16 %v196, %v172
    %v221 = vpack.c.bf16 %v197, %v173
    %v222 = vpack.c.bf16 %v198, %v174
    %v223 = vpack.c.bf16 %v199, %v175
    %v224 = vpack.c.bf16 %v200, %v176
    %v225 = vpack.c.bf16 %v201, %v177
    %v226 = vpack.c.bf16 %v202, %v178
    %v227 = vpack.c.bf16 %v203, %v179
    %v228 = vpack.c.bf16 %v204, %v180
    %v229 = vpack.c.bf16 %v205, %v181
    %v230 = vpack.c.bf16 %v206, %v182
    %v231 = vpack.c.bf16 %v207, %v183
    %v232 = vld [vmem:[#allocation5] sm:$0xf]
    %v233 = vld [vmem:[#allocation5 + $0x4] sm:$0xf]
    %v234 = vld [vmem:[#allocation5 + $0x8] sm:$0xf]
    %v235 = vld [vmem:[#allocation5 + $0xc] sm:$0xf]
    %v236 = vld [vmem:[#allocation5 + $0x10] sm:$0xf]
    %v237 = vld [vmem:[#allocation5 + $0x14] sm:$0xf]
    %v238 = vld [vmem:[#allocation5 + $0x18] sm:$0xf]
    %v239 = vld [vmem:[#allocation5 + $0x1c] sm:$0xf]
    %v240 = vld [vmem:[#allocation5 + $0x20] sm:$0xf]
    %v241 = vld [vmem:[#allocation5 + $0x24] sm:$0xf]
    %v242 = vld [vmem:[#allocation5 + $0x28] sm:$0xf]
    %v243 = vld [vmem:[#allocation5 + $0x2c] sm:$0xf]
    %v244 = vld [vmem:[#allocation5 + $0x30] sm:$0xf]
    %v245 = vld [vmem:[#allocation5 + $0x34] sm:$0xf]
    %v246 = vld [vmem:[#allocation5 + $0x38] sm:$0xf]
    %v247 = vld [vmem:[#allocation5 + $0x3c] sm:$0xf]
    %v248 = vld [vmem:[#allocation5 + $0x40] sm:$0xf]
    %v249 = vld [vmem:[#allocation5 + $0x44] sm:$0xf]
    %v250 = vld [vmem:[#allocation5 + $0x48] sm:$0xf]
    %v251 = vld [vmem:[#allocation5 + $0x4c] sm:$0xf]
    %v252 = vld [vmem:[#allocation5 + $0x50] sm:$0xf]
    %v253 = vld [vmem:[#allocation5 + $0x54] sm:$0xf]
    %v254 = vld [vmem:[#allocation5 + $0x58] sm:$0xf]
    %v255 = vld [vmem:[#allocation5 + $0x5c] sm:$0xf]
    %v256 = vld [vmem:[#allocation5 + $0x60] sm:$0xf]
    %v257 = vld [vmem:[#allocation5 + $0x64] sm:$0xf]
    %v258 = vld [vmem:[#allocation5 + $0x68] sm:$0xf]
    %v259 = vld [vmem:[#allocation5 + $0x6c] sm:$0xf]
    %v260 = vld [vmem:[#allocation5 + $0x70] sm:$0xf]
    %v261 = vld [vmem:[#allocation5 + $0x74] sm:$0xf]
    %v262 = vld [vmem:[#allocation5 + $0x78] sm:$0xf]
    %v263 = vld [vmem:[#allocation5 + $0x7c] sm:$0xf]
    %v264 = vld [vmem:[#allocation5 + $0x80] sm:$0xf]
    %v265 = vld [vmem:[#allocation5 + $0x84] sm:$0xf]
    %v266 = vld [vmem:[#allocation5 + $0x88] sm:$0xf]
    %v267 = vld [vmem:[#allocation5 + $0x8c] sm:$0xf]
    %v268 = vld [vmem:[#allocation5 + $0x90] sm:$0xf]
    %v269 = vld [vmem:[#allocation5 + $0x94] sm:$0xf]
    %v270 = vld [vmem:[#allocation5 + $0x98] sm:$0xf]
    %v271 = vld [vmem:[#allocation5 + $0x9c] sm:$0xf]
    %v272 = vld [vmem:[#allocation5 + $0xa0] sm:$0xf]
    %v273 = vld [vmem:[#allocation5 + $0xa4] sm:$0xf]
    %v274 = vld [vmem:[#allocation5 + $0xa8] sm:$0xf]
    %v275 = vld [vmem:[#allocation5 + $0xac] sm:$0xf]
    %v276 = vld [vmem:[#allocation5 + $0xb0] sm:$0xf]
    %v277 = vld [vmem:[#allocation5 + $0xb4] sm:$0xf]
    %v278 = vld [vmem:[#allocation5 + $0xb8] sm:$0xf]
    %v279 = vld [vmem:[#allocation5 + $0xbc] sm:$0xf]
    %v280 = vld [vmem:[#allocation5 + $0xc0] sm:$0xf]
    %v281 = vld [vmem:[#allocation5 + $0xc4] sm:$0xf]
    %v282 = vld [vmem:[#allocation5 + $0xc8] sm:$0xf]
    %v283 = vld [vmem:[#allocation5 + $0xcc] sm:$0xf]
    %v284 = vld [vmem:[#allocation5 + $0xd0] sm:$0xf]
    %v285 = vld [vmem:[#allocation5 + $0xd4] sm:$0xf]
    %v286 = vld [vmem:[#allocation5 + $0xd8] sm:$0xf]
    %v287 = vld [vmem:[#allocation5 + $0xdc] sm:$0xf]
    %v288 = vld [vmem:[#allocation5 + $0xe0] sm:$0xf]
    %v289 = vld [vmem:[#allocation5 + $0xe4] sm:$0xf]
    %v290 = vld [vmem:[#allocation5 + $0xe8] sm:$0xf]
    %v291 = vld [vmem:[#allocation5 + $0xec] sm:$0xf]
    %v292 = vld [vmem:[#allocation5 + $0xf0] sm:$0xf]
    %v293 = vld [vmem:[#allocation5 + $0xf4] sm:$0xf]
    %v294 = vld [vmem:[#allocation5 + $0xf8] sm:$0xf]
    %v295 = vld [vmem:[#allocation5 + $0xfc] sm:$0xf]
    %v296 = vld [vmem:[#allocation5 + $0x100] sm:$0xf]
    %v297 = vld [vmem:[#allocation5 + $0x104] sm:$0xf]
    %v298 = vld [vmem:[#allocation5 + $0x108] sm:$0xf]
    %v299 = vld [vmem:[#allocation5 + $0x10c] sm:$0xf]
    %v300 = vld [vmem:[#allocation5 + $0x110] sm:$0xf]
    %v301 = vld [vmem:[#allocation5 + $0x114] sm:$0xf]
    %v302 = vld [vmem:[#allocation5 + $0x118] sm:$0xf]
    %v303 = vld [vmem:[#allocation5 + $0x11c] sm:$0xf]
    %v304 = vld [vmem:[#allocation5 + $0x120] sm:$0xf]
    %v305 = vld [vmem:[#allocation5 + $0x124] sm:$0xf]
    %v306 = vld [vmem:[#allocation5 + $0x128] sm:$0xf]
    %v307 = vld [vmem:[#allocation5 + $0x12c] sm:$0xf]
    %v308 = vld [vmem:[#allocation5 + $0x130] sm:$0xf]
    %v309 = vld [vmem:[#allocation5 + $0x134] sm:$0xf]
    %v310 = vld [vmem:[#allocation5 + $0x138] sm:$0xf]
    %v311 = vld [vmem:[#allocation5 + $0x13c] sm:$0xf]
    %v312 = vld [vmem:[#allocation5 + $0x140] sm:$0xf]
    %v313 = vld [vmem:[#allocation5 + $0x144] sm:$0xf]
    %v314 = vld [vmem:[#allocation5 + $0x148] sm:$0xf]
    %v315 = vld [vmem:[#allocation5 + $0x14c] sm:$0xf]
    %v316 = vld [vmem:[#allocation5 + $0x150] sm:$0xf]
    %v317 = vld [vmem:[#allocation5 + $0x154] sm:$0xf]
    %v318 = vld [vmem:[#allocation5 + $0x158] sm:$0xf]
    %v319 = vld [vmem:[#allocation5 + $0x15c] sm:$0xf]
    %v320 = vld [vmem:[#allocation5 + $0x160] sm:$0xf]
    %v321 = vld [vmem:[#allocation5 + $0x164] sm:$0xf]
    %v322 = vld [vmem:[#allocation5 + $0x168] sm:$0xf]
    %v323 = vld [vmem:[#allocation5 + $0x16c] sm:$0xf]
    %v324 = vld [vmem:[#allocation5 + $0x170] sm:$0xf]
    %v325 = vld [vmem:[#allocation5 + $0x174] sm:$0xf]
    %v326 = vld [vmem:[#allocation5 + $0x178] sm:$0xf]
    %v327 = vld [vmem:[#allocation5 + $0x17c] sm:$0xf]
    %v328 = vld [vmem:[#allocation5 + $0x180] sm:$0xf]
    %v329 = vld [vmem:[#allocation5 + $0x184] sm:$0xf]
    %v330 = vld [vmem:[#allocation5 + $0x188] sm:$0xf]
    %v331 = vld [vmem:[#allocation5 + $0x18c] sm:$0xf]
    %v332 = vld [vmem:[#allocation5 + $0x190] sm:$0xf]
    %v333 = vld [vmem:[#allocation5 + $0x194] sm:$0xf]
    %v334 = vld [vmem:[#allocation5 + $0x198] sm:$0xf]
    %v335 = vld [vmem:[#allocation5 + $0x19c] sm:$0xf]
    %v336 = vld [vmem:[#allocation5 + $0x1a0] sm:$0xf]
    %v337 = vld [vmem:[#allocation5 + $0x1a4] sm:$0xf]
    %v338 = vld [vmem:[#allocation5 + $0x1a8] sm:$0xf]
    %v339 = vld [vmem:[#allocation5 + $0x1ac] sm:$0xf]
    %v340 = vld [vmem:[#allocation5 + $0x1b0] sm:$0xf]
    %v341 = vld [vmem:[#allocation5 + $0x1b4] sm:$0xf]
    %v342 = vld [vmem:[#allocation5 + $0x1b8] sm:$0xf]
    %v343 = vld [vmem:[#allocation5 + $0x1bc] sm:$0xf]
    %v344 = vld [vmem:[#allocation5 + $0x1c0] sm:$0xf]
    %v345 = vld [vmem:[#allocation5 + $0x1c4] sm:$0xf]
    %v346 = vld [vmem:[#allocation5 + $0x1c8] sm:$0xf]
    %v347 = vld [vmem:[#allocation5 + $0x1cc] sm:$0xf]
    %v348 = vld [vmem:[#allocation5 + $0x1d0] sm:$0xf]
    %v349 = vld [vmem:[#allocation5 + $0x1d4] sm:$0xf]
    %v350 = vld [vmem:[#allocation5 + $0x1d8] sm:$0xf]
    %v351 = vld [vmem:[#allocation5 + $0x1dc] sm:$0xf]
    %v352 = vld [vmem:[#allocation5 + $0x1e0] sm:$0xf]
    %v353 = vld [vmem:[#allocation5 + $0x1e4] sm:$0xf]
    %v354 = vld [vmem:[#allocation5 + $0x1e8] sm:$0xf]
    %v355 = vld [vmem:[#allocation5 + $0x1ec] sm:$0xf]
    %v356 = vld [vmem:[#allocation5 + $0x1f0] sm:$0xf]
    %v357 = vld [vmem:[#allocation5 + $0x1f4] sm:$0xf]
    %v358 = vld [vmem:[#allocation5 + $0x1f8] sm:$0xf]
    %v359 = vld [vmem:[#allocation5 + $0x1fc] sm:$0xf]
    %v360 = vld [vmem:[#allocation5 + $0x200] sm:$0xf]
    %v361 = vld [vmem:[#allocation5 + $0x204] sm:$0xf]
    %v362 = vld [vmem:[#allocation5 + $0x208] sm:$0xf]
    %v363 = vld [vmem:[#allocation5 + $0x20c] sm:$0xf]
    %v364 = vld [vmem:[#allocation5 + $0x210] sm:$0xf]
    %v365 = vld [vmem:[#allocation5 + $0x214] sm:$0xf]
    %v366 = vld [vmem:[#allocation5 + $0x218] sm:$0xf]
    %v367 = vld [vmem:[#allocation5 + $0x21c] sm:$0xf]
    %v368 = vld [vmem:[#allocation5 + $0x220] sm:$0xf]
    %v369 = vld [vmem:[#allocation5 + $0x224] sm:$0xf]
    %v370 = vld [vmem:[#allocation5 + $0x228] sm:$0xf]
    %v371 = vld [vmem:[#allocation5 + $0x22c] sm:$0xf]
    %v372 = vld [vmem:[#allocation5 + $0x230] sm:$0xf]
    %v373 = vld [vmem:[#allocation5 + $0x234] sm:$0xf]
    %v374 = vld [vmem:[#allocation5 + $0x238] sm:$0xf]
    %v375 = vld [vmem:[#allocation5 + $0x23c] sm:$0xf]
    %v376 = vld [vmem:[#allocation5 + $0x240] sm:$0xf]
    %v377 = vld [vmem:[#allocation5 + $0x244] sm:$0xf]
    %v378 = vld [vmem:[#allocation5 + $0x248] sm:$0xf]
    %v379 = vld [vmem:[#allocation5 + $0x24c] sm:$0xf]
    %v380 = vld [vmem:[#allocation5 + $0x250] sm:$0xf]
    %v381 = vld [vmem:[#allocation5 + $0x254] sm:$0xf]
    %v382 = vld [vmem:[#allocation5 + $0x258] sm:$0xf]
    %v383 = vld [vmem:[#allocation5 + $0x25c] sm:$0xf]
    %v384 = vld [vmem:[#allocation5 + $0x260] sm:$0xf]
    %v385 = vld [vmem:[#allocation5 + $0x264] sm:$0xf]
    %v386 = vld [vmem:[#allocation5 + $0x268] sm:$0xf]
    %v387 = vld [vmem:[#allocation5 + $0x26c] sm:$0xf]
    %v388 = vld [vmem:[#allocation5 + $0x270] sm:$0xf]
    %v389 = vld [vmem:[#allocation5 + $0x274] sm:$0xf]
    %v390 = vld [vmem:[#allocation5 + $0x278] sm:$0xf]
    %v391 = vld [vmem:[#allocation5 + $0x27c] sm:$0xf]
    %v392 = vld [vmem:[#allocation5 + $0x280] sm:$0xf]
    %v393 = vld [vmem:[#allocation5 + $0x284] sm:$0xf]
    %v394 = vld [vmem:[#allocation5 + $0x288] sm:$0xf]
    %v395 = vld [vmem:[#allocation5 + $0x28c] sm:$0xf]
    %v396 = vld [vmem:[#allocation5 + $0x290] sm:$0xf]
    %v397 = vld [vmem:[#allocation5 + $0x294] sm:$0xf]
    %v398 = vld [vmem:[#allocation5 + $0x298] sm:$0xf]
    %v399 = vld [vmem:[#allocation5 + $0x29c] sm:$0xf]
    %v400 = vld [vmem:[#allocation5 + $0x2a0] sm:$0xf]
    %v401 = vld [vmem:[#allocation5 + $0x2a4] sm:$0xf]
    %v402 = vld [vmem:[#allocation5 + $0x2a8] sm:$0xf]
    %v403 = vld [vmem:[#allocation5 + $0x2ac] sm:$0xf]
    %v404 = vld [vmem:[#allocation5 + $0x2b0] sm:$0xf]
    %v405 = vld [vmem:[#allocation5 + $0x2b4] sm:$0xf]
    %v406 = vld [vmem:[#allocation5 + $0x2b8] sm:$0xf]
    %v407 = vld [vmem:[#allocation5 + $0x2bc] sm:$0xf]
    %v408 = vld [vmem:[#allocation5 + $0x2c0] sm:$0xf]
    %v409 = vld [vmem:[#allocation5 + $0x2c4] sm:$0xf]
    %v410 = vld [vmem:[#allocation5 + $0x2c8] sm:$0xf]
    %v411 = vld [vmem:[#allocation5 + $0x2cc] sm:$0xf]
    %v412 = vld [vmem:[#allocation5 + $0x2d0] sm:$0xf]
    %v413 = vld [vmem:[#allocation5 + $0x2d4] sm:$0xf]
    %v414 = vld [vmem:[#allocation5 + $0x2d8] sm:$0xf]
    %v415 = vld [vmem:[#allocation5 + $0x2dc] sm:$0xf]
    %v416 = vld [vmem:[#allocation5 + $0x2e0] sm:$0xf]
    %v417 = vld [vmem:[#allocation5 + $0x2e4] sm:$0xf]
    %v418 = vld [vmem:[#allocation5 + $0x2e8] sm:$0xf]
    %v419 = vld [vmem:[#allocation5 + $0x2ec] sm:$0xf]
    %v420 = vld [vmem:[#allocation5 + $0x2f0] sm:$0xf]
    %v421 = vld [vmem:[#allocation5 + $0x2f4] sm:$0xf]
    %v422 = vld [vmem:[#allocation5 + $0x2f8] sm:$0xf]
    %v423 = vld [vmem:[#allocation5 + $0x2fc] sm:$0xf]
    %v424 = vld [vmem:[#allocation5 + $0x300] sm:$0xf]
    %v425 = vld [vmem:[#allocation5 + $0x304] sm:$0xf]
    %v426 = vld [vmem:[#allocation5 + $0x308] sm:$0xf]
    %v427 = vld [vmem:[#allocation5 + $0x30c] sm:$0xf]
    %v428 = vld [vmem:[#allocation5 + $0x310] sm:$0xf]
    %v429 = vld [vmem:[#allocation5 + $0x314] sm:$0xf]
    %v430 = vld [vmem:[#allocation5 + $0x318] sm:$0xf]
    %v431 = vld [vmem:[#allocation5 + $0x31c] sm:$0xf]
    %v432 = vld [vmem:[#allocation5 + $0x320] sm:$0xf]
    %v433 = vld [vmem:[#allocation5 + $0x324] sm:$0xf]
    %v434 = vld [vmem:[#allocation5 + $0x328] sm:$0xf]
    %v435 = vld [vmem:[#allocation5 + $0x32c] sm:$0xf]
    %v436 = vld [vmem:[#allocation5 + $0x330] sm:$0xf]
    %v437 = vld [vmem:[#allocation5 + $0x334] sm:$0xf]
    %v438 = vld [vmem:[#allocation5 + $0x338] sm:$0xf]
    %v439 = vld [vmem:[#allocation5 + $0x33c] sm:$0xf]
    %v440 = vld [vmem:[#allocation5 + $0x340] sm:$0xf]
    %v441 = vld [vmem:[#allocation5 + $0x344] sm:$0xf]
    %v442 = vld [vmem:[#allocation5 + $0x348] sm:$0xf]
    %v443 = vld [vmem:[#allocation5 + $0x34c] sm:$0xf]
    %v444 = vld [vmem:[#allocation5 + $0x350] sm:$0xf]
    %v445 = vld [vmem:[#allocation5 + $0x354] sm:$0xf]
    %v446 = vld [vmem:[#allocation5 + $0x358] sm:$0xf]
    %v447 = vld [vmem:[#allocation5 + $0x35c] sm:$0xf]
    %v448 = vld [vmem:[#allocation5 + $0x360] sm:$0xf]
    %v449 = vld [vmem:[#allocation5 + $0x364] sm:$0xf]
    %v450 = vld [vmem:[#allocation5 + $0x368] sm:$0xf]
    %v451 = vld [vmem:[#allocation5 + $0x36c] sm:$0xf]
    %v452 = vld [vmem:[#allocation5 + $0x370] sm:$0xf]
    %v453 = vld [vmem:[#allocation5 + $0x374] sm:$0xf]
    %v454 = vld [vmem:[#allocation5 + $0x378] sm:$0xf]
    %v455 = vld [vmem:[#allocation5 + $0x37c] sm:$0xf]
    %v456 = vld [vmem:[#allocation5 + $0x380] sm:$0xf]
    %v457 = vld [vmem:[#allocation5 + $0x384] sm:$0xf]
    %v458 = vld [vmem:[#allocation5 + $0x388] sm:$0xf]
    %v459 = vld [vmem:[#allocation5 + $0x38c] sm:$0xf]
    %v460 = vld [vmem:[#allocation5 + $0x390] sm:$0xf]
    %v461 = vld [vmem:[#allocation5 + $0x394] sm:$0xf]
    %v462 = vld [vmem:[#allocation5 + $0x398] sm:$0xf]
    %v463 = vld [vmem:[#allocation5 + $0x39c] sm:$0xf]
    %v464 = vld [vmem:[#allocation5 + $0x3a0] sm:$0xf]
    %v465 = vld [vmem:[#allocation5 + $0x3a4] sm:$0xf]
    %v466 = vld [vmem:[#allocation5 + $0x3a8] sm:$0xf]
    %v467 = vld [vmem:[#allocation5 + $0x3ac] sm:$0xf]
    %v468 = vld [vmem:[#allocation5 + $0x3b0] sm:$0xf]
    %v469 = vld [vmem:[#allocation5 + $0x3b4] sm:$0xf]
    %v470 = vld [vmem:[#allocation5 + $0x3b8] sm:$0xf]
    %v471 = vld [vmem:[#allocation5 + $0x3bc] sm:$0xf]
    %v472 = vld [vmem:[#allocation5 + $0x3c0] sm:$0xf]
    %v473 = vld [vmem:[#allocation5 + $0x3c4] sm:$0xf]
    %v474 = vld [vmem:[#allocation5 + $0x3c8] sm:$0xf]
    %v475 = vld [vmem:[#allocation5 + $0x3cc] sm:$0xf]
    %v476 = vld [vmem:[#allocation5 + $0x3d0] sm:$0xf]
    %v477 = vld [vmem:[#allocation5 + $0x3d4] sm:$0xf]
    %v478 = vld [vmem:[#allocation5 + $0x3d8] sm:$0xf]
    %v479 = vld [vmem:[#allocation5 + $0x3dc] sm:$0xf]
    %v480 = vld [vmem:[#allocation5 + $0x3e0] sm:$0xf]
    %v481 = vld [vmem:[#allocation5 + $0x3e4] sm:$0xf]
    %v482 = vld [vmem:[#allocation5 + $0x3e8] sm:$0xf]
    %v483 = vld [vmem:[#allocation5 + $0x3ec] sm:$0xf]
    %v484 = vld [vmem:[#allocation5 + $0x3f0] sm:$0xf]
    %v485 = vld [vmem:[#allocation5 + $0x3f4] sm:$0xf]
    %v486 = vld [vmem:[#allocation5 + $0x3f8] sm:$0xf]
    %v487 = vld [vmem:[#allocation5 + $0x3fc] sm:$0xf]
    %v488 = vld [vmem:[#allocation5 + $0x400] sm:$0xf]
    %v489 = vld [vmem:[#allocation5 + $0x404] sm:$0xf]
    %v490 = vld [vmem:[#allocation5 + $0x408] sm:$0xf]
    %v491 = vld [vmem:[#allocation5 + $0x40c] sm:$0xf]
    %v492 = vld [vmem:[#allocation5 + $0x410] sm:$0xf]
    %v493 = vld [vmem:[#allocation5 + $0x414] sm:$0xf]
    %v494 = vld [vmem:[#allocation5 + $0x418] sm:$0xf]
    %v495 = vld [vmem:[#allocation5 + $0x41c] sm:$0xf]
    %v496 = vld [vmem:[#allocation5 + $0x420] sm:$0xf]
    %v497 = vld [vmem:[#allocation5 + $0x424] sm:$0xf]
    %v498 = vld [vmem:[#allocation5 + $0x428] sm:$0xf]
    %v499 = vld [vmem:[#allocation5 + $0x42c] sm:$0xf]
    %v500 = vld [vmem:[#allocation5 + $0x430] sm:$0xf]
    %v501 = vld [vmem:[#allocation5 + $0x434] sm:$0xf]
    %v502 = vld [vmem:[#allocation5 + $0x438] sm:$0xf]
    %v503 = vld [vmem:[#allocation5 + $0x43c] sm:$0xf]
    %v504 = vld [vmem:[#allocation5 + $0x440] sm:$0xf]
    %v505 = vld [vmem:[#allocation5 + $0x444] sm:$0xf]
    %v506 = vld [vmem:[#allocation5 + $0x448] sm:$0xf]
    %v507 = vld [vmem:[#allocation5 + $0x44c] sm:$0xf]
    %v508 = vld [vmem:[#allocation5 + $0x450] sm:$0xf]
    %v509 = vld [vmem:[#allocation5 + $0x454] sm:$0xf]
    %v510 = vld [vmem:[#allocation5 + $0x458] sm:$0xf]
    %v511 = vld [vmem:[#allocation5 + $0x45c] sm:$0xf]
    %v512 = vld [vmem:[#allocation5 + $0x460] sm:$0xf]
    %v513 = vld [vmem:[#allocation5 + $0x464] sm:$0xf]
    %v514 = vld [vmem:[#allocation5 + $0x468] sm:$0xf]
    %v515 = vld [vmem:[#allocation5 + $0x46c] sm:$0xf]
    %v516 = vld [vmem:[#allocation5 + $0x470] sm:$0xf]
    %v517 = vld [vmem:[#allocation5 + $0x474] sm:$0xf]
    %v518 = vld [vmem:[#allocation5 + $0x478] sm:$0xf]
    %v519 = vld [vmem:[#allocation5 + $0x47c] sm:$0xf]
    %v520 = vld [vmem:[#allocation5 + $0x480] sm:$0xf]
    %v521 = vld [vmem:[#allocation5 + $0x484] sm:$0xf]
    %v522 = vld [vmem:[#allocation5 + $0x488] sm:$0xf]
    %v523 = vld [vmem:[#allocation5 + $0x48c] sm:$0xf]
    %v524 = vld [vmem:[#allocation5 + $0x490] sm:$0xf]
    %v525 = vld [vmem:[#allocation5 + $0x494] sm:$0xf]
    %v526 = vld [vmem:[#allocation5 + $0x498] sm:$0xf]
    %v527 = vld [vmem:[#allocation5 + $0x49c] sm:$0xf]
    %v528 = vld [vmem:[#allocation5 + $0x4a0] sm:$0xf]
    %v529 = vld [vmem:[#allocation5 + $0x4a4] sm:$0xf]
    %v530 = vld [vmem:[#allocation5 + $0x4a8] sm:$0xf]
    %v531 = vld [vmem:[#allocation5 + $0x4ac] sm:$0xf]
    %v532 = vld [vmem:[#allocation5 + $0x4b0] sm:$0xf]
    %v533 = vld [vmem:[#allocation5 + $0x4b4] sm:$0xf]
    %v534 = vld [vmem:[#allocation5 + $0x4b8] sm:$0xf]
    %v535 = vld [vmem:[#allocation5 + $0x4bc] sm:$0xf]
    %v536 = vld [vmem:[#allocation5 + $0x4c0] sm:$0xf]
    %v537 = vld [vmem:[#allocation5 + $0x4c4] sm:$0xf]
    %v538 = vld [vmem:[#allocation5 + $0x4c8] sm:$0xf]
    %v539 = vld [vmem:[#allocation5 + $0x4cc] sm:$0xf]
    %v540 = vld [vmem:[#allocation5 + $0x4d0] sm:$0xf]
    %v541 = vld [vmem:[#allocation5 + $0x4d4] sm:$0xf]
    %v542 = vld [vmem:[#allocation5 + $0x4d8] sm:$0xf]
    %v543 = vld [vmem:[#allocation5 + $0x4dc] sm:$0xf]
    %v544 = vld [vmem:[#allocation5 + $0x4e0] sm:$0xf]
    %v545 = vld [vmem:[#allocation5 + $0x4e4] sm:$0xf]
    %v546 = vld [vmem:[#allocation5 + $0x4e8] sm:$0xf]
    %v547 = vld [vmem:[#allocation5 + $0x4ec] sm:$0xf]
    %v548 = vld [vmem:[#allocation5 + $0x4f0] sm:$0xf]
    %v549 = vld [vmem:[#allocation5 + $0x4f4] sm:$0xf]
    %v550 = vld [vmem:[#allocation5 + $0x4f8] sm:$0xf]
    %v551 = vld [vmem:[#allocation5 + $0x4fc] sm:$0xf]
    %v552 = vld [vmem:[#allocation5 + $0x500] sm:$0xf]
    %v553 = vld [vmem:[#allocation5 + $0x504] sm:$0xf]
    %v554 = vld [vmem:[#allocation5 + $0x508] sm:$0xf]
    %v555 = vld [vmem:[#allocation5 + $0x50c] sm:$0xf]
    %v556 = vld [vmem:[#allocation5 + $0x510] sm:$0xf]
    %v557 = vld [vmem:[#allocation5 + $0x514] sm:$0xf]
    %v558 = vld [vmem:[#allocation5 + $0x518] sm:$0xf]
    %v559 = vld [vmem:[#allocation5 + $0x51c] sm:$0xf]
    %v560 = vld [vmem:[#allocation5 + $0x520] sm:$0xf]
    %v561 = vld [vmem:[#allocation5 + $0x524] sm:$0xf]
    %v562 = vld [vmem:[#allocation5 + $0x528] sm:$0xf]
    %v563 = vld [vmem:[#allocation5 + $0x52c] sm:$0xf]
    %v564 = vld [vmem:[#allocation5 + $0x530] sm:$0xf]
    %v565 = vld [vmem:[#allocation5 + $0x534] sm:$0xf]
    %v566 = vld [vmem:[#allocation5 + $0x538] sm:$0xf]
    %v567 = vld [vmem:[#allocation5 + $0x53c] sm:$0xf]
    %v568 = vld [vmem:[#allocation5 + $0x540] sm:$0xf]
    %v569 = vld [vmem:[#allocation5 + $0x544] sm:$0xf]
    %v570 = vld [vmem:[#allocation5 + $0x548] sm:$0xf]
    %v571 = vld [vmem:[#allocation5 + $0x54c] sm:$0xf]
    %v572 = vld [vmem:[#allocation5 + $0x550] sm:$0xf]
    %v573 = vld [vmem:[#allocation5 + $0x554] sm:$0xf]
    %v574 = vld [vmem:[#allocation5 + $0x558] sm:$0xf]
    %v575 = vld [vmem:[#allocation5 + $0x55c] sm:$0xf]
    %v576 = vld [vmem:[#allocation5 + $0x560] sm:$0xf]
    %v577 = vld [vmem:[#allocation5 + $0x564] sm:$0xf]
    %v578 = vld [vmem:[#allocation5 + $0x568] sm:$0xf]
    %v579 = vld [vmem:[#allocation5 + $0x56c] sm:$0xf]
    %v580 = vld [vmem:[#allocation5 + $0x570] sm:$0xf]
    %v581 = vld [vmem:[#allocation5 + $0x574] sm:$0xf]
    %v582 = vld [vmem:[#allocation5 + $0x578] sm:$0xf]
    %v583 = vld [vmem:[#allocation5 + $0x57c] sm:$0xf]
    %v584 = vld [vmem:[#allocation5 + $0x580] sm:$0xf]
    %v585 = vld [vmem:[#allocation5 + $0x584] sm:$0xf]
    %v586 = vld [vmem:[#allocation5 + $0x588] sm:$0xf]
    %v587 = vld [vmem:[#allocation5 + $0x58c] sm:$0xf]
    %v588 = vld [vmem:[#allocation5 + $0x590] sm:$0xf]
    %v589 = vld [vmem:[#allocation5 + $0x594] sm:$0xf]
    %v590 = vld [vmem:[#allocation5 + $0x598] sm:$0xf]
    %v591 = vld [vmem:[#allocation5 + $0x59c] sm:$0xf]
    %v592 = vld [vmem:[#allocation5 + $0x5a0] sm:$0xf]
    %v593 = vld [vmem:[#allocation5 + $0x5a4] sm:$0xf]
    %v594 = vld [vmem:[#allocation5 + $0x5a8] sm:$0xf]
    %v595 = vld [vmem:[#allocation5 + $0x5ac] sm:$0xf]
    %v596 = vld [vmem:[#allocation5 + $0x5b0] sm:$0xf]
    %v597 = vld [vmem:[#allocation5 + $0x5b4] sm:$0xf]
    %v598 = vld [vmem:[#allocation5 + $0x5b8] sm:$0xf]
    %v599 = vld [vmem:[#allocation5 + $0x5bc] sm:$0xf]
    %v600 = vld [vmem:[#allocation5 + $0x5c0] sm:$0xf]
    %v601 = vld [vmem:[#allocation5 + $0x5c4] sm:$0xf]
    %v602 = vld [vmem:[#allocation5 + $0x5c8] sm:$0xf]
    %v603 = vld [vmem:[#allocation5 + $0x5cc] sm:$0xf]
    %v604 = vld [vmem:[#allocation5 + $0x5d0] sm:$0xf]
    %v605 = vld [vmem:[#allocation5 + $0x5d4] sm:$0xf]
    %v606 = vld [vmem:[#allocation5 + $0x5d8] sm:$0xf]
    %v607 = vld [vmem:[#allocation5 + $0x5dc] sm:$0xf]
    %v608 = vld [vmem:[#allocation5 + $0x5e0] sm:$0xf]
    %v609 = vld [vmem:[#allocation5 + $0x5e4] sm:$0xf]
    %v610 = vld [vmem:[#allocation5 + $0x5e8] sm:$0xf]
    %v611 = vld [vmem:[#allocation5 + $0x5ec] sm:$0xf]
    %v612 = vld [vmem:[#allocation5 + $0x5f0] sm:$0xf]
    %v613 = vld [vmem:[#allocation5 + $0x5f4] sm:$0xf]
    %v614 = vld [vmem:[#allocation5 + $0x5f8] sm:$0xf]
    %v615 = vld [vmem:[#allocation5 + $0x5fc] sm:$0xf]
    %v616 = vld [vmem:[#allocation7] sm:$0x1]
    %v618 = vperm.slane %v616, 0
    %v1004 = vunpack.c.l.b16 %v232
    %v1005 = vunpack.c.l.b16 %v233
    %v1006 = vunpack.c.l.b16 %v234
    %v1007 = vunpack.c.l.b16 %v235
    %v1008 = vunpack.c.l.b16 %v236
    %v1009 = vunpack.c.l.b16 %v237
    %v1010 = vunpack.c.l.b16 %v238
    %v1011 = vunpack.c.l.b16 %v239
    %v1012 = vunpack.c.l.b16 %v240
    %v1013 = vunpack.c.l.b16 %v241
    %v1014 = vunpack.c.l.b16 %v242
    %v1015 = vunpack.c.l.b16 %v243
    %v1016 = vunpack.c.l.b16 %v244
    %v1017 = vunpack.c.l.b16 %v245
    %v1018 = vunpack.c.l.b16 %v246
    %v1019 = vunpack.c.l.b16 %v247
    %v1020 = vunpack.c.l.b16 %v248
    %v1021 = vunpack.c.l.b16 %v249
    %v1022 = vunpack.c.l.b16 %v250
    %v1023 = vunpack.c.l.b16 %v251
    %v1024 = vunpack.c.l.b16 %v252
    %v1025 = vunpack.c.l.b16 %v253
    %v1026 = vunpack.c.l.b16 %v254
    %v1027 = vunpack.c.l.b16 %v255
    %v1028 = vunpack.c.l.b16 %v256
    %v1029 = vunpack.c.l.b16 %v257
    %v1030 = vunpack.c.l.b16 %v258
    %v1031 = vunpack.c.l.b16 %v259
    %v1032 = vunpack.c.l.b16 %v260
    %v1033 = vunpack.c.l.b16 %v261
    %v1034 = vunpack.c.l.b16 %v262
    %v1035 = vunpack.c.l.b16 %v263
    %v1036 = vunpack.c.l.b16 %v264
    %v1037 = vunpack.c.l.b16 %v265
    %v1038 = vunpack.c.l.b16 %v266
    %v1039 = vunpack.c.l.b16 %v267
    %v1040 = vunpack.c.l.b16 %v268
    %v1041 = vunpack.c.l.b16 %v269
    %v1042 = vunpack.c.l.b16 %v270
    %v1043 = vunpack.c.l.b16 %v271
    %v1044 = vunpack.c.l.b16 %v272
    %v1045 = vunpack.c.l.b16 %v273
    %v1046 = vunpack.c.l.b16 %v274
    %v1047 = vunpack.c.l.b16 %v275
    %v1048 = vunpack.c.l.b16 %v276
    %v1049 = vunpack.c.l.b16 %v277
    %v1050 = vunpack.c.l.b16 %v278
    %v1051 = vunpack.c.l.b16 %v279
    %v1052 = vunpack.c.l.b16 %v280
    %v1053 = vunpack.c.l.b16 %v281
    %v1054 = vunpack.c.l.b16 %v282
    %v1055 = vunpack.c.l.b16 %v283
    %v1056 = vunpack.c.l.b16 %v284
    %v1057 = vunpack.c.l.b16 %v285
    %v1058 = vunpack.c.l.b16 %v286
    %v1059 = vunpack.c.l.b16 %v287
    %v1060 = vunpack.c.l.b16 %v288
    %v1061 = vunpack.c.l.b16 %v289
    %v1062 = vunpack.c.l.b16 %v290
    %v1063 = vunpack.c.l.b16 %v291
    %v1064 = vunpack.c.l.b16 %v292
    %v1065 = vunpack.c.l.b16 %v293
    %v1066 = vunpack.c.l.b16 %v294
    %v1067 = vunpack.c.l.b16 %v295
    %v1068 = vunpack.c.l.b16 %v296
    %v1069 = vunpack.c.l.b16 %v297
    %v1070 = vunpack.c.l.b16 %v298
    %v1071 = vunpack.c.l.b16 %v299
    %v1072 = vunpack.c.l.b16 %v300
    %v1073 = vunpack.c.l.b16 %v301
    %v1074 = vunpack.c.l.b16 %v302
    %v1075 = vunpack.c.l.b16 %v303
    %v1076 = vunpack.c.l.b16 %v304
    %v1077 = vunpack.c.l.b16 %v305
    %v1078 = vunpack.c.l.b16 %v306
    %v1079 = vunpack.c.l.b16 %v307
    %v1080 = vunpack.c.l.b16 %v308
    %v1081 = vunpack.c.l.b16 %v309
    %v1082 = vunpack.c.l.b16 %v310
    %v1083 = vunpack.c.l.b16 %v311
    %v1084 = vunpack.c.l.b16 %v312
    %v1085 = vunpack.c.l.b16 %v313
    %v1086 = vunpack.c.l.b16 %v314
    %v1087 = vunpack.c.l.b16 %v315
    %v1088 = vunpack.c.l.b16 %v316
    %v1089 = vunpack.c.l.b16 %v317
    %v1090 = vunpack.c.l.b16 %v318
    %v1091 = vunpack.c.l.b16 %v319
    %v1092 = vunpack.c.l.b16 %v320
    %v1093 = vunpack.c.l.b16 %v321
    %v1094 = vunpack.c.l.b16 %v322
    %v1095 = vunpack.c.l.b16 %v323
    %v1096 = vunpack.c.l.b16 %v324
    %v1097 = vunpack.c.l.b16 %v325
    %v1098 = vunpack.c.l.b16 %v326
    %v1099 = vunpack.c.l.b16 %v327
    %v1100 = vunpack.c.l.b16 %v328
    %v1101 = vunpack.c.l.b16 %v329
    %v1102 = vunpack.c.l.b16 %v330
    %v1103 = vunpack.c.l.b16 %v331
    %v1104 = vunpack.c.l.b16 %v332
    %v1105 = vunpack.c.l.b16 %v333
    %v1106 = vunpack.c.l.b16 %v334
    %v1107 = vunpack.c.l.b16 %v335
    %v1108 = vunpack.c.l.b16 %v336
    %v1109 = vunpack.c.l.b16 %v337
    %v1110 = vunpack.c.l.b16 %v338
    %v1111 = vunpack.c.l.b16 %v339
    %v1112 = vunpack.c.l.b16 %v340
    %v1113 = vunpack.c.l.b16 %v341
    %v1114 = vunpack.c.l.b16 %v342
    %v1115 = vunpack.c.l.b16 %v343
    %v1116 = vunpack.c.l.b16 %v344
    %v1117 = vunpack.c.l.b16 %v345
    %v1118 = vunpack.c.l.b16 %v346
    %v1119 = vunpack.c.l.b16 %v347
    %v1120 = vunpack.c.l.b16 %v348
    %v1121 = vunpack.c.l.b16 %v349
    %v1122 = vunpack.c.l.b16 %v350
    %v1123 = vunpack.c.l.b16 %v351
    %v1124 = vunpack.c.l.b16 %v352
    %v1125 = vunpack.c.l.b16 %v353
    %v1126 = vunpack.c.l.b16 %v354
    %v1127 = vunpack.c.l.b16 %v355
    %v1128 = vunpack.c.l.b16 %v356
    %v1129 = vunpack.c.l.b16 %v357
    %v1130 = vunpack.c.l.b16 %v358
    %v1131 = vunpack.c.l.b16 %v359
    %v1132 = vunpack.c.l.b16 %v360
    %v1133 = vunpack.c.l.b16 %v361
    %v1134 = vunpack.c.l.b16 %v362
    %v1135 = vunpack.c.l.b16 %v363
    %v1136 = vunpack.c.l.b16 %v364
    %v1137 = vunpack.c.l.b16 %v365
    %v1138 = vunpack.c.l.b16 %v366
    %v1139 = vunpack.c.l.b16 %v367
    %v1140 = vunpack.c.l.b16 %v368
    %v1141 = vunpack.c.l.b16 %v369
    %v1142 = vunpack.c.l.b16 %v370
    %v1143 = vunpack.c.l.b16 %v371
    %v1144 = vunpack.c.l.b16 %v372
    %v1145 = vunpack.c.l.b16 %v373
    %v1146 = vunpack.c.l.b16 %v374
    %v1147 = vunpack.c.l.b16 %v375
    %v1148 = vunpack.c.l.b16 %v376
    %v1149 = vunpack.c.l.b16 %v377
    %v1150 = vunpack.c.l.b16 %v378
    %v1151 = vunpack.c.l.b16 %v379
    %v1152 = vunpack.c.l.b16 %v380
    %v1153 = vunpack.c.l.b16 %v381
    %v1154 = vunpack.c.l.b16 %v382
    %v1155 = vunpack.c.l.b16 %v383
    %v1156 = vunpack.c.l.b16 %v384
    %v1157 = vunpack.c.l.b16 %v385
    %v1158 = vunpack.c.l.b16 %v386
    %v1159 = vunpack.c.l.b16 %v387
    %v1160 = vunpack.c.l.b16 %v388
    %v1161 = vunpack.c.l.b16 %v389
    %v1162 = vunpack.c.l.b16 %v390
    %v1163 = vunpack.c.l.b16 %v391
    %v1164 = vunpack.c.l.b16 %v392
    %v1165 = vunpack.c.l.b16 %v393
    %v1166 = vunpack.c.l.b16 %v394
    %v1167 = vunpack.c.l.b16 %v395
    %v1168 = vunpack.c.l.b16 %v396
    %v1169 = vunpack.c.l.b16 %v397
    %v1170 = vunpack.c.l.b16 %v398
    %v1171 = vunpack.c.l.b16 %v399
    %v1172 = vunpack.c.l.b16 %v400
    %v1173 = vunpack.c.l.b16 %v401
    %v1174 = vunpack.c.l.b16 %v402
    %v1175 = vunpack.c.l.b16 %v403
    %v1176 = vunpack.c.l.b16 %v404
    %v1177 = vunpack.c.l.b16 %v405
    %v1178 = vunpack.c.l.b16 %v406
    %v1179 = vunpack.c.l.b16 %v407
    %v1180 = vunpack.c.l.b16 %v408
    %v1181 = vunpack.c.l.b16 %v409
    %v1182 = vunpack.c.l.b16 %v410
    %v1183 = vunpack.c.l.b16 %v411
    %v1184 = vunpack.c.l.b16 %v412
    %v1185 = vunpack.c.l.b16 %v413
    %v1186 = vunpack.c.l.b16 %v414
    %v1187 = vunpack.c.l.b16 %v415
    %v1188 = vunpack.c.l.b16 %v416
    %v1189 = vunpack.c.l.b16 %v417
    %v1190 = vunpack.c.l.b16 %v418
    %v1191 = vunpack.c.l.b16 %v419
    %v1192 = vunpack.c.l.b16 %v420
    %v1193 = vunpack.c.l.b16 %v421
    %v1194 = vunpack.c.l.b16 %v422
    %v1195 = vunpack.c.l.b16 %v423
    %v1196 = vunpack.c.l.b16 %v424
    %v1197 = vunpack.c.l.b16 %v425
    %v1198 = vunpack.c.l.b16 %v426
    %v1199 = vunpack.c.l.b16 %v427
    %v1200 = vunpack.c.l.b16 %v428
    %v1201 = vunpack.c.l.b16 %v429
    %v1202 = vunpack.c.l.b16 %v430
    %v1203 = vunpack.c.l.b16 %v431
    %v1204 = vunpack.c.l.b16 %v432
    %v1205 = vunpack.c.l.b16 %v433
    %v1206 = vunpack.c.l.b16 %v434
    %v1207 = vunpack.c.l.b16 %v435
    %v1208 = vunpack.c.l.b16 %v436
    %v1209 = vunpack.c.l.b16 %v437
    %v1210 = vunpack.c.l.b16 %v438
    %v1211 = vunpack.c.l.b16 %v439
    %v1212 = vunpack.c.l.b16 %v440
    %v1213 = vunpack.c.l.b16 %v441
    %v1214 = vunpack.c.l.b16 %v442
    %v1215 = vunpack.c.l.b16 %v443
    %v1216 = vunpack.c.l.b16 %v444
    %v1217 = vunpack.c.l.b16 %v445
    %v1218 = vunpack.c.l.b16 %v446
    %v1219 = vunpack.c.l.b16 %v447
    %v1220 = vunpack.c.l.b16 %v448
    %v1221 = vunpack.c.l.b16 %v449
    %v1222 = vunpack.c.l.b16 %v450
    %v1223 = vunpack.c.l.b16 %v451
    %v1224 = vunpack.c.l.b16 %v452
    %v1225 = vunpack.c.l.b16 %v453
    %v1226 = vunpack.c.l.b16 %v454
    %v1227 = vunpack.c.l.b16 %v455
    %v1228 = vunpack.c.l.b16 %v456
    %v1229 = vunpack.c.l.b16 %v457
    %v1230 = vunpack.c.l.b16 %v458
    %v1231 = vunpack.c.l.b16 %v459
    %v1232 = vunpack.c.l.b16 %v460
    %v1233 = vunpack.c.l.b16 %v461
    %v1234 = vunpack.c.l.b16 %v462
    %v1235 = vunpack.c.l.b16 %v463
    %v1236 = vunpack.c.l.b16 %v464
    %v1237 = vunpack.c.l.b16 %v465
    %v1238 = vunpack.c.l.b16 %v466
    %v1239 = vunpack.c.l.b16 %v467
    %v1240 = vunpack.c.l.b16 %v468
    %v1241 = vunpack.c.l.b16 %v469
    %v1242 = vunpack.c.l.b16 %v470
    %v1243 = vunpack.c.l.b16 %v471
    %v1244 = vunpack.c.l.b16 %v472
    %v1245 = vunpack.c.l.b16 %v473
    %v1246 = vunpack.c.l.b16 %v474
    %v1247 = vunpack.c.l.b16 %v475
    %v1248 = vunpack.c.l.b16 %v476
    %v1249 = vunpack.c.l.b16 %v477
    %v1250 = vunpack.c.l.b16 %v478
    %v1251 = vunpack.c.l.b16 %v479
    %v1252 = vunpack.c.l.b16 %v480
    %v1253 = vunpack.c.l.b16 %v481
    %v1254 = vunpack.c.l.b16 %v482
    %v1255 = vunpack.c.l.b16 %v483
    %v1256 = vunpack.c.l.b16 %v484
    %v1257 = vunpack.c.l.b16 %v485
    %v1258 = vunpack.c.l.b16 %v486
    %v1259 = vunpack.c.l.b16 %v487
    %v1260 = vunpack.c.l.b16 %v488
    %v1261 = vunpack.c.l.b16 %v489
    %v1262 = vunpack.c.l.b16 %v490
    %v1263 = vunpack.c.l.b16 %v491
    %v1264 = vunpack.c.l.b16 %v492
    %v1265 = vunpack.c.l.b16 %v493
    %v1266 = vunpack.c.l.b16 %v494
    %v1267 = vunpack.c.l.b16 %v495
    %v1268 = vunpack.c.l.b16 %v496
    %v1269 = vunpack.c.l.b16 %v497
    %v1270 = vunpack.c.l.b16 %v498
    %v1271 = vunpack.c.l.b16 %v499
    %v1272 = vunpack.c.l.b16 %v500
    %v1273 = vunpack.c.l.b16 %v501
    %v1274 = vunpack.c.l.b16 %v502
    %v1275 = vunpack.c.l.b16 %v503
    %v1276 = vunpack.c.l.b16 %v504
    %v1277 = vunpack.c.l.b16 %v505
    %v1278 = vunpack.c.l.b16 %v506
    %v1279 = vunpack.c.l.b16 %v507
    %v1280 = vunpack.c.l.b16 %v508
    %v1281 = vunpack.c.l.b16 %v509
    %v1282 = vunpack.c.l.b16 %v510
    %v1283 = vunpack.c.l.b16 %v511
    %v1284 = vunpack.c.l.b16 %v512
    %v1285 = vunpack.c.l.b16 %v513
    %v1286 = vunpack.c.l.b16 %v514
    %v1287 = vunpack.c.l.b16 %v515
    %v1288 = vunpack.c.l.b16 %v516
    %v1289 = vunpack.c.l.b16 %v517
    %v1290 = vunpack.c.l.b16 %v518
    %v1291 = vunpack.c.l.b16 %v519
    %v1292 = vunpack.c.l.b16 %v520
    %v1293 = vunpack.c.l.b16 %v521
    %v1294 = vunpack.c.l.b16 %v522
    %v1295 = vunpack.c.l.b16 %v523
    %v1296 = vunpack.c.l.b16 %v524
    %v1297 = vunpack.c.l.b16 %v525
    %v1298 = vunpack.c.l.b16 %v526
    %v1299 = vunpack.c.l.b16 %v527
    %v1300 = vunpack.c.l.b16 %v528
    %v1301 = vunpack.c.l.b16 %v529
    %v1302 = vunpack.c.l.b16 %v530
    %v1303 = vunpack.c.l.b16 %v531
    %v1304 = vunpack.c.l.b16 %v532
    %v1305 = vunpack.c.l.b16 %v533
    %v1306 = vunpack.c.l.b16 %v534
    %v1307 = vunpack.c.l.b16 %v535
    %v1308 = vunpack.c.l.b16 %v536
    %v1309 = vunpack.c.l.b16 %v537
    %v1310 = vunpack.c.l.b16 %v538
    %v1311 = vunpack.c.l.b16 %v539
    %v1312 = vunpack.c.l.b16 %v540
    %v1313 = vunpack.c.l.b16 %v541
    %v1314 = vunpack.c.l.b16 %v542
    %v1315 = vunpack.c.l.b16 %v543
    %v1316 = vunpack.c.l.b16 %v544
    %v1317 = vunpack.c.l.b16 %v545
    %v1318 = vunpack.c.l.b16 %v546
    %v1319 = vunpack.c.l.b16 %v547
    %v1320 = vunpack.c.l.b16 %v548
    %v1321 = vunpack.c.l.b16 %v549
    %v1322 = vunpack.c.l.b16 %v550
    %v1323 = vunpack.c.l.b16 %v551
    %v1324 = vunpack.c.l.b16 %v552
    %v1325 = vunpack.c.l.b16 %v553
    %v1326 = vunpack.c.l.b16 %v554
    %v1327 = vunpack.c.l.b16 %v555
    %v1328 = vunpack.c.l.b16 %v556
    %v1329 = vunpack.c.l.b16 %v557
    %v1330 = vunpack.c.l.b16 %v558
    %v1331 = vunpack.c.l.b16 %v559
    %v1332 = vunpack.c.l.b16 %v560
    %v1333 = vunpack.c.l.b16 %v561
    %v1334 = vunpack.c.l.b16 %v562
    %v1335 = vunpack.c.l.b16 %v563
    %v1336 = vunpack.c.l.b16 %v564
    %v1337 = vunpack.c.l.b16 %v565
    %v1338 = vunpack.c.l.b16 %v566
    %v1339 = vunpack.c.l.b16 %v567
    %v1340 = vunpack.c.l.b16 %v568
    %v1341 = vunpack.c.l.b16 %v569
    %v1342 = vunpack.c.l.b16 %v570
    %v1343 = vunpack.c.l.b16 %v571
    %v1344 = vunpack.c.l.b16 %v572
    %v1345 = vunpack.c.l.b16 %v573
    %v1346 = vunpack.c.l.b16 %v574
    %v1347 = vunpack.c.l.b16 %v575
    %v1348 = vunpack.c.l.b16 %v576
    %v1349 = vunpack.c.l.b16 %v577
    %v1350 = vunpack.c.l.b16 %v578
    %v1351 = vunpack.c.l.b16 %v579
    %v1352 = vunpack.c.l.b16 %v580
    %v1353 = vunpack.c.l.b16 %v581
    %v1354 = vunpack.c.l.b16 %v582
    %v1355 = vunpack.c.l.b16 %v583
    %v1356 = vunpack.c.l.b16 %v584
    %v1357 = vunpack.c.l.b16 %v585
    %v1358 = vunpack.c.l.b16 %v586
    %v1359 = vunpack.c.l.b16 %v587
    %v1360 = vunpack.c.l.b16 %v588
    %v1361 = vunpack.c.l.b16 %v589
    %v1362 = vunpack.c.l.b16 %v590
    %v1363 = vunpack.c.l.b16 %v591
    %v1364 = vunpack.c.l.b16 %v592
    %v1365 = vunpack.c.l.b16 %v593
    %v1366 = vunpack.c.l.b16 %v594
    %v1367 = vunpack.c.l.b16 %v595
    %v1368 = vunpack.c.l.b16 %v596
    %v1369 = vunpack.c.l.b16 %v597
    %v1370 = vunpack.c.l.b16 %v598
    %v1371 = vunpack.c.l.b16 %v599
    %v1372 = vunpack.c.l.b16 %v600
    %v1373 = vunpack.c.l.b16 %v601
    %v1374 = vunpack.c.l.b16 %v602
    %v1375 = vunpack.c.l.b16 %v603
    %v1376 = vunpack.c.l.b16 %v604
    %v1377 = vunpack.c.l.b16 %v605
    %v1378 = vunpack.c.l.b16 %v606
    %v1379 = vunpack.c.l.b16 %v607
    %v1380 = vunpack.c.l.b16 %v608
    %v1381 = vunpack.c.l.b16 %v609
    %v1382 = vunpack.c.l.b16 %v610
    %v1383 = vunpack.c.l.b16 %v611
    %v1384 = vunpack.c.l.b16 %v612
    %v1385 = vunpack.c.l.b16 %v613
    %v1386 = vunpack.c.l.b16 %v614
    %v1387 = vunpack.c.l.b16 %v615
    %v1388 = vpack.c.b16 %v1005, %v1004
    %v1389 = vpack.c.b16 %v1007, %v1006
    %v1390 = vpack.c.b16 %v1009, %v1008
    %v1391 = vpack.c.b16 %v1011, %v1010
    %v1392 = vpack.c.b16 %v1013, %v1012
    %v1393 = vpack.c.b16 %v1015, %v1014
    %v1394 = vpack.c.b16 %v1017, %v1016
    %v1395 = vpack.c.b16 %v1019, %v1018
    %v1396 = vpack.c.b16 %v1021, %v1020
    %v1397 = vpack.c.b16 %v1023, %v1022
    %v1398 = vpack.c.b16 %v1025, %v1024
    %v1399 = vpack.c.b16 %v1027, %v1026
    %v1400 = vpack.c.b16 %v1029, %v1028
    %v1401 = vpack.c.b16 %v1031, %v1030
    %v1402 = vpack.c.b16 %v1033, %v1032
    %v1403 = vpack.c.b16 %v1035, %v1034
    %v1404 = vpack.c.b16 %v1037, %v1036
    %v1405 = vpack.c.b16 %v1039, %v1038
    %v1406 = vpack.c.b16 %v1041, %v1040
    %v1407 = vpack.c.b16 %v1043, %v1042
    %v1408 = vpack.c.b16 %v1045, %v1044
    %v1409 = vpack.c.b16 %v1047, %v1046
    %v1410 = vpack.c.b16 %v1049, %v1048
    %v1411 = vpack.c.b16 %v1051, %v1050
    %v1412 = vpack.c.b16 %v1053, %v1052
    %v1413 = vpack.c.b16 %v1055, %v1054
    %v1414 = vpack.c.b16 %v1057, %v1056
    %v1415 = vpack.c.b16 %v1059, %v1058
    %v1416 = vpack.c.b16 %v1061, %v1060
    %v1417 = vpack.c.b16 %v1063, %v1062
    %v1418 = vpack.c.b16 %v1065, %v1064
    %v1419 = vpack.c.b16 %v1067, %v1066
    %v1420 = vpack.c.b16 %v1069, %v1068
    %v1421 = vpack.c.b16 %v1071, %v1070
    %v1422 = vpack.c.b16 %v1073, %v1072
    %v1423 = vpack.c.b16 %v1075, %v1074
    %v1424 = vpack.c.b16 %v1077, %v1076
    %v1425 = vpack.c.b16 %v1079, %v1078
    %v1426 = vpack.c.b16 %v1081, %v1080
    %v1427 = vpack.c.b16 %v1083, %v1082
    %v1428 = vpack.c.b16 %v1085, %v1084
    %v1429 = vpack.c.b16 %v1087, %v1086
    %v1430 = vpack.c.b16 %v1089, %v1088
    %v1431 = vpack.c.b16 %v1091, %v1090
    %v1432 = vpack.c.b16 %v1093, %v1092
    %v1433 = vpack.c.b16 %v1095, %v1094
    %v1434 = vpack.c.b16 %v1097, %v1096
    %v1435 = vpack.c.b16 %v1099, %v1098
    %v1436 = vpack.c.b16 %v1101, %v1100
    %v1437 = vpack.c.b16 %v1103, %v1102
    %v1438 = vpack.c.b16 %v1105, %v1104
    %v1439 = vpack.c.b16 %v1107, %v1106
    %v1440 = vpack.c.b16 %v1109, %v1108
    %v1441 = vpack.c.b16 %v1111, %v1110
    %v1442 = vpack.c.b16 %v1113, %v1112
    %v1443 = vpack.c.b16 %v1115, %v1114
    %v1444 = vpack.c.b16 %v1117, %v1116
    %v1445 = vpack.c.b16 %v1119, %v1118
    %v1446 = vpack.c.b16 %v1121, %v1120
    %v1447 = vpack.c.b16 %v1123, %v1122
    %v1448 = vpack.c.b16 %v1125, %v1124
    %v1449 = vpack.c.b16 %v1127, %v1126
    %v1450 = vpack.c.b16 %v1129, %v1128
    %v1451 = vpack.c.b16 %v1131, %v1130
    %v1452 = vpack.c.b16 %v1133, %v1132
    %v1453 = vpack.c.b16 %v1135, %v1134
    %v1454 = vpack.c.b16 %v1137, %v1136
    %v1455 = vpack.c.b16 %v1139, %v1138
    %v1456 = vpack.c.b16 %v1141, %v1140
    %v1457 = vpack.c.b16 %v1143, %v1142
    %v1458 = vpack.c.b16 %v1145, %v1144
    %v1459 = vpack.c.b16 %v1147, %v1146
    %v1460 = vpack.c.b16 %v1149, %v1148
    %v1461 = vpack.c.b16 %v1151, %v1150
    %v1462 = vpack.c.b16 %v1153, %v1152
    %v1463 = vpack.c.b16 %v1155, %v1154
    %v1464 = vpack.c.b16 %v1157, %v1156
    %v1465 = vpack.c.b16 %v1159, %v1158
    %v1466 = vpack.c.b16 %v1161, %v1160
    %v1467 = vpack.c.b16 %v1163, %v1162
    %v1468 = vpack.c.b16 %v1165, %v1164
    %v1469 = vpack.c.b16 %v1167, %v1166
    %v1470 = vpack.c.b16 %v1169, %v1168
    %v1471 = vpack.c.b16 %v1171, %v1170
    %v1472 = vpack.c.b16 %v1173, %v1172
    %v1473 = vpack.c.b16 %v1175, %v1174
    %v1474 = vpack.c.b16 %v1177, %v1176
    %v1475 = vpack.c.b16 %v1179, %v1178
    %v1476 = vpack.c.b16 %v1181, %v1180
    %v1477 = vpack.c.b16 %v1183, %v1182
    %v1478 = vpack.c.b16 %v1185, %v1184
    %v1479 = vpack.c.b16 %v1187, %v1186
    %v1480 = vpack.c.b16 %v1189, %v1188
    %v1481 = vpack.c.b16 %v1191, %v1190
    %v1482 = vpack.c.b16 %v1193, %v1192
    %v1483 = vpack.c.b16 %v1195, %v1194
    %v1484 = vpack.c.b16 %v1197, %v1196
    %v1485 = vpack.c.b16 %v1199, %v1198
    %v1486 = vpack.c.b16 %v1201, %v1200
    %v1487 = vpack.c.b16 %v1203, %v1202
    %v1488 = vpack.c.b16 %v1205, %v1204
    %v1489 = vpack.c.b16 %v1207, %v1206
    %v1490 = vpack.c.b16 %v1209, %v1208
    %v1491 = vpack.c.b16 %v1211, %v1210
    %v1492 = vpack.c.b16 %v1213, %v1212
    %v1493 = vpack.c.b16 %v1215, %v1214
    %v1494 = vpack.c.b16 %v1217, %v1216
    %v1495 = vpack.c.b16 %v1219, %v1218
    %v1496 = vpack.c.b16 %v1221, %v1220
    %v1497 = vpack.c.b16 %v1223, %v1222
    %v1498 = vpack.c.b16 %v1225, %v1224
    %v1499 = vpack.c.b16 %v1227, %v1226
    %v1500 = vpack.c.b16 %v1229, %v1228
    %v1501 = vpack.c.b16 %v1231, %v1230
    %v1502 = vpack.c.b16 %v1233, %v1232
    %v1503 = vpack.c.b16 %v1235, %v1234
    %v1504 = vpack.c.b16 %v1237, %v1236
    %v1505 = vpack.c.b16 %v1239, %v1238
    %v1506 = vpack.c.b16 %v1241, %v1240
    %v1507 = vpack.c.b16 %v1243, %v1242
    %v1508 = vpack.c.b16 %v1245, %v1244
    %v1509 = vpack.c.b16 %v1247, %v1246
    %v1510 = vpack.c.b16 %v1249, %v1248
    %v1511 = vpack.c.b16 %v1251, %v1250
    %v1512 = vpack.c.b16 %v1253, %v1252
    %v1513 = vpack.c.b16 %v1255, %v1254
    %v1514 = vpack.c.b16 %v1257, %v1256
    %v1515 = vpack.c.b16 %v1259, %v1258
    %v1516 = vpack.c.b16 %v1261, %v1260
    %v1517 = vpack.c.b16 %v1263, %v1262
    %v1518 = vpack.c.b16 %v1265, %v1264
    %v1519 = vpack.c.b16 %v1267, %v1266
    %v1520 = vpack.c.b16 %v1269, %v1268
    %v1521 = vpack.c.b16 %v1271, %v1270
    %v1522 = vpack.c.b16 %v1273, %v1272
    %v1523 = vpack.c.b16 %v1275, %v1274
    %v1524 = vpack.c.b16 %v1277, %v1276
    %v1525 = vpack.c.b16 %v1279, %v1278
    %v1526 = vpack.c.b16 %v1281, %v1280
    %v1527 = vpack.c.b16 %v1283, %v1282
    %v1528 = vpack.c.b16 %v1285, %v1284
    %v1529 = vpack.c.b16 %v1287, %v1286
    %v1530 = vpack.c.b16 %v1289, %v1288
    %v1531 = vpack.c.b16 %v1291, %v1290
    %v1532 = vpack.c.b16 %v1293, %v1292
    %v1533 = vpack.c.b16 %v1295, %v1294
    %v1534 = vpack.c.b16 %v1297, %v1296
    %v1535 = vpack.c.b16 %v1299, %v1298
    %v1536 = vpack.c.b16 %v1301, %v1300
    %v1537 = vpack.c.b16 %v1303, %v1302
    %v1538 = vpack.c.b16 %v1305, %v1304
    %v1539 = vpack.c.b16 %v1307, %v1306
    %v1540 = vpack.c.b16 %v1309, %v1308
    %v1541 = vpack.c.b16 %v1311, %v1310
    %v1542 = vpack.c.b16 %v1313, %v1312
    %v1543 = vpack.c.b16 %v1315, %v1314
    %v1544 = vpack.c.b16 %v1317, %v1316
    %v1545 = vpack.c.b16 %v1319, %v1318
    %v1546 = vpack.c.b16 %v1321, %v1320
    %v1547 = vpack.c.b16 %v1323, %v1322
    %v1548 = vpack.c.b16 %v1325, %v1324
    %v1549 = vpack.c.b16 %v1327, %v1326
    %v1550 = vpack.c.b16 %v1329, %v1328
    %v1551 = vpack.c.b16 %v1331, %v1330
    %v1552 = vpack.c.b16 %v1333, %v1332
    %v1553 = vpack.c.b16 %v1335, %v1334
    %v1554 = vpack.c.b16 %v1337, %v1336
    %v1555 = vpack.c.b16 %v1339, %v1338
    %v1556 = vpack.c.b16 %v1341, %v1340
    %v1557 = vpack.c.b16 %v1343, %v1342
    %v1558 = vpack.c.b16 %v1345, %v1344
    %v1559 = vpack.c.b16 %v1347, %v1346
    %v1560 = vpack.c.b16 %v1349, %v1348
    %v1561 = vpack.c.b16 %v1351, %v1350
    %v1562 = vpack.c.b16 %v1353, %v1352
    %v1563 = vpack.c.b16 %v1355, %v1354
    %v1564 = vpack.c.b16 %v1357, %v1356
    %v1565 = vpack.c.b16 %v1359, %v1358
    %v1566 = vpack.c.b16 %v1361, %v1360
    %v1567 = vpack.c.b16 %v1363, %v1362
    %v1568 = vpack.c.b16 %v1365, %v1364
    %v1569 = vpack.c.b16 %v1367, %v1366
    %v1570 = vpack.c.b16 %v1369, %v1368
    %v1571 = vpack.c.b16 %v1371, %v1370
    %v1572 = vpack.c.b16 %v1373, %v1372
    %v1573 = vpack.c.b16 %v1375, %v1374
    %v1574 = vpack.c.b16 %v1377, %v1376
    %v1575 = vpack.c.b16 %v1379, %v1378
    %v1576 = vpack.c.b16 %v1381, %v1380
    %v1577 = vpack.c.b16 %v1383, %v1382
    %v1578 = vpack.c.b16 %v1385, %v1384
    %v1579 = vpack.c.b16 %v1387, %v1386
    %1772 = vmatpush.bf16.msra.mxu0 %v1395
    %1773 = vmatpush.bf16.msra.mxu0 %v1394
    %1774 = vmatpush.bf16.msra.mxu0 %v1393
    %1775 = vmatpush.bf16.msra.mxu0 %v1392
    %1776 = vmatpush.bf16.msra.mxu0 %v1391
    %1777 = vmatpush.bf16.msra.mxu0 %v1390
    %1778 = vmatpush.bf16.msra.mxu0 %v1389
    %1779 = vmatpush.bf16.msra.mxu0 %v1388
    %1780 = vmatmul.bf16.gmra.mxu0 %v208
    %v1781 = vpop.f32.mrf.mxu0
    %v1782 = vadd.f32 %v618, %v1781
    %v1783 = vpop.f32.mrf.mxu0
    %v1784 = vadd.f32 %v618, %v1783
    %1785 = vdwg.mxu0
    %1786 = vmatpush.bf16.msra.mxu0 %v1403
    %1787 = vmatpush.bf16.msra.mxu0 %v1402
    %1788 = vmatpush.bf16.msra.mxu0 %v1401
    %1789 = vmatpush.bf16.msra.mxu0 %v1400
    %1790 = vmatpush.bf16.msra.mxu0 %v1399
    %1791 = vmatpush.bf16.msra.mxu0 %v1398
    %1792 = vmatpush.bf16.msra.mxu0 %v1397
    %1793 = vmatpush.bf16.msra.mxu0 %v1396
    %1794 = vmatmul.bf16.gmra.mxu0 %v209
    %v1795 = vpop.f32.mrf.mxu0
    %v1796 = vadd.f32 %v1782, %v1795
    %v1797 = vpop.f32.mrf.mxu0
    %v1798 = vadd.f32 %v1784, %v1797
    %1799 = vdwg.mxu0
    %1800 = vmatpush.bf16.msra.mxu0 %v1411
    %1801 = vmatpush.bf16.msra.mxu0 %v1410
    %1802 = vmatpush.bf16.msra.mxu0 %v1409
    %1803 = vmatpush.bf16.msra.mxu0 %v1408
    %1804 = vmatpush.bf16.msra.mxu0 %v1407
    %1805 = vmatpush.bf16.msra.mxu0 %v1406
    %1806 = vmatpush.bf16.msra.mxu0 %v1405
    %1807 = vmatpush.bf16.msra.mxu0 %v1404
    %1808 = vmatmul.bf16.gmra.mxu0 %v210
    %v1809 = vpop.f32.mrf.mxu0
    %v1810 = vadd.f32 %v1796, %v1809
    %v1811 = vpop.f32.mrf.mxu0
    %v1812 = vadd.f32 %v1798, %v1811
    %1813 = vdwg.mxu0
    %1814 = vmatpush.bf16.msra.mxu0 %v1419
    %1815 = vmatpush.bf16.msra.mxu0 %v1418
    %1816 = vmatpush.bf16.msra.mxu0 %v1417
    %1817 = vmatpush.bf16.msra.mxu0 %v1416
    %1818 = vmatpush.bf16.msra.mxu0 %v1415
    %1819 = vmatpush.bf16.msra.mxu0 %v1414
    %1820 = vmatpush.bf16.msra.mxu0 %v1413
    %1821 = vmatpush.bf16.msra.mxu0 %v1412
    %1822 = vmatmul.bf16.gmra.mxu0 %v211
    %v1823 = vpop.f32.mrf.mxu0
    %v1824 = vadd.f32 %v1810, %v1823
    %v1825 = vpop.f32.mrf.mxu0
    %v1826 = vadd.f32 %v1812, %v1825
    %1827 = vdwg.mxu0
    %1828 = vmatpush.bf16.msra.mxu0 %v1427
    %1829 = vmatpush.bf16.msra.mxu0 %v1426
    %1830 = vmatpush.bf16.msra.mxu0 %v1425
    %1831 = vmatpush.bf16.msra.mxu0 %v1424
    %1832 = vmatpush.bf16.msra.mxu0 %v1423
    %1833 = vmatpush.bf16.msra.mxu0 %v1422
    %1834 = vmatpush.bf16.msra.mxu0 %v1421
    %1835 = vmatpush.bf16.msra.mxu0 %v1420
    %1836 = vmatmul.bf16.gmra.mxu0 %v212
    %v1837 = vpop.f32.mrf.mxu0
    %v1838 = vadd.f32 %v1824, %v1837
    %v1839 = vpop.f32.mrf.mxu0
    %v1840 = vadd.f32 %v1826, %v1839
    %1841 = vdwg.mxu0
    %1842 = vmatpush.bf16.msra.mxu0 %v1435
    %1843 = vmatpush.bf16.msra.mxu0 %v1434
    %1844 = vmatpush.bf16.msra.mxu0 %v1433
    %1845 = vmatpush.bf16.msra.mxu0 %v1432
    %1846 = vmatpush.bf16.msra.mxu0 %v1431
    %1847 = vmatpush.bf16.msra.mxu0 %v1430
    %1848 = vmatpush.bf16.msra.mxu0 %v1429
    %1849 = vmatpush.bf16.msra.mxu0 %v1428
    %1850 = vmatmul.bf16.gmra.mxu0 %v213
    %v1851 = vpop.f32.mrf.mxu0
    %v1852 = vadd.f32 %v1838, %v1851
    %v1853 = vpop.f32.mrf.mxu0
    %v1854 = vadd.f32 %v1840, %v1853
    %1855 = vdwg.mxu0
    %1856 = vmatpush.bf16.msra.mxu0 %v1443
    %1857 = vmatpush.bf16.msra.mxu0 %v1442
    %1858 = vmatpush.bf16.msra.mxu0 %v1441
    %1859 = vmatpush.bf16.msra.mxu0 %v1440
    %1860 = vmatpush.bf16.msra.mxu0 %v1439
    %1861 = vmatpush.bf16.msra.mxu0 %v1438
    %1862 = vmatpush.bf16.msra.mxu0 %v1437
    %1863 = vmatpush.bf16.msra.mxu0 %v1436
    %1864 = vmatmul.bf16.gmra.mxu0 %v214
    %v1865 = vpop.f32.mrf.mxu0
    %v1866 = vadd.f32 %v1852, %v1865
    %v1867 = vpop.f32.mrf.mxu0
    %v1868 = vadd.f32 %v1854, %v1867
    %1869 = vdwg.mxu0
    %1870 = vmatpush.bf16.msra.mxu0 %v1451
    %1871 = vmatpush.bf16.msra.mxu0 %v1450
    %1872 = vmatpush.bf16.msra.mxu0 %v1449
    %1873 = vmatpush.bf16.msra.mxu0 %v1448
    %1874 = vmatpush.bf16.msra.mxu0 %v1447
    %1875 = vmatpush.bf16.msra.mxu0 %v1446
    %1876 = vmatpush.bf16.msra.mxu0 %v1445
    %1877 = vmatpush.bf16.msra.mxu0 %v1444
    %1878 = vmatmul.bf16.gmra.mxu0 %v215
    %v1879 = vpop.f32.mrf.mxu0
    %v1880 = vadd.f32 %v1866, %v1879
    %v1881 = vpop.f32.mrf.mxu0
    %v1882 = vadd.f32 %v1868, %v1881
    %1883 = vdwg.mxu0
    %1884 = vmatpush.bf16.msra.mxu0 %v1459
    %1885 = vmatpush.bf16.msra.mxu0 %v1458
    %1886 = vmatpush.bf16.msra.mxu0 %v1457
    %1887 = vmatpush.bf16.msra.mxu0 %v1456
    %1888 = vmatpush.bf16.msra.mxu0 %v1455
    %1889 = vmatpush.bf16.msra.mxu0 %v1454
    %1890 = vmatpush.bf16.msra.mxu0 %v1453
    %1891 = vmatpush.bf16.msra.mxu0 %v1452
    %1892 = vmatmul.bf16.gmra.mxu0 %v216
    %v1893 = vpop.f32.mrf.mxu0
    %v1894 = vadd.f32 %v1880, %v1893
    %v1895 = vpop.f32.mrf.mxu0
    %v1896 = vadd.f32 %v1882, %v1895
    %1897 = vdwg.mxu0
    %1898 = vmatpush.bf16.msra.mxu0 %v1467
    %1899 = vmatpush.bf16.msra.mxu0 %v1466
    %1900 = vmatpush.bf16.msra.mxu0 %v1465
    %1901 = vmatpush.bf16.msra.mxu0 %v1464
    %1902 = vmatpush.bf16.msra.mxu0 %v1463
    %1903 = vmatpush.bf16.msra.mxu0 %v1462
    %1904 = vmatpush.bf16.msra.mxu0 %v1461
    %1905 = vmatpush.bf16.msra.mxu0 %v1460
    %1906 = vmatmul.bf16.gmra.mxu0 %v217
    %v1907 = vpop.f32.mrf.mxu0
    %v1908 = vadd.f32 %v1894, %v1907
    %v1909 = vpop.f32.mrf.mxu0
    %v1910 = vadd.f32 %v1896, %v1909
    %1911 = vdwg.mxu0
    %1912 = vmatpush.bf16.msra.mxu0 %v1475
    %1913 = vmatpush.bf16.msra.mxu0 %v1474
    %1914 = vmatpush.bf16.msra.mxu0 %v1473
    %1915 = vmatpush.bf16.msra.mxu0 %v1472
    %1916 = vmatpush.bf16.msra.mxu0 %v1471
    %1917 = vmatpush.bf16.msra.mxu0 %v1470
    %1918 = vmatpush.bf16.msra.mxu0 %v1469
    %1919 = vmatpush.bf16.msra.mxu0 %v1468
    %1920 = vmatmul.bf16.gmra.mxu0 %v218
    %v1921 = vpop.f32.mrf.mxu0
    %v1922 = vadd.f32 %v1908, %v1921
    %v1923 = vpop.f32.mrf.mxu0
    %v1924 = vadd.f32 %v1910, %v1923
    %1925 = vdwg.mxu0
    %1926 = vmatpush.bf16.msra.mxu0 %v1483
    %1927 = vmatpush.bf16.msra.mxu0 %v1482
    %1928 = vmatpush.bf16.msra.mxu0 %v1481
    %1929 = vmatpush.bf16.msra.mxu0 %v1480
    %1930 = vmatpush.bf16.msra.mxu0 %v1479
    %1931 = vmatpush.bf16.msra.mxu0 %v1478
    %1932 = vmatpush.bf16.msra.mxu0 %v1477
    %1933 = vmatpush.bf16.msra.mxu0 %v1476
    %1934 = vmatmul.bf16.gmra.mxu0 %v219
    %v1935 = vpop.f32.mrf.mxu0
    %v1936 = vadd.f32 %v1922, %v1935
    %v1937 = vpop.f32.mrf.mxu0
    %v1938 = vadd.f32 %v1924, %v1937
    %1939 = vdwg.mxu0
    %1940 = vmatpush.bf16.msra.mxu0 %v1491
    %1941 = vmatpush.bf16.msra.mxu0 %v1490
    %1942 = vmatpush.bf16.msra.mxu0 %v1489
    %1943 = vmatpush.bf16.msra.mxu0 %v1488
    %1944 = vmatpush.bf16.msra.mxu0 %v1487
    %1945 = vmatpush.bf16.msra.mxu0 %v1486
    %1946 = vmatpush.bf16.msra.mxu0 %v1485
    %1947 = vmatpush.bf16.msra.mxu0 %v1484
    %1948 = vmatmul.bf16.gmra.mxu0 %v220
    %v1949 = vpop.f32.mrf.mxu0
    %v1950 = vadd.f32 %v1936, %v1949
    %v1951 = vpop.f32.mrf.mxu0
    %v1952 = vadd.f32 %v1938, %v1951
    %1953 = vdwg.mxu0
    %1954 = vmatpush.bf16.msra.mxu0 %v1499
    %1955 = vmatpush.bf16.msra.mxu0 %v1498
    %1956 = vmatpush.bf16.msra.mxu0 %v1497
    %1957 = vmatpush.bf16.msra.mxu0 %v1496
    %1958 = vmatpush.bf16.msra.mxu0 %v1495
    %1959 = vmatpush.bf16.msra.mxu0 %v1494
    %1960 = vmatpush.bf16.msra.mxu0 %v1493
    %1961 = vmatpush.bf16.msra.mxu0 %v1492
    %1962 = vmatmul.bf16.gmra.mxu0 %v221
    %v1963 = vpop.f32.mrf.mxu0
    %v1964 = vadd.f32 %v1950, %v1963
    %v1965 = vpop.f32.mrf.mxu0
    %v1966 = vadd.f32 %v1952, %v1965
    %1967 = vdwg.mxu0
    %1968 = vmatpush.bf16.msra.mxu0 %v1507
    %1969 = vmatpush.bf16.msra.mxu0 %v1506
    %1970 = vmatpush.bf16.msra.mxu0 %v1505
    %1971 = vmatpush.bf16.msra.mxu0 %v1504
    %1972 = vmatpush.bf16.msra.mxu0 %v1503
    %1973 = vmatpush.bf16.msra.mxu0 %v1502
    %1974 = vmatpush.bf16.msra.mxu0 %v1501
    %1975 = vmatpush.bf16.msra.mxu0 %v1500
    %1976 = vmatmul.bf16.gmra.mxu0 %v222
    %v1977 = vpop.f32.mrf.mxu0
    %v1978 = vadd.f32 %v1964, %v1977
    %v1979 = vpop.f32.mrf.mxu0
    %v1980 = vadd.f32 %v1966, %v1979
    %1981 = vdwg.mxu0
    %1982 = vmatpush.bf16.msra.mxu0 %v1515
    %1983 = vmatpush.bf16.msra.mxu0 %v1514
    %1984 = vmatpush.bf16.msra.mxu0 %v1513
    %1985 = vmatpush.bf16.msra.mxu0 %v1512
    %1986 = vmatpush.bf16.msra.mxu0 %v1511
    %1987 = vmatpush.bf16.msra.mxu0 %v1510
    %1988 = vmatpush.bf16.msra.mxu0 %v1509
    %1989 = vmatpush.bf16.msra.mxu0 %v1508
    %1990 = vmatmul.bf16.gmra.mxu0 %v223
    %v1991 = vpop.f32.mrf.mxu0
    %v1992 = vadd.f32 %v1978, %v1991
    %v1993 = vpop.f32.mrf.mxu0
    %v1994 = vadd.f32 %v1980, %v1993
    %1995 = vdwg.mxu0
    %1996 = vmatpush.bf16.msra.mxu0 %v1523
    %1997 = vmatpush.bf16.msra.mxu0 %v1522
    %1998 = vmatpush.bf16.msra.mxu0 %v1521
    %1999 = vmatpush.bf16.msra.mxu0 %v1520
    %2000 = vmatpush.bf16.msra.mxu0 %v1519
    %2001 = vmatpush.bf16.msra.mxu0 %v1518
    %2002 = vmatpush.bf16.msra.mxu0 %v1517
    %2003 = vmatpush.bf16.msra.mxu0 %v1516
    %2004 = vmatmul.bf16.gmra.mxu0 %v224
    %v2005 = vpop.f32.mrf.mxu0
    %v2006 = vadd.f32 %v1992, %v2005
    %v2007 = vpop.f32.mrf.mxu0
    %v2008 = vadd.f32 %v1994, %v2007
    %2009 = vdwg.mxu0
    %2010 = vmatpush.bf16.msra.mxu0 %v1531
    %2011 = vmatpush.bf16.msra.mxu0 %v1530
    %2012 = vmatpush.bf16.msra.mxu0 %v1529
    %2013 = vmatpush.bf16.msra.mxu0 %v1528
    %2014 = vmatpush.bf16.msra.mxu0 %v1527
    %2015 = vmatpush.bf16.msra.mxu0 %v1526
    %2016 = vmatpush.bf16.msra.mxu0 %v1525
    %2017 = vmatpush.bf16.msra.mxu0 %v1524
    %2018 = vmatmul.bf16.gmra.mxu0 %v225
    %v2019 = vpop.f32.mrf.mxu0
    %v2020 = vadd.f32 %v2006, %v2019
    %v2021 = vpop.f32.mrf.mxu0
    %v2022 = vadd.f32 %v2008, %v2021
    %2023 = vdwg.mxu0
    %2024 = vmatpush.bf16.msra.mxu0 %v1539
    %2025 = vmatpush.bf16.msra.mxu0 %v1538
    %2026 = vmatpush.bf16.msra.mxu0 %v1537
    %2027 = vmatpush.bf16.msra.mxu0 %v1536
    %2028 = vmatpush.bf16.msra.mxu0 %v1535
    %2029 = vmatpush.bf16.msra.mxu0 %v1534
    %2030 = vmatpush.bf16.msra.mxu0 %v1533
    %2031 = vmatpush.bf16.msra.mxu0 %v1532
    %2032 = vmatmul.bf16.gmra.mxu0 %v226
    %v2033 = vpop.f32.mrf.mxu0
    %v2034 = vadd.f32 %v2020, %v2033
    %v2035 = vpop.f32.mrf.mxu0
    %v2036 = vadd.f32 %v2022, %v2035
    %2037 = vdwg.mxu0
    %2038 = vmatpush.bf16.msra.mxu0 %v1547
    %2039 = vmatpush.bf16.msra.mxu0 %v1546
    %2040 = vmatpush.bf16.msra.mxu0 %v1545
    %2041 = vmatpush.bf16.msra.mxu0 %v1544
    %2042 = vmatpush.bf16.msra.mxu0 %v1543
    %2043 = vmatpush.bf16.msra.mxu0 %v1542
    %2044 = vmatpush.bf16.msra.mxu0 %v1541
    %2045 = vmatpush.bf16.msra.mxu0 %v1540
    %2046 = vmatmul.bf16.gmra.mxu0 %v227
    %v2047 = vpop.f32.mrf.mxu0
    %v2048 = vadd.f32 %v2034, %v2047
    %v2049 = vpop.f32.mrf.mxu0
    %v2050 = vadd.f32 %v2036, %v2049
    %2051 = vdwg.mxu0
    %2052 = vmatpush.bf16.msra.mxu0 %v1555
    %2053 = vmatpush.bf16.msra.mxu0 %v1554
    %2054 = vmatpush.bf16.msra.mxu0 %v1553
    %2055 = vmatpush.bf16.msra.mxu0 %v1552
    %2056 = vmatpush.bf16.msra.mxu0 %v1551
    %2057 = vmatpush.bf16.msra.mxu0 %v1550
    %2058 = vmatpush.bf16.msra.mxu0 %v1549
    %2059 = vmatpush.bf16.msra.mxu0 %v1548
    %2060 = vmatmul.bf16.gmra.mxu0 %v228
    %v2061 = vpop.f32.mrf.mxu0
    %v2062 = vadd.f32 %v2048, %v2061
    %v2063 = vpop.f32.mrf.mxu0
    %v2064 = vadd.f32 %v2050, %v2063
    %2065 = vdwg.mxu0
    %2066 = vmatpush.bf16.msra.mxu0 %v1563
    %2067 = vmatpush.bf16.msra.mxu0 %v1562
    %2068 = vmatpush.bf16.msra.mxu0 %v1561
    %2069 = vmatpush.bf16.msra.mxu0 %v1560
    %2070 = vmatpush.bf16.msra.mxu0 %v1559
    %2071 = vmatpush.bf16.msra.mxu0 %v1558
    %2072 = vmatpush.bf16.msra.mxu0 %v1557
    %2073 = vmatpush.bf16.msra.mxu0 %v1556
    %2074 = vmatmul.bf16.gmra.mxu0 %v229
    %v2075 = vpop.f32.mrf.mxu0
    %v2076 = vadd.f32 %v2062, %v2075
    %v2077 = vpop.f32.mrf.mxu0
    %v2078 = vadd.f32 %v2064, %v2077
    %2079 = vdwg.mxu0
    %2080 = vmatpush.bf16.msra.mxu0 %v1571
    %2081 = vmatpush.bf16.msra.mxu0 %v1570
    %2082 = vmatpush.bf16.msra.mxu0 %v1569
    %2083 = vmatpush.bf16.msra.mxu0 %v1568
    %2084 = vmatpush.bf16.msra.mxu0 %v1567
    %2085 = vmatpush.bf16.msra.mxu0 %v1566
    %2086 = vmatpush.bf16.msra.mxu0 %v1565
    %2087 = vmatpush.bf16.msra.mxu0 %v1564
    %2088 = vmatmul.bf16.gmra.mxu0 %v230
    %v2089 = vpop.f32.mrf.mxu0
    %v2090 = vadd.f32 %v2076, %v2089
    %v2091 = vpop.f32.mrf.mxu0
    %v2092 = vadd.f32 %v2078, %v2091
    %2093 = vdwg.mxu0
    %2094 = vmatpush.bf16.msra.mxu0 %v1579
    %2095 = vmatpush.bf16.msra.mxu0 %v1578
    %2096 = vmatpush.bf16.msra.mxu0 %v1577
    %2097 = vmatpush.bf16.msra.mxu0 %v1576
    %2098 = vmatpush.bf16.msra.mxu0 %v1575
    %2099 = vmatpush.bf16.msra.mxu0 %v1574
    %2100 = vmatpush.bf16.msra.mxu0 %v1573
    %2101 = vmatpush.bf16.msra.mxu0 %v1572
    %2102 = vmatmul.bf16.gmra.mxu0 %v231
    %v2103 = vpop.f32.mrf.mxu0
    %v2104 = vadd.f32 %v2090, %v2103
    %v2105 = vpop.f32.mrf.mxu0
    %v2106 = vadd.f32 %v2092, %v2105
    %2107 = vdwg.mxu0
    %v2108 = vmax.f32 %v2104, 0.0
    %v2109 = vmax.f32 %v2106, 0.0
    %v2110 = vpack.c.bf16 %v2109, %v2108
    %v2111 = vld [vmem:[#allocation8] sm:$0xff]
    %v2112 = vld [vmem:[#allocation8 + $0x8] sm:$0xff]
    %v2113 = vld [vmem:[#allocation8 + $0x10] sm:$0xff]
    %v2114 = vld [vmem:[#allocation8 + $0x18] sm:$0xff]
    %v2115 = vld [vmem:[#allocation8 + $0x20] sm:$0xff]
    %v2116 = vld [vmem:[#allocation8 + $0x28] sm:$0xff]
    %v2117 = vld [vmem:[#allocation8 + $0x30] sm:$0xff]
    %v2118 = vld [vmem:[#allocation8 + $0x38] sm:$0xff]
    %v2119 = vld [vmem:[#allocation8 + $0x40] sm:$0xff]
    %v2120 = vld [vmem:[#allocation8 + $0x48] sm:$0xff]
    %v2121 = vld [vmem:[#allocation8 + $0x50] sm:$0xff]
    %v2122 = vld [vmem:[#allocation8 + $0x58] sm:$0xff]
    %v2123 = vld [vmem:[#allocation8 + $0x60] sm:$0xff]
    %v2124 = vld [vmem:[#allocation8 + $0x68] sm:$0xff]
    %v2125 = vld [vmem:[#allocation8 + $0x70] sm:$0xff]
    %v2126 = vld [vmem:[#allocation8 + $0x78] sm:$0xff]
    %v2127 = vld [vmem:[#allocation10] sm:$0x3]
    %v2129 = vperm.slane %v2127, 0
    %v2130 = vperm.slane %v2127, 1
    %v2149 = vunpack.c.l.b16 %v2111
    %v2150 = vunpack.c.h.b16 %v2111
    %v2151 = vunpack.c.l.b16 %v2112
    %v2152 = vunpack.c.h.b16 %v2112
    %v2153 = vunpack.c.l.b16 %v2113
    %v2154 = vunpack.c.h.b16 %v2113
    %v2155 = vunpack.c.l.b16 %v2114
    %v2156 = vunpack.c.h.b16 %v2114
    %v2157 = vunpack.c.l.b16 %v2115
    %v2158 = vunpack.c.h.b16 %v2115
    %v2159 = vunpack.c.l.b16 %v2116
    %v2160 = vunpack.c.h.b16 %v2116
    %v2161 = vunpack.c.l.b16 %v2117
    %v2162 = vunpack.c.h.b16 %v2117
    %v2163 = vunpack.c.l.b16 %v2118
    %v2164 = vunpack.c.h.b16 %v2118
    %v2165 = vunpack.c.l.b16 %v2119
    %v2166 = vunpack.c.h.b16 %v2119
    %v2167 = vunpack.c.l.b16 %v2120
    %v2168 = vunpack.c.h.b16 %v2120
    %v2169 = vunpack.c.l.b16 %v2121
    %v2170 = vunpack.c.h.b16 %v2121
    %v2171 = vunpack.c.l.b16 %v2122
    %v2172 = vunpack.c.h.b16 %v2122
    %v2173 = vunpack.c.l.b16 %v2123
    %v2174 = vunpack.c.h.b16 %v2123
    %v2175 = vunpack.c.l.b16 %v2124
    %v2176 = vunpack.c.h.b16 %v2124
    %v2177 = vunpack.c.l.b16 %v2125
    %v2178 = vunpack.c.h.b16 %v2125
    %v2179 = vunpack.c.l.b16 %v2126
    %v2180 = vunpack.c.h.b16 %v2126
    %v2181 = vpack.c.b16 %v2151, %v2149
    %v2182 = vpack.c.b16 %v2152, %v2150
    %v2183 = vpack.c.b16 %v2155, %v2153
    %v2184 = vpack.c.b16 %v2156, %v2154
    %v2185 = vpack.c.b16 %v2159, %v2157
    %v2186 = vpack.c.b16 %v2160, %v2158
    %v2187 = vpack.c.b16 %v2163, %v2161
    %v2188 = vpack.c.b16 %v2164, %v2162
    %v2189 = vpack.c.b16 %v2167, %v2165
    %v2190 = vpack.c.b16 %v2168, %v2166
    %v2191 = vpack.c.b16 %v2171, %v2169
    %v2192 = vpack.c.b16 %v2172, %v2170
    %v2193 = vpack.c.b16 %v2175, %v2173
    %v2194 = vpack.c.b16 %v2176, %v2174
    %v2195 = vpack.c.b16 %v2179, %v2177
    %v2196 = vpack.c.b16 %v2180, %v2178
    %2213 = vmatpush.bf16.msra.mxu0 %v2195
    %2214 = vmatpush.bf16.msra.mxu0 %v2193
    %2215 = vmatpush.bf16.msra.mxu0 %v2191
    %2216 = vmatpush.bf16.msra.mxu0 %v2189
    %2217 = vmatpush.bf16.msra.mxu0 %v2187
    %2218 = vmatpush.bf16.msra.mxu0 %v2185
    %2219 = vmatpush.bf16.msra.mxu0 %v2183
    %2220 = vmatpush.bf16.msra.mxu0 %v2181
    %2221 = vmatmul.bf16.gmra.mxu0 %v2110
    %v2222 = vpop.f32.mrf.mxu0
    %v2223 = vadd.f32 %v2129, %v2222
    %v2224 = vpop.f32.mrf.mxu0
    %v2225 = vadd.f32 %v2129, %v2224
    %2226 = vdwg.mxu0
    %2227 = vmatpush.bf16.msra.mxu0 %v2196
    %2228 = vmatpush.bf16.msra.mxu0 %v2194
    %2229 = vmatpush.bf16.msra.mxu0 %v2192
    %2230 = vmatpush.bf16.msra.mxu0 %v2190
    %2231 = vmatpush.bf16.msra.mxu0 %v2188
    %2232 = vmatpush.bf16.msra.mxu0 %v2186
    %2233 = vmatpush.bf16.msra.mxu0 %v2184
    %2234 = vmatpush.bf16.msra.mxu0 %v2182
    %2235 = vmatmul.bf16.gmra.mxu0 %v2110
    %v2236 = vpop.f32.mrf.mxu0
    %v2237 = vadd.f32 %v2130, %v2236
    %v2238 = vpop.f32.mrf.mxu0
    %v2239 = vadd.f32 %v2130, %v2238
    %2240 = vdwg.mxu0
    %v2241 = vmax.f32 %v2223, 0.0
    %v2242 = vmax.f32 %v2237, 0.0
    %v2243 = vmax.f32 %v2225, 0.0
    %v2244 = vmax.f32 %v2239, 0.0
    %v2245 = vpack.c.bf16 %v2243, %v2241
    %v2246 = vpack.c.bf16 %v2244, %v2242
    %v2247 = vld [vmem:[#allocation11] sm:$0xff]
    %v2248 = vld [vmem:[#allocation11 + $0x8] sm:$0xff]
    %v2249 = vld [vmem:[#allocation11 + $0x10] sm:$0xff]
    %v2250 = vld [vmem:[#allocation11 + $0x18] sm:$0xff]
    %v2251 = vld [vmem:[#allocation11 + $0x20] sm:$0xff]
    %v2252 = vld [vmem:[#allocation11 + $0x28] sm:$0xff]
    %v2253 = vld [vmem:[#allocation11 + $0x30] sm:$0xff]
    %v2254 = vld [vmem:[#allocation11 + $0x38] sm:$0xff]
    %v2255 = vld [vmem:[#allocation11 + $0x40] sm:$0xff]
    %v2256 = vld [vmem:[#allocation11 + $0x48] sm:$0xff]
    %v2257 = vld [vmem:[#allocation11 + $0x50] sm:$0xff]
    %v2258 = vld [vmem:[#allocation11 + $0x58] sm:$0xff]
    %v2259 = vld [vmem:[#allocation11 + $0x60] sm:$0xff]
    %v2260 = vld [vmem:[#allocation11 + $0x68] sm:$0xff]
    %v2261 = vld [vmem:[#allocation11 + $0x70] sm:$0xff]
    %v2262 = vld [vmem:[#allocation11 + $0x78] sm:$0xff]
    %v2263 = vld [vmem:[#allocation11 + $0x80] sm:$0xff]
    %v2264 = vld [vmem:[#allocation11 + $0x88] sm:$0xff]
    %v2265 = vld [vmem:[#allocation11 + $0x90] sm:$0xff]
    %v2266 = vld [vmem:[#allocation11 + $0x98] sm:$0xff]
    %v2267 = vld [vmem:[#allocation11 + $0xa0] sm:$0xff]
    %v2268 = vld [vmem:[#allocation11 + $0xa8] sm:$0xff]
    %v2269 = vld [vmem:[#allocation11 + $0xb0] sm:$0xff]
    %v2270 = vld [vmem:[#allocation11 + $0xb8] sm:$0xff]
    %v2271 = vld [vmem:[#allocation11 + $0xc0] sm:$0xff]
    %v2272 = vld [vmem:[#allocation11 + $0xc8] sm:$0xff]
    %v2273 = vld [vmem:[#allocation11 + $0xd0] sm:$0xff]
    %v2274 = vld [vmem:[#allocation11 + $0xd8] sm:$0xff]
    %v2275 = vld [vmem:[#allocation11 + $0xe0] sm:$0xff]
    %v2276 = vld [vmem:[#allocation11 + $0xe8] sm:$0xff]
    %v2277 = vld [vmem:[#allocation11 + $0xf0] sm:$0xff]
    %v2278 = vld [vmem:[#allocation11 + $0xf8] sm:$0xff]
    %v2279 = vld [vmem:[#allocation11 + $0x100] sm:$0xff]
    %v2280 = vld [vmem:[#allocation11 + $0x108] sm:$0xff]
    %v2281 = vld [vmem:[#allocation11 + $0x110] sm:$0xff]
    %v2282 = vld [vmem:[#allocation11 + $0x118] sm:$0xff]
    %v2283 = vld [vmem:[#allocation11 + $0x120] sm:$0xff]
    %v2284 = vld [vmem:[#allocation11 + $0x128] sm:$0xff]
    %v2285 = vld [vmem:[#allocation11 + $0x130] sm:$0xff]
    %v2286 = vld [vmem:[#allocation11 + $0x138] sm:$0xff]
    %v2287 = vld [vmem:[#allocation11 + $0x140] sm:$0xff]
    %v2288 = vld [vmem:[#allocation11 + $0x148] sm:$0xff]
    %v2289 = vld [vmem:[#allocation11 + $0x150] sm:$0xff]
    %v2290 = vld [vmem:[#allocation11 + $0x158] sm:$0xff]
    %v2291 = vld [vmem:[#allocation11 + $0x160] sm:$0xff]
    %v2292 = vld [vmem:[#allocation11 + $0x168] sm:$0xff]
    %v2293 = vld [vmem:[#allocation11 + $0x170] sm:$0xff]
    %v2294 = vld [vmem:[#allocation11 + $0x178] sm:$0xff]
    %v2295 = vld [vmem:[#allocation11 + $0x180] sm:$0xff]
    %v2296 = vld [vmem:[#allocation11 + $0x188] sm:$0xff]
    %v2297 = vld [vmem:[#allocation11 + $0x190] sm:$0xff]
    %v2298 = vld [vmem:[#allocation11 + $0x198] sm:$0xff]
    %v2299 = vld [vmem:[#allocation11 + $0x1a0] sm:$0xff]
    %v2300 = vld [vmem:[#allocation11 + $0x1a8] sm:$0xff]
    %v2301 = vld [vmem:[#allocation11 + $0x1b0] sm:$0xff]
    %v2302 = vld [vmem:[#allocation11 + $0x1b8] sm:$0xff]
    %v2303 = vld [vmem:[#allocation11 + $0x1c0] sm:$0xff]
    %v2304 = vld [vmem:[#allocation11 + $0x1c8] sm:$0xff]
    %v2305 = vld [vmem:[#allocation11 + $0x1d0] sm:$0xff]
    %v2306 = vld [vmem:[#allocation11 + $0x1d8] sm:$0xff]
    %v2307 = vld [vmem:[#allocation11 + $0x1e0] sm:$0xff]
    %v2308 = vld [vmem:[#allocation11 + $0x1e8] sm:$0xff]
    %v2309 = vld [vmem:[#allocation11 + $0x1f0] sm:$0xff]
    %v2310 = vld [vmem:[#allocation11 + $0x1f8] sm:$0xff]
    %v2311 = vld [vmem:[%s6] sm:$0xf]
    %v2313 = vperm.slane %v2311, 0
    %v2314 = vperm.slane %v2311, 1
    %v2315 = vperm.slane %v2311, 2
    %v2316 = vperm.slane %v2311, 3
    %v2385 = vunpack.c.l.b16 %v2247
    %v2386 = vunpack.c.h.b16 %v2247
    %v2387 = vunpack.c.l.b16 %v2248
    %v2388 = vunpack.c.h.b16 %v2248
    %v2389 = vunpack.c.l.b16 %v2249
    %v2390 = vunpack.c.h.b16 %v2249
    %v2391 = vunpack.c.l.b16 %v2250
    %v2392 = vunpack.c.h.b16 %v2250
    %v2393 = vunpack.c.l.b16 %v2251
    %v2394 = vunpack.c.h.b16 %v2251
    %v2395 = vunpack.c.l.b16 %v2252
    %v2396 = vunpack.c.h.b16 %v2252
    %v2397 = vunpack.c.l.b16 %v2253
    %v2398 = vunpack.c.h.b16 %v2253
    %v2399 = vunpack.c.l.b16 %v2254
    %v2400 = vunpack.c.h.b16 %v2254
    %v2401 = vunpack.c.l.b16 %v2255
    %v2402 = vunpack.c.h.b16 %v2255
    %v2403 = vunpack.c.l.b16 %v2256
    %v2404 = vunpack.c.h.b16 %v2256
    %v2405 = vunpack.c.l.b16 %v2257
    %v2406 = vunpack.c.h.b16 %v2257
    %v2407 = vunpack.c.l.b16 %v2258
    %v2408 = vunpack.c.h.b16 %v2258
    %v2409 = vunpack.c.l.b16 %v2259
    %v2410 = vunpack.c.h.b16 %v2259
    %v2411 = vunpack.c.l.b16 %v2260
    %v2412 = vunpack.c.h.b16 %v2260
    %v2413 = vunpack.c.l.b16 %v2261
    %v2414 = vunpack.c.h.b16 %v2261
    %v2415 = vunpack.c.l.b16 %v2262
    %v2416 = vunpack.c.h.b16 %v2262
    %v2417 = vunpack.c.l.b16 %v2263
    %v2418 = vunpack.c.h.b16 %v2263
    %v2419 = vunpack.c.l.b16 %v2264
    %v2420 = vunpack.c.h.b16 %v2264
    %v2421 = vunpack.c.l.b16 %v2265
    %v2422 = vunpack.c.h.b16 %v2265
    %v2423 = vunpack.c.l.b16 %v2266
    %v2424 = vunpack.c.h.b16 %v2266
    %v2425 = vunpack.c.l.b16 %v2267
    %v2426 = vunpack.c.h.b16 %v2267
    %v2427 = vunpack.c.l.b16 %v2268
    %v2428 = vunpack.c.h.b16 %v2268
    %v2429 = vunpack.c.l.b16 %v2269
    %v2430 = vunpack.c.h.b16 %v2269
    %v2431 = vunpack.c.l.b16 %v2270
    %v2432 = vunpack.c.h.b16 %v2270
    %v2433 = vunpack.c.l.b16 %v2271
    %v2434 = vunpack.c.h.b16 %v2271
    %v2435 = vunpack.c.l.b16 %v2272
    %v2436 = vunpack.c.h.b16 %v2272
    %v2437 = vunpack.c.l.b16 %v2273
    %v2438 = vunpack.c.h.b16 %v2273
    %v2439 = vunpack.c.l.b16 %v2274
    %v2440 = vunpack.c.h.b16 %v2274
    %v2441 = vunpack.c.l.b16 %v2275
    %v2442 = vunpack.c.h.b16 %v2275
    %v2443 = vunpack.c.l.b16 %v2276
    %v2444 = vunpack.c.h.b16 %v2276
    %v2445 = vunpack.c.l.b16 %v2277
    %v2446 = vunpack.c.h.b16 %v2277
    %v2447 = vunpack.c.l.b16 %v2278
    %v2448 = vunpack.c.h.b16 %v2278
    %v2449 = vunpack.c.l.b16 %v2279
    %v2450 = vunpack.c.h.b16 %v2279
    %v2451 = vunpack.c.l.b16 %v2280
    %v2452 = vunpack.c.h.b16 %v2280
    %v2453 = vunpack.c.l.b16 %v2281
    %v2454 = vunpack.c.h.b16 %v2281
    %v2455 = vunpack.c.l.b16 %v2282
    %v2456 = vunpack.c.h.b16 %v2282
    %v2457 = vunpack.c.l.b16 %v2283
    %v2458 = vunpack.c.h.b16 %v2283
    %v2459 = vunpack.c.l.b16 %v2284
    %v2460 = vunpack.c.h.b16 %v2284
    %v2461 = vunpack.c.l.b16 %v2285
    %v2462 = vunpack.c.h.b16 %v2285
    %v2463 = vunpack.c.l.b16 %v2286
    %v2464 = vunpack.c.h.b16 %v2286
    %v2465 = vunpack.c.l.b16 %v2287
    %v2466 = vunpack.c.h.b16 %v2287
    %v2467 = vunpack.c.l.b16 %v2288
    %v2468 = vunpack.c.h.b16 %v2288
    %v2469 = vunpack.c.l.b16 %v2289
    %v2470 = vunpack.c.h.b16 %v2289
    %v2471 = vunpack.c.l.b16 %v2290
    %v2472 = vunpack.c.h.b16 %v2290
    %v2473 = vunpack.c.l.b16 %v2291
    %v2474 = vunpack.c.h.b16 %v2291
    %v2475 = vunpack.c.l.b16 %v2292
    %v2476 = vunpack.c.h.b16 %v2292
    %v2477 = vunpack.c.l.b16 %v2293
    %v2478 = vunpack.c.h.b16 %v2293
    %v2479 = vunpack.c.l.b16 %v2294
    %v2480 = vunpack.c.h.b16 %v2294
    %v2481 = vunpack.c.l.b16 %v2295
    %v2482 = vunpack.c.h.b16 %v2295
    %v2483 = vunpack.c.l.b16 %v2296
    %v2484 = vunpack.c.h.b16 %v2296
    %v2485 = vunpack.c.l.b16 %v2297
    %v2486 = vunpack.c.h.b16 %v2297
    %v2487 = vunpack.c.l.b16 %v2298
    %v2488 = vunpack.c.h.b16 %v2298
    %v2489 = vunpack.c.l.b16 %v2299
    %v2490 = vunpack.c.h.b16 %v2299
    %v2491 = vunpack.c.l.b16 %v2300
    %v2492 = vunpack.c.h.b16 %v2300
    %v2493 = vunpack.c.l.b16 %v2301
    %v2494 = vunpack.c.h.b16 %v2301
    %v2495 = vunpack.c.l.b16 %v2302
    %v2496 = vunpack.c.h.b16 %v2302
    %v2497 = vunpack.c.l.b16 %v2303
    %v2498 = vunpack.c.h.b16 %v2303
    %v2499 = vunpack.c.l.b16 %v2304
    %v2500 = vunpack.c.h.b16 %v2304
    %v2501 = vunpack.c.l.b16 %v2305
    %v2502 = vunpack.c.h.b16 %v2305
    %v2503 = vunpack.c.l.b16 %v2306
    %v2504 = vunpack.c.h.b16 %v2306
    %v2505 = vunpack.c.l.b16 %v2307
    %v2506 = vunpack.c.h.b16 %v2307
    %v2507 = vunpack.c.l.b16 %v2308
    %v2508 = vunpack.c.h.b16 %v2308
    %v2509 = vunpack.c.l.b16 %v2309
    %v2510 = vunpack.c.h.b16 %v2309
    %v2511 = vunpack.c.l.b16 %v2310
    %v2512 = vunpack.c.h.b16 %v2310
    %v2513 = vpack.c.b16 %v2389, %v2385
    %v2514 = vpack.c.b16 %v2390, %v2386
    %v2515 = vpack.c.b16 %v2391, %v2387
    %v2516 = vpack.c.b16 %v2392, %v2388
    %v2517 = vpack.c.b16 %v2397, %v2393
    %v2518 = vpack.c.b16 %v2398, %v2394
    %v2519 = vpack.c.b16 %v2399, %v2395
    %v2520 = vpack.c.b16 %v2400, %v2396
    %v2521 = vpack.c.b16 %v2405, %v2401
    %v2522 = vpack.c.b16 %v2406, %v2402
    %v2523 = vpack.c.b16 %v2407, %v2403
    %v2524 = vpack.c.b16 %v2408, %v2404
    %v2525 = vpack.c.b16 %v2413, %v2409
    %v2526 = vpack.c.b16 %v2414, %v2410
    %v2527 = vpack.c.b16 %v2415, %v2411
    %v2528 = vpack.c.b16 %v2416, %v2412
    %v2529 = vpack.c.b16 %v2421, %v2417
    %v2530 = vpack.c.b16 %v2422, %v2418
    %v2531 = vpack.c.b16 %v2423, %v2419
    %v2532 = vpack.c.b16 %v2424, %v2420
    %v2533 = vpack.c.b16 %v2429, %v2425
    %v2534 = vpack.c.b16 %v2430, %v2426
    %v2535 = vpack.c.b16 %v2431, %v2427
    %v2536 = vpack.c.b16 %v2432, %v2428
    %v2537 = vpack.c.b16 %v2437, %v2433
    %v2538 = vpack.c.b16 %v2438, %v2434
    %v2539 = vpack.c.b16 %v2439, %v2435
    %v2540 = vpack.c.b16 %v2440, %v2436
    %v2541 = vpack.c.b16 %v2445, %v2441
    %v2542 = vpack.c.b16 %v2446, %v2442
    %v2543 = vpack.c.b16 %v2447, %v2443
    %v2544 = vpack.c.b16 %v2448, %v2444
    %v2545 = vpack.c.b16 %v2453, %v2449
    %v2546 = vpack.c.b16 %v2454, %v2450
    %v2547 = vpack.c.b16 %v2455, %v2451
    %v2548 = vpack.c.b16 %v2456, %v2452
    %v2549 = vpack.c.b16 %v2461, %v2457
    %v2550 = vpack.c.b16 %v2462, %v2458
    %v2551 = vpack.c.b16 %v2463, %v2459
    %v2552 = vpack.c.b16 %v2464, %v2460
    %v2553 = vpack.c.b16 %v2469, %v2465
    %v2554 = vpack.c.b16 %v2470, %v2466
    %v2555 = vpack.c.b16 %v2471, %v2467
    %v2556 = vpack.c.b16 %v2472, %v2468
    %v2557 = vpack.c.b16 %v2477, %v2473
    %v2558 = vpack.c.b16 %v2478, %v2474
    %v2559 = vpack.c.b16 %v2479, %v2475
    %v2560 = vpack.c.b16 %v2480, %v2476
    %v2561 = vpack.c.b16 %v2485, %v2481
    %v2562 = vpack.c.b16 %v2486, %v2482
    %v2563 = vpack.c.b16 %v2487, %v2483
    %v2564 = vpack.c.b16 %v2488, %v2484
    %v2565 = vpack.c.b16 %v2493, %v2489
    %v2566 = vpack.c.b16 %v2494, %v2490
    %v2567 = vpack.c.b16 %v2495, %v2491
    %v2568 = vpack.c.b16 %v2496, %v2492
    %v2569 = vpack.c.b16 %v2501, %v2497
    %v2570 = vpack.c.b16 %v2502, %v2498
    %v2571 = vpack.c.b16 %v2503, %v2499
    %v2572 = vpack.c.b16 %v2504, %v2500
    %v2573 = vpack.c.b16 %v2509, %v2505
    %v2574 = vpack.c.b16 %v2510, %v2506
    %v2575 = vpack.c.b16 %v2511, %v2507
    %v2576 = vpack.c.b16 %v2512, %v2508
    %2641 = vmatpush.bf16.msra.mxu0 %v2541
    %2642 = vmatpush.bf16.msra.mxu0 %v2537
    %2643 = vmatpush.bf16.msra.mxu0 %v2533
    %2644 = vmatpush.bf16.msra.mxu0 %v2529
    %2645 = vmatpush.bf16.msra.mxu0 %v2525
    %2646 = vmatpush.bf16.msra.mxu0 %v2521
    %2647 = vmatpush.bf16.msra.mxu0 %v2517
    %2648 = vmatpush.bf16.msra.mxu0 %v2513
    %2649 = vmatmul.bf16.gmra.mxu0 %v2245
    %v2650 = vpop.f32.mrf.mxu0
    %v2651 = vadd.f32 %v2313, %v2650
    %v2652 = vpop.f32.mrf.mxu0
    %v2653 = vadd.f32 %v2313, %v2652
    %2654 = vdwg.mxu0
    %2655 = vmatpush.bf16.msra.mxu0 %v2573
    %2656 = vmatpush.bf16.msra.mxu0 %v2569
    %2657 = vmatpush.bf16.msra.mxu0 %v2565
    %2658 = vmatpush.bf16.msra.mxu0 %v2561
    %2659 = vmatpush.bf16.msra.mxu0 %v2557
    %2660 = vmatpush.bf16.msra.mxu0 %v2553
    %2661 = vmatpush.bf16.msra.mxu0 %v2549
    %2662 = vmatpush.bf16.msra.mxu0 %v2545
    %2663 = vmatmul.bf16.gmra.mxu0 %v2246
    %v2664 = vpop.f32.mrf.mxu0
    %v2665 = vadd.f32 %v2651, %v2664
    %v2666 = vpop.f32.mrf.mxu0
    %v2667 = vadd.f32 %v2653, %v2666
    %2668 = vdwg.mxu0
    %2669 = vmatpush.bf16.msra.mxu0 %v2542
    %2670 = vmatpush.bf16.msra.mxu0 %v2538
    %2671 = vmatpush.bf16.msra.mxu0 %v2534
    %2672 = vmatpush.bf16.msra.mxu0 %v2530
    %2673 = vmatpush.bf16.msra.mxu0 %v2526
    %2674 = vmatpush.bf16.msra.mxu0 %v2522
    %2675 = vmatpush.bf16.msra.mxu0 %v2518
    %2676 = vmatpush.bf16.msra.mxu0 %v2514
    %2677 = vmatmul.bf16.gmra.mxu0 %v2245
    %v2678 = vpop.f32.mrf.mxu0
    %v2679 = vadd.f32 %v2314, %v2678
    %v2680 = vpop.f32.mrf.mxu0
    %v2681 = vadd.f32 %v2314, %v2680
    %2682 = vdwg.mxu0
    %2683 = vmatpush.bf16.msra.mxu0 %v2574
    %2684 = vmatpush.bf16.msra.mxu0 %v2570
    %2685 = vmatpush.bf16.msra.mxu0 %v2566
    %2686 = vmatpush.bf16.msra.mxu0 %v2562
    %2687 = vmatpush.bf16.msra.mxu0 %v2558
    %2688 = vmatpush.bf16.msra.mxu0 %v2554
    %2689 = vmatpush.bf16.msra.mxu0 %v2550
    %2690 = vmatpush.bf16.msra.mxu0 %v2546
    %2691 = vmatmul.bf16.gmra.mxu0 %v2246
    %v2692 = vpop.f32.mrf.mxu0
    %v2693 = vadd.f32 %v2679, %v2692
    %v2694 = vpop.f32.mrf.mxu0
    %v2695 = vadd.f32 %v2681, %v2694
    %2696 = vdwg.mxu0
    %2697 = vmatpush.bf16.msra.mxu0 %v2543
    %2698 = vmatpush.bf16.msra.mxu0 %v2539
    %2699 = vmatpush.bf16.msra.mxu0 %v2535
    %2700 = vmatpush.bf16.msra.mxu0 %v2531
    %2701 = vmatpush.bf16.msra.mxu0 %v2527
    %2702 = vmatpush.bf16.msra.mxu0 %v2523
    %2703 = vmatpush.bf16.msra.mxu0 %v2519
    %2704 = vmatpush.bf16.msra.mxu0 %v2515
    %2705 = vmatmul.bf16.gmra.mxu0 %v2245
    %v2706 = vpop.f32.mrf.mxu0
    %v2707 = vadd.f32 %v2315, %v2706
    %v2708 = vpop.f32.mrf.mxu0
    %v2709 = vadd.f32 %v2315, %v2708
    %2710 = vdwg.mxu0
    %2711 = vmatpush.bf16.msra.mxu0 %v2575
    %2712 = vmatpush.bf16.msra.mxu0 %v2571
    %2713 = vmatpush.bf16.msra.mxu0 %v2567
    %2714 = vmatpush.bf16.msra.mxu0 %v2563
    %2715 = vmatpush.bf16.msra.mxu0 %v2559
    %2716 = vmatpush.bf16.msra.mxu0 %v2555
    %2717 = vmatpush.bf16.msra.mxu0 %v2551
    %2718 = vmatpush.bf16.msra.mxu0 %v2547
    %2719 = vmatmul.bf16.gmra.mxu0 %v2246
    %v2720 = vpop.f32.mrf.mxu0
    %v2721 = vadd.f32 %v2707, %v2720
    %v2722 = vpop.f32.mrf.mxu0
    %v2723 = vadd.f32 %v2709, %v2722
    %2724 = vdwg.mxu0
    %2725 = vmatpush.bf16.msra.mxu0 %v2544
    %2726 = vmatpush.bf16.msra.mxu0 %v2540
    %2727 = vmatpush.bf16.msra.mxu0 %v2536
    %2728 = vmatpush.bf16.msra.mxu0 %v2532
    %2729 = vmatpush.bf16.msra.mxu0 %v2528
    %2730 = vmatpush.bf16.msra.mxu0 %v2524
    %2731 = vmatpush.bf16.msra.mxu0 %v2520
    %2732 = vmatpush.bf16.msra.mxu0 %v2516
    %2733 = vmatmul.bf16.gmra.mxu0 %v2245
    %v2734 = vpop.f32.mrf.mxu0
    %v2735 = vadd.f32 %v2316, %v2734
    %v2736 = vpop.f32.mrf.mxu0
    %v2737 = vadd.f32 %v2316, %v2736
    %2738 = vdwg.mxu0
    %2739 = vmatpush.bf16.msra.mxu0 %v2576
    %2740 = vmatpush.bf16.msra.mxu0 %v2572
    %2741 = vmatpush.bf16.msra.mxu0 %v2568
    %2742 = vmatpush.bf16.msra.mxu0 %v2564
    %2743 = vmatpush.bf16.msra.mxu0 %v2560
    %2744 = vmatpush.bf16.msra.mxu0 %v2556
    %2745 = vmatpush.bf16.msra.mxu0 %v2552
    %2746 = vmatpush.bf16.msra.mxu0 %v2548
    %2747 = vmatmul.bf16.gmra.mxu0 %v2246
    %v2748 = vpop.f32.mrf.mxu0
    %v2749 = vadd.f32 %v2735, %v2748
    %v2750 = vpop.f32.mrf.mxu0
    %v2751 = vadd.f32 %v2737, %v2750
    %2752 = vdwg.mxu0
    %v2753 = vmax.f32 %v2665, 0.0
    %v2754 = vmax.f32 %v2693, 0.0
    %v2755 = vmax.f32 %v2721, 0.0
    %v2756 = vmax.f32 %v2749, 0.0
    %v2757 = vmax.f32 %v2667, 0.0
    %v2758 = vmax.f32 %v2695, 0.0
    %v2759 = vmax.f32 %v2723, 0.0
    %v2760 = vmax.f32 %v2751, 0.0
    %v2761 = vpack.c.bf16 %v2757, %v2753
    %v2762 = vpack.c.bf16 %v2758, %v2754
    %v2763 = vpack.c.bf16 %v2759, %v2755
    %v2764 = vpack.c.bf16 %v2760, %v2756
    %v2765 = vld [vmem:[#allocation13] sm:$0xff]
    %v2766 = vld [vmem:[#allocation13 + $0x8] sm:$0xff]
    %v2767 = vld [vmem:[#allocation13 + $0x10] sm:$0xff]
    %v2768 = vld [vmem:[#allocation13 + $0x18] sm:$0xff]
    %v2769 = vld [vmem:[#allocation13 + $0x20] sm:$0xff]
    %v2770 = vld [vmem:[#allocation13 + $0x28] sm:$0xff]
    %v2771 = vld [vmem:[#allocation13 + $0x30] sm:$0xff]
    %v2772 = vld [vmem:[#allocation13 + $0x38] sm:$0xff]
    %v2773 = vld [vmem:[#allocation13 + $0x40] sm:$0xff]
    %v2774 = vld [vmem:[#allocation13 + $0x48] sm:$0xff]
    %v2775 = vld [vmem:[#allocation13 + $0x50] sm:$0xff]
    %v2776 = vld [vmem:[#allocation13 + $0x58] sm:$0xff]
    %v2777 = vld [vmem:[#allocation13 + $0x60] sm:$0xff]
    %v2778 = vld [vmem:[#allocation13 + $0x68] sm:$0xff]
    %v2779 = vld [vmem:[#allocation13 + $0x70] sm:$0xff]
    %v2780 = vld [vmem:[#allocation13 + $0x78] sm:$0xff]
    %v2781 = vld [vmem:[#allocation13 + $0x80] sm:$0xff]
    %v2782 = vld [vmem:[#allocation13 + $0x88] sm:$0xff]
    %v2783 = vld [vmem:[#allocation13 + $0x90] sm:$0xff]
    %v2784 = vld [vmem:[#allocation13 + $0x98] sm:$0xff]
    %v2785 = vld [vmem:[#allocation13 + $0xa0] sm:$0xff]
    %v2786 = vld [vmem:[#allocation13 + $0xa8] sm:$0xff]
    %v2787 = vld [vmem:[#allocation13 + $0xb0] sm:$0xff]
    %v2788 = vld [vmem:[#allocation13 + $0xb8] sm:$0xff]
    %v2789 = vld [vmem:[#allocation13 + $0xc0] sm:$0xff]
    %v2790 = vld [vmem:[#allocation13 + $0xc8] sm:$0xff]
    %v2791 = vld [vmem:[#allocation13 + $0xd0] sm:$0xff]
    %v2792 = vld [vmem:[#allocation13 + $0xd8] sm:$0xff]
    %v2793 = vld [vmem:[#allocation13 + $0xe0] sm:$0xff]
    %v2794 = vld [vmem:[#allocation13 + $0xe8] sm:$0xff]
    %v2795 = vld [vmem:[#allocation13 + $0xf0] sm:$0xff]
    %v2796 = vld [vmem:[#allocation13 + $0xf8] sm:$0xff]
    %v2797 = vld [vmem:[#allocation13 + $0x100] sm:$0xff]
    %v2798 = vld [vmem:[#allocation13 + $0x108] sm:$0xff]
    %v2799 = vld [vmem:[#allocation13 + $0x110] sm:$0xff]
    %v2800 = vld [vmem:[#allocation13 + $0x118] sm:$0xff]
    %v2801 = vld [vmem:[#allocation13 + $0x120] sm:$0xff]
    %v2802 = vld [vmem:[#allocation13 + $0x128] sm:$0xff]
    %v2803 = vld [vmem:[#allocation13 + $0x130] sm:$0xff]
    %v2804 = vld [vmem:[#allocation13 + $0x138] sm:$0xff]
    %v2805 = vld [vmem:[#allocation13 + $0x140] sm:$0xff]
    %v2806 = vld [vmem:[#allocation13 + $0x148] sm:$0xff]
    %v2807 = vld [vmem:[#allocation13 + $0x150] sm:$0xff]
    %v2808 = vld [vmem:[#allocation13 + $0x158] sm:$0xff]
    %v2809 = vld [vmem:[#allocation13 + $0x160] sm:$0xff]
    %v2810 = vld [vmem:[#allocation13 + $0x168] sm:$0xff]
    %v2811 = vld [vmem:[#allocation13 + $0x170] sm:$0xff]
    %v2812 = vld [vmem:[#allocation13 + $0x178] sm:$0xff]
    %v2813 = vld [vmem:[#allocation13 + $0x180] sm:$0xff]
    %v2814 = vld [vmem:[#allocation13 + $0x188] sm:$0xff]
    %v2815 = vld [vmem:[#allocation13 + $0x190] sm:$0xff]
    %v2816 = vld [vmem:[#allocation13 + $0x198] sm:$0xff]
    %v2817 = vld [vmem:[#allocation13 + $0x1a0] sm:$0xff]
    %v2818 = vld [vmem:[#allocation13 + $0x1a8] sm:$0xff]
    %v2819 = vld [vmem:[#allocation13 + $0x1b0] sm:$0xff]
    %v2820 = vld [vmem:[#allocation13 + $0x1b8] sm:$0xff]
    %v2821 = vld [vmem:[#allocation13 + $0x1c0] sm:$0xff]
    %v2822 = vld [vmem:[#allocation13 + $0x1c8] sm:$0xff]
    %v2823 = vld [vmem:[#allocation13 + $0x1d0] sm:$0xff]
    %v2824 = vld [vmem:[#allocation13 + $0x1d8] sm:$0xff]
    %v2825 = vld [vmem:[#allocation13 + $0x1e0] sm:$0xff]
    %v2826 = vld [vmem:[#allocation13 + $0x1e8] sm:$0xff]
    %v2827 = vld [vmem:[#allocation13 + $0x1f0] sm:$0xff]
    %v2828 = vld [vmem:[#allocation13 + $0x1f8] sm:$0xff]
    %v2829 = vld [vmem:[%s8] sm:$0x3]
    %v2831 = vperm.slane %v2829, 0
    %v2832 = vperm.slane %v2829, 1
    %v2899 = vunpack.c.l.b16 %v2765
    %v2900 = vunpack.c.h.b16 %v2765
    %v2901 = vunpack.c.l.b16 %v2766
    %v2902 = vunpack.c.h.b16 %v2766
    %v2903 = vunpack.c.l.b16 %v2767
    %v2904 = vunpack.c.h.b16 %v2767
    %v2905 = vunpack.c.l.b16 %v2768
    %v2906 = vunpack.c.h.b16 %v2768
    %v2907 = vunpack.c.l.b16 %v2769
    %v2908 = vunpack.c.h.b16 %v2769
    %v2909 = vunpack.c.l.b16 %v2770
    %v2910 = vunpack.c.h.b16 %v2770
    %v2911 = vunpack.c.l.b16 %v2771
    %v2912 = vunpack.c.h.b16 %v2771
    %v2913 = vunpack.c.l.b16 %v2772
    %v2914 = vunpack.c.h.b16 %v2772
    %v2915 = vunpack.c.l.b16 %v2773
    %v2916 = vunpack.c.h.b16 %v2773
    %v2917 = vunpack.c.l.b16 %v2774
    %v2918 = vunpack.c.h.b16 %v2774
    %v2919 = vunpack.c.l.b16 %v2775
    %v2920 = vunpack.c.h.b16 %v2775
    %v2921 = vunpack.c.l.b16 %v2776
    %v2922 = vunpack.c.h.b16 %v2776
    %v2923 = vunpack.c.l.b16 %v2777
    %v2924 = vunpack.c.h.b16 %v2777
    %v2925 = vunpack.c.l.b16 %v2778
    %v2926 = vunpack.c.h.b16 %v2778
    %v2927 = vunpack.c.l.b16 %v2779
    %v2928 = vunpack.c.h.b16 %v2779
    %v2929 = vunpack.c.l.b16 %v2780
    %v2930 = vunpack.c.h.b16 %v2780
    %v2931 = vunpack.c.l.b16 %v2781
    %v2932 = vunpack.c.h.b16 %v2781
    %v2933 = vunpack.c.l.b16 %v2782
    %v2934 = vunpack.c.h.b16 %v2782
    %v2935 = vunpack.c.l.b16 %v2783
    %v2936 = vunpack.c.h.b16 %v2783
    %v2937 = vunpack.c.l.b16 %v2784
    %v2938 = vunpack.c.h.b16 %v2784
    %v2939 = vunpack.c.l.b16 %v2785
    %v2940 = vunpack.c.h.b16 %v2785
    %v2941 = vunpack.c.l.b16 %v2786
    %v2942 = vunpack.c.h.b16 %v2786
    %v2943 = vunpack.c.l.b16 %v2787
    %v2944 = vunpack.c.h.b16 %v2787
    %v2945 = vunpack.c.l.b16 %v2788
    %v2946 = vunpack.c.h.b16 %v2788
    %v2947 = vunpack.c.l.b16 %v2789
    %v2948 = vunpack.c.h.b16 %v2789
    %v2949 = vunpack.c.l.b16 %v2790
    %v2950 = vunpack.c.h.b16 %v2790
    %v2951 = vunpack.c.l.b16 %v2791
    %v2952 = vunpack.c.h.b16 %v2791
    %v2953 = vunpack.c.l.b16 %v2792
    %v2954 = vunpack.c.h.b16 %v2792
    %v2955 = vunpack.c.l.b16 %v2793
    %v2956 = vunpack.c.h.b16 %v2793
    %v2957 = vunpack.c.l.b16 %v2794
    %v2958 = vunpack.c.h.b16 %v2794
    %v2959 = vunpack.c.l.b16 %v2795
    %v2960 = vunpack.c.h.b16 %v2795
    %v2961 = vunpack.c.l.b16 %v2796
    %v2962 = vunpack.c.h.b16 %v2796
    %v2963 = vunpack.c.l.b16 %v2797
    %v2964 = vunpack.c.h.b16 %v2797
    %v2965 = vunpack.c.l.b16 %v2798
    %v2966 = vunpack.c.h.b16 %v2798
    %v2967 = vunpack.c.l.b16 %v2799
    %v2968 = vunpack.c.h.b16 %v2799
    %v2969 = vunpack.c.l.b16 %v2800
    %v2970 = vunpack.c.h.b16 %v2800
    %v2971 = vunpack.c.l.b16 %v2801
    %v2972 = vunpack.c.h.b16 %v2801
    %v2973 = vunpack.c.l.b16 %v2802
    %v2974 = vunpack.c.h.b16 %v2802
    %v2975 = vunpack.c.l.b16 %v2803
    %v2976 = vunpack.c.h.b16 %v2803
    %v2977 = vunpack.c.l.b16 %v2804
    %v2978 = vunpack.c.h.b16 %v2804
    %v2979 = vunpack.c.l.b16 %v2805
    %v2980 = vunpack.c.h.b16 %v2805
    %v2981 = vunpack.c.l.b16 %v2806
    %v2982 = vunpack.c.h.b16 %v2806
    %v2983 = vunpack.c.l.b16 %v2807
    %v2984 = vunpack.c.h.b16 %v2807
    %v2985 = vunpack.c.l.b16 %v2808
    %v2986 = vunpack.c.h.b16 %v2808
    %v2987 = vunpack.c.l.b16 %v2809
    %v2988 = vunpack.c.h.b16 %v2809
    %v2989 = vunpack.c.l.b16 %v2810
    %v2990 = vunpack.c.h.b16 %v2810
    %v2991 = vunpack.c.l.b16 %v2811
    %v2992 = vunpack.c.h.b16 %v2811
    %v2993 = vunpack.c.l.b16 %v2812
    %v2994 = vunpack.c.h.b16 %v2812
    %v2995 = vunpack.c.l.b16 %v2813
    %v2996 = vunpack.c.h.b16 %v2813
    %v2997 = vunpack.c.l.b16 %v2814
    %v2998 = vunpack.c.h.b16 %v2814
    %v2999 = vunpack.c.l.b16 %v2815
    %v3000 = vunpack.c.h.b16 %v2815
    %v3001 = vunpack.c.l.b16 %v2816
    %v3002 = vunpack.c.h.b16 %v2816
    %v3003 = vunpack.c.l.b16 %v2817
    %v3004 = vunpack.c.h.b16 %v2817
    %v3005 = vunpack.c.l.b16 %v2818
    %v3006 = vunpack.c.h.b16 %v2818
    %v3007 = vunpack.c.l.b16 %v2819
    %v3008 = vunpack.c.h.b16 %v2819
    %v3009 = vunpack.c.l.b16 %v2820
    %v3010 = vunpack.c.h.b16 %v2820
    %v3011 = vunpack.c.l.b16 %v2821
    %v3012 = vunpack.c.h.b16 %v2821
    %v3013 = vunpack.c.l.b16 %v2822
    %v3014 = vunpack.c.h.b16 %v2822
    %v3015 = vunpack.c.l.b16 %v2823
    %v3016 = vunpack.c.h.b16 %v2823
    %v3017 = vunpack.c.l.b16 %v2824
    %v3018 = vunpack.c.h.b16 %v2824
    %v3019 = vunpack.c.l.b16 %v2825
    %v3020 = vunpack.c.h.b16 %v2825
    %v3021 = vunpack.c.l.b16 %v2826
    %v3022 = vunpack.c.h.b16 %v2826
    %v3023 = vunpack.c.l.b16 %v2827
    %v3024 = vunpack.c.h.b16 %v2827
    %v3025 = vunpack.c.l.b16 %v2828
    %v3026 = vunpack.c.h.b16 %v2828
    %v3027 = vpack.c.b16 %v2901, %v2899
    %v3028 = vpack.c.b16 %v2902, %v2900
    %v3029 = vpack.c.b16 %v2905, %v2903
    %v3030 = vpack.c.b16 %v2906, %v2904
    %v3031 = vpack.c.b16 %v2909, %v2907
    %v3032 = vpack.c.b16 %v2910, %v2908
    %v3033 = vpack.c.b16 %v2913, %v2911
    %v3034 = vpack.c.b16 %v2914, %v2912
    %v3035 = vpack.c.b16 %v2917, %v2915
    %v3036 = vpack.c.b16 %v2918, %v2916
    %v3037 = vpack.c.b16 %v2921, %v2919
    %v3038 = vpack.c.b16 %v2922, %v2920
    %v3039 = vpack.c.b16 %v2925, %v2923
    %v3040 = vpack.c.b16 %v2926, %v2924
    %v3041 = vpack.c.b16 %v2929, %v2927
    %v3042 = vpack.c.b16 %v2930, %v2928
    %v3043 = vpack.c.b16 %v2933, %v2931
    %v3044 = vpack.c.b16 %v2934, %v2932
    %v3045 = vpack.c.b16 %v2937, %v2935
    %v3046 = vpack.c.b16 %v2938, %v2936
    %v3047 = vpack.c.b16 %v2941, %v2939
    %v3048 = vpack.c.b16 %v2942, %v2940
    %v3049 = vpack.c.b16 %v2945, %v2943
    %v3050 = vpack.c.b16 %v2946, %v2944
    %v3051 = vpack.c.b16 %v2949, %v2947
    %v3052 = vpack.c.b16 %v2950, %v2948
    %v3053 = vpack.c.b16 %v2953, %v2951
    %v3054 = vpack.c.b16 %v2954, %v2952
    %v3055 = vpack.c.b16 %v2957, %v2955
    %v3056 = vpack.c.b16 %v2958, %v2956
    %v3057 = vpack.c.b16 %v2961, %v2959
    %v3058 = vpack.c.b16 %v2962, %v2960
    %v3059 = vpack.c.b16 %v2965, %v2963
    %v3060 = vpack.c.b16 %v2966, %v2964
    %v3061 = vpack.c.b16 %v2969, %v2967
    %v3062 = vpack.c.b16 %v2970, %v2968
    %v3063 = vpack.c.b16 %v2973, %v2971
    %v3064 = vpack.c.b16 %v2974, %v2972
    %v3065 = vpack.c.b16 %v2977, %v2975
    %v3066 = vpack.c.b16 %v2978, %v2976
    %v3067 = vpack.c.b16 %v2981, %v2979
    %v3068 = vpack.c.b16 %v2982, %v2980
    %v3069 = vpack.c.b16 %v2985, %v2983
    %v3070 = vpack.c.b16 %v2986, %v2984
    %v3071 = vpack.c.b16 %v2989, %v2987
    %v3072 = vpack.c.b16 %v2990, %v2988
    %v3073 = vpack.c.b16 %v2993, %v2991
    %v3074 = vpack.c.b16 %v2994, %v2992
    %v3075 = vpack.c.b16 %v2997, %v2995
    %v3076 = vpack.c.b16 %v2998, %v2996
    %v3077 = vpack.c.b16 %v3001, %v2999
    %v3078 = vpack.c.b16 %v3002, %v3000
    %v3079 = vpack.c.b16 %v3005, %v3003
    %v3080 = vpack.c.b16 %v3006, %v3004
    %v3081 = vpack.c.b16 %v3009, %v3007
    %v3082 = vpack.c.b16 %v3010, %v3008
    %v3083 = vpack.c.b16 %v3013, %v3011
    %v3084 = vpack.c.b16 %v3014, %v3012
    %v3085 = vpack.c.b16 %v3017, %v3015
    %v3086 = vpack.c.b16 %v3018, %v3016
    %v3087 = vpack.c.b16 %v3021, %v3019
    %v3088 = vpack.c.b16 %v3022, %v3020
    %v3089 = vpack.c.b16 %v3025, %v3023
    %v3090 = vpack.c.b16 %v3026, %v3024
    %3155 = vmatpush.bf16.msra.mxu0 %v3041
    %3156 = vmatpush.bf16.msra.mxu0 %v3039
    %3157 = vmatpush.bf16.msra.mxu0 %v3037
    %3158 = vmatpush.bf16.msra.mxu0 %v3035
    %3159 = vmatpush.bf16.msra.mxu0 %v3033
    %3160 = vmatpush.bf16.msra.mxu0 %v3031
    %3161 = vmatpush.bf16.msra.mxu0 %v3029
    %3162 = vmatpush.bf16.msra.mxu0 %v3027
    %3163 = vmatmul.bf16.gmra.mxu0 %v2761
    %v3164 = vpop.f32.mrf.mxu0
    %v3165 = vadd.f32 %v2831, %v3164
    %v3166 = vpop.f32.mrf.mxu0
    %v3167 = vadd.f32 %v2831, %v3166
    %3168 = vdwg.mxu0
    %3169 = vmatpush.bf16.msra.mxu0 %v3057
    %3170 = vmatpush.bf16.msra.mxu0 %v3055
    %3171 = vmatpush.bf16.msra.mxu0 %v3053
    %3172 = vmatpush.bf16.msra.mxu0 %v3051
    %3173 = vmatpush.bf16.msra.mxu0 %v3049
    %3174 = vmatpush.bf16.msra.mxu0 %v3047
    %3175 = vmatpush.bf16.msra.mxu0 %v3045
    %3176 = vmatpush.bf16.msra.mxu0 %v3043
    %3177 = vmatmul.bf16.gmra.mxu0 %v2762
    %v3178 = vpop.f32.mrf.mxu0
    %v3179 = vadd.f32 %v3165, %v3178
    %v3180 = vpop.f32.mrf.mxu0
    %v3181 = vadd.f32 %v3167, %v3180
    %3182 = vdwg.mxu0
    %3183 = vmatpush.bf16.msra.mxu0 %v3073
    %3184 = vmatpush.bf16.msra.mxu0 %v3071
    %3185 = vmatpush.bf16.msra.mxu0 %v3069
    %3186 = vmatpush.bf16.msra.mxu0 %v3067
    %3187 = vmatpush.bf16.msra.mxu0 %v3065
    %3188 = vmatpush.bf16.msra.mxu0 %v3063
    %3189 = vmatpush.bf16.msra.mxu0 %v3061
    %3190 = vmatpush.bf16.msra.mxu0 %v3059
    %3191 = vmatmul.bf16.gmra.mxu0 %v2763
    %v3192 = vpop.f32.mrf.mxu0
    %v3193 = vadd.f32 %v3179, %v3192
    %v3194 = vpop.f32.mrf.mxu0
    %v3195 = vadd.f32 %v3181, %v3194
    %3196 = vdwg.mxu0
    %3197 = vmatpush.bf16.msra.mxu0 %v3089
    %3198 = vmatpush.bf16.msra.mxu0 %v3087
    %3199 = vmatpush.bf16.msra.mxu0 %v3085
    %3200 = vmatpush.bf16.msra.mxu0 %v3083
    %3201 = vmatpush.bf16.msra.mxu0 %v3081
    %3202 = vmatpush.bf16.msra.mxu0 %v3079
    %3203 = vmatpush.bf16.msra.mxu0 %v3077
    %3204 = vmatpush.bf16.msra.mxu0 %v3075
    %3205 = vmatmul.bf16.gmra.mxu0 %v2764
    %v3206 = vpop.f32.mrf.mxu0
    %v3207 = vadd.f32 %v3193, %v3206
    %v3208 = vpop.f32.mrf.mxu0
    %v3209 = vadd.f32 %v3195, %v3208
    %3210 = vdwg.mxu0
    %3211 = vmatpush.bf16.msra.mxu0 %v3042
    %3212 = vmatpush.bf16.msra.mxu0 %v3040
    %3213 = vmatpush.bf16.msra.mxu0 %v3038
    %3214 = vmatpush.bf16.msra.mxu0 %v3036
    %3215 = vmatpush.bf16.msra.mxu0 %v3034
    %3216 = vmatpush.bf16.msra.mxu0 %v3032
    %3217 = vmatpush.bf16.msra.mxu0 %v3030
    %3218 = vmatpush.bf16.msra.mxu0 %v3028
    %3219 = vmatmul.bf16.gmra.mxu0 %v2761
    %v3220 = vpop.f32.mrf.mxu0
    %v3221 = vadd.f32 %v2832, %v3220
    %v3222 = vpop.f32.mrf.mxu0
    %v3223 = vadd.f32 %v2832, %v3222
    %3224 = vdwg.mxu0
    %3225 = vmatpush.bf16.msra.mxu0 %v3058
    %3226 = vmatpush.bf16.msra.mxu0 %v3056
    %3227 = vmatpush.bf16.msra.mxu0 %v3054
    %3228 = vmatpush.bf16.msra.mxu0 %v3052
    %3229 = vmatpush.bf16.msra.mxu0 %v3050
    %3230 = vmatpush.bf16.msra.mxu0 %v3048
    %3231 = vmatpush.bf16.msra.mxu0 %v3046
    %3232 = vmatpush.bf16.msra.mxu0 %v3044
    %3233 = vmatmul.bf16.gmra.mxu0 %v2762
    %v3234 = vpop.f32.mrf.mxu0
    %v3235 = vadd.f32 %v3221, %v3234
    %v3236 = vpop.f32.mrf.mxu0
    %v3237 = vadd.f32 %v3223, %v3236
    %3238 = vdwg.mxu0
    %3239 = vmatpush.bf16.msra.mxu0 %v3074
    %3240 = vmatpush.bf16.msra.mxu0 %v3072
    %3241 = vmatpush.bf16.msra.mxu0 %v3070
    %3242 = vmatpush.bf16.msra.mxu0 %v3068
    %3243 = vmatpush.bf16.msra.mxu0 %v3066
    %3244 = vmatpush.bf16.msra.mxu0 %v3064
    %3245 = vmatpush.bf16.msra.mxu0 %v3062
    %3246 = vmatpush.bf16.msra.mxu0 %v3060
    %3247 = vmatmul.bf16.gmra.mxu0 %v2763
    %v3248 = vpop.f32.mrf.mxu0
    %v3249 = vadd.f32 %v3235, %v3248
    %v3250 = vpop.f32.mrf.mxu0
    %v3251 = vadd.f32 %v3237, %v3250
    %3252 = vdwg.mxu0
    %3253 = vmatpush.bf16.msra.mxu0 %v3090
    %3254 = vmatpush.bf16.msra.mxu0 %v3088
    %3255 = vmatpush.bf16.msra.mxu0 %v3086
    %3256 = vmatpush.bf16.msra.mxu0 %v3084
    %3257 = vmatpush.bf16.msra.mxu0 %v3082
    %3258 = vmatpush.bf16.msra.mxu0 %v3080
    %3259 = vmatpush.bf16.msra.mxu0 %v3078
    %3260 = vmatpush.bf16.msra.mxu0 %v3076
    %3261 = vmatmul.bf16.gmra.mxu0 %v2764
    %v3262 = vpop.f32.mrf.mxu0
    %v3263 = vadd.f32 %v3249, %v3262
    %v3264 = vpop.f32.mrf.mxu0
    %v3265 = vadd.f32 %v3251, %v3264
    %3266 = vdwg.mxu0
    %v3267 = vmax.f32 %v3207, 0.0
    %v3268 = vmax.f32 %v3263, 0.0
    %v3269 = vmax.f32 %v3209, 0.0
    %v3270 = vmax.f32 %v3265, 0.0
    %v3271 = vpack.c.bf16 %v3269, %v3267
    %v3272 = vpack.c.bf16 %v3270, %v3268
    %v3273 = vld [vmem:[#allocation14] sm:$0xf]
    %v3274 = vld [vmem:[#allocation14 + $0x4] sm:$0xf]
    %v3275 = vld [vmem:[#allocation14 + $0x8] sm:$0xf]
    %v3276 = vld [vmem:[#allocation14 + $0xc] sm:$0xf]
    %v3277 = vld [vmem:[#allocation14 + $0x10] sm:$0xf]
    %v3278 = vld [vmem:[#allocation14 + $0x14] sm:$0xf]
    %v3279 = vld [vmem:[#allocation14 + $0x18] sm:$0xf]
    %v3280 = vld [vmem:[#allocation14 + $0x1c] sm:$0xf]
    %v3281 = vld [vmem:[#allocation14 + $0x20] sm:$0xf]
    %v3282 = vld [vmem:[#allocation14 + $0x24] sm:$0xf]
    %v3283 = vld [vmem:[#allocation14 + $0x28] sm:$0xf]
    %v3284 = vld [vmem:[#allocation14 + $0x2c] sm:$0xf]
    %v3285 = vld [vmem:[#allocation14 + $0x30] sm:$0xf]
    %v3286 = vld [vmem:[#allocation14 + $0x34] sm:$0xf]
    %v3287 = vld [vmem:[#allocation14 + $0x38] sm:$0xf]
    %v3288 = vld [vmem:[#allocation14 + $0x3c] sm:$0xf]
    %v3289 = vld [vmem:[#allocation14 + $0x40] sm:$0xf]
    %v3290 = vld [vmem:[#allocation14 + $0x44] sm:$0xf]
    %v3291 = vld [vmem:[#allocation14 + $0x48] sm:$0xf]
    %v3292 = vld [vmem:[#allocation14 + $0x4c] sm:$0xf]
    %v3293 = vld [vmem:[#allocation14 + $0x50] sm:$0xf]
    %v3294 = vld [vmem:[#allocation14 + $0x54] sm:$0xf]
    %v3295 = vld [vmem:[#allocation14 + $0x58] sm:$0xf]
    %v3296 = vld [vmem:[#allocation14 + $0x5c] sm:$0xf]
    %v3297 = vld [vmem:[#allocation14 + $0x60] sm:$0xf]
    %v3298 = vld [vmem:[#allocation14 + $0x64] sm:$0xf]
    %v3299 = vld [vmem:[#allocation14 + $0x68] sm:$0xf]
    %v3300 = vld [vmem:[#allocation14 + $0x6c] sm:$0xf]
    %v3301 = vld [vmem:[#allocation14 + $0x70] sm:$0xf]
    %v3302 = vld [vmem:[#allocation14 + $0x74] sm:$0xf]
    %v3303 = vld [vmem:[#allocation14 + $0x78] sm:$0xf]
    %v3304 = vld [vmem:[#allocation14 + $0x7c] sm:$0xf]
    %v3305 = vld [vmem:[%s10] sm:$0x1]
    %v3307 = vperm.slane %v3305, 0
    %v3341 = vunpack.c.l.b16 %v3273
    %v3342 = vunpack.c.l.b16 %v3274
    %v3343 = vunpack.c.l.b16 %v3275
    %v3344 = vunpack.c.l.b16 %v3276
    %v3345 = vunpack.c.l.b16 %v3277
    %v3346 = vunpack.c.l.b16 %v3278
    %v3347 = vunpack.c.l.b16 %v3279
    %v3348 = vunpack.c.l.b16 %v3280
    %v3349 = vunpack.c.l.b16 %v3281
    %v3350 = vunpack.c.l.b16 %v3282
    %v3351 = vunpack.c.l.b16 %v3283
    %v3352 = vunpack.c.l.b16 %v3284
    %v3353 = vunpack.c.l.b16 %v3285
    %v3354 = vunpack.c.l.b16 %v3286
    %v3355 = vunpack.c.l.b16 %v3287
    %v3356 = vunpack.c.l.b16 %v3288
    %v3357 = vunpack.c.l.b16 %v3289
    %v3358 = vunpack.c.l.b16 %v3290
    %v3359 = vunpack.c.l.b16 %v3291
    %v3360 = vunpack.c.l.b16 %v3292
    %v3361 = vunpack.c.l.b16 %v3293
    %v3362 = vunpack.c.l.b16 %v3294
    %v3363 = vunpack.c.l.b16 %v3295
    %v3364 = vunpack.c.l.b16 %v3296
    %v3365 = vunpack.c.l.b16 %v3297
    %v3366 = vunpack.c.l.b16 %v3298
    %v3367 = vunpack.c.l.b16 %v3299
    %v3368 = vunpack.c.l.b16 %v3300
    %v3369 = vunpack.c.l.b16 %v3301
    %v3370 = vunpack.c.l.b16 %v3302
    %v3371 = vunpack.c.l.b16 %v3303
    %v3372 = vunpack.c.l.b16 %v3304
    %v3373 = vpack.c.b16 %v3342, %v3341
    %v3374 = vpack.c.b16 %v3344, %v3343
    %v3375 = vpack.c.b16 %v3346, %v3345
    %v3376 = vpack.c.b16 %v3348, %v3347
    %v3377 = vpack.c.b16 %v3350, %v3349
    %v3378 = vpack.c.b16 %v3352, %v3351
    %v3379 = vpack.c.b16 %v3354, %v3353
    %v3380 = vpack.c.b16 %v3356, %v3355
    %v3381 = vpack.c.b16 %v3358, %v3357
    %v3382 = vpack.c.b16 %v3360, %v3359
    %v3383 = vpack.c.b16 %v3362, %v3361
    %v3384 = vpack.c.b16 %v3364, %v3363
    %v3385 = vpack.c.b16 %v3366, %v3365
    %v3386 = vpack.c.b16 %v3368, %v3367
    %v3387 = vpack.c.b16 %v3370, %v3369
    %v3388 = vpack.c.b16 %v3372, %v3371
    %3405 = vmatpush.bf16.msra.mxu0 %v3380
    %3406 = vmatpush.bf16.msra.mxu0 %v3379
    %3407 = vmatpush.bf16.msra.mxu0 %v3378
    %3408 = vmatpush.bf16.msra.mxu0 %v3377
    %3409 = vmatpush.bf16.msra.mxu0 %v3376
    %3410 = vmatpush.bf16.msra.mxu0 %v3375
    %3411 = vmatpush.bf16.msra.mxu0 %v3374
    %3412 = vmatpush.bf16.msra.mxu0 %v3373
    %3413 = vmatmul.bf16.gmra.mxu0 %v3271
    %v3414 = vpop.f32.mrf.mxu0
    %v3415 = vadd.f32 %v3307, %v3414
    %v3416 = vpop.f32.mrf.mxu0
    %v3417 = vadd.f32 %v3307, %v3416
    %3418 = vdwg.mxu0
    %3419 = vmatpush.bf16.msra.mxu0 %v3388
    %3420 = vmatpush.bf16.msra.mxu0 %v3387
    %3421 = vmatpush.bf16.msra.mxu0 %v3386
    %3422 = vmatpush.bf16.msra.mxu0 %v3385
    %3423 = vmatpush.bf16.msra.mxu0 %v3384
    %3424 = vmatpush.bf16.msra.mxu0 %v3383
    %3425 = vmatpush.bf16.msra.mxu0 %v3382
    %3426 = vmatpush.bf16.msra.mxu0 %v3381
    %3427 = vmatmul.bf16.gmra.mxu0 %v3272
    %v3428 = vpop.f32.mrf.mxu0
    %v3429 = vadd.f32 %v3415, %v3428
    %v3430 = vpop.f32.mrf.mxu0
    %v3431 = vadd.f32 %v3417, %v3430
    %3432 = vdwg.mxu0
    %v3433 = vmax.f32 %v3429, 0.0
    %v3434 = vmax.f32 %v3431, 0.0
    %3435 = vst [vmem:[#allocation16] sm:$0xff] %v3433
    %3436 = vst [vmem:[#allocation16 + $0x8] sm:$0xff] %v3434
    // Predicated region
    $region78: #{tpu_custom_call.1} parent=1 // pred_check
      _
    $region79: #{tpu_custom_call.1} parent=1 // pred_check_branch
      %3438 = sbr.rel (0) target = $region81
    $region80: #{tpu_custom_call.1} parent=1 // pred_region
      %3440 = vsyncadd [#allocation4], 0
      %s3441 = sshll.u32 [#allocation16], 4
      %s3442 = int_to_ptr.vmem [resolvable:$true] %s3441
      %s3443 = sshll.u32 %s11, 4
      %s3444 = int_to_ptr.hbm [resolvable:$true] %s3443
      %3449 = dma.vmem_to_hbm [thread:$0]  %s3442, 256, %s3444, [#allocation4], 128, 128, 8
    $region81: #{tpu_custom_call.1} parent=1 // pred_fallthru
      _
    // Predicated region
    $region82: #{tpu_custom_call.1} parent=1 // pred_check
      _
    $region83: #{tpu_custom_call.1} parent=1 // pred_check_branch
      %3451 = sbr.rel (0) target = $region85
    $region84: #{tpu_custom_call.1} parent=1 // pred_region
      %3453 = dma.done [#allocation4], 256
    $region85: #{tpu_custom_call.1} parent=1 // pred_fallthru
      _
    %3454 = vsyncpa [#allocation3], 1
    %3455 = vsyncpa [#allocation6], 1
    %3456 = vsyncpa [#allocation9], 1
    %3457 = vsyncpa [#allocation12], 1
    %3458 = vsyncpa [#allocation15], 1
    %3459 = vsyncpa [#allocation4], 1

// kernel: tpu_custom_call.1
$region0: #{tpu_custom_call.1}
  #allocation0 [shape = 'u32[]', space=smem, size = 0x4, offset = 0x4, fixed_abs, tag = 'smem constant byte address 0x4 - core index']
  #allocation1 [shape = 'u32[72,128]{1,0:T(1,128)}', space=vmem, size = 0x9000, scoped, tag = 'internal scratch']
  %s0 = inlined_call_operand.hbm [shape: f32[16,3072], index: 0, kind: input, shape index: {}]
  %s1 = inlined_call_operand.hbm [shape: bf16[3072,128], index: 1, kind: input, shape index: {}]
  %s2 = inlined_call_operand.hbm [shape: f32[1,128], index: 2, kind: input, shape index: {}]
  %s3 = inlined_call_operand.hbm [shape: bf16[128,256], index: 3, kind: input, shape index: {}]
  %s4 = inlined_call_operand.hbm [shape: f32[1,256], index: 4, kind: input, shape index: {}]
  %s5 = inlined_call_operand.hbm [shape: bf16[256,512], index: 5, kind: input, shape index: {}]
  %s6 = inlined_call_operand.vmem [shape: f32[1,512], index: 6, kind: input, shape index: {}]
  %s7 = inlined_call_operand.hbm [shape: bf16[512,256], index: 7, kind: input, shape index: {}]
  %s8 = inlined_call_operand.vmem [shape: f32[1,256], index: 8, kind: input, shape index: {}]
  %s9 = inlined_call_operand.hbm [shape: bf16[256,128], index: 9, kind: input, shape index: {}]
  %s10 = inlined_call_operand.vmem [shape: f32[1,128], index: 10, kind: input, shape index: {}]
  %s11 = inlined_call_operand.hbm [shape: f32[16,128], index: 11, kind: output, shape index: {}]
  %s12 = sld [smem:[#allocation0]]
  $region86: #{tpu_custom_call.1} parent=0
    _
  %s14 = ssub.s32 1, %s12
  %s15 = scalar_select 0, %s14, %s12
  $region1: #{tpu_custom_call.1} parent=0
    #allocation2 [shape = 'u8[196608]{0}', space=vmem, size = 0x30000, scoped, tag = 'input window, operand 0, single buffered']
    #allocation3 [shape = 's32[1]{0}', space=sflag, size = 0x4, scoped, tag = 'scoped memory for tpu_custom_call.1']
    #allocation4 [shape = 's32[1]{0}', space=sflag, size = 0x4, scoped, tag = 'scoped memory for tpu_custom_call.1']
    #allocation5 [shape = 'u8[786432]{0}', space=vmem, size = 0xc0000, scoped, tag = 'input window, operand 1, single buffered']
    #allocation6 [shape = 's32[1]{0}', space=sflag, size = 0x4, scoped, tag = 'scoped memory for tpu_custom_call.1']
    #allocation7 [shape = 'u8[512]{0}', space=vmem, size = 0x400, scoped, tag = 'input window, operand 2, single buffered']
    #allocation8 [shape = 'u8[65536]{0}', space=vmem, size = 0x10000, scoped, tag = 'input window, operand 3, single buffered']
    #allocation9 [shape = 's32[1]{0}', space=sflag, size = 0x4, scoped, tag = 'scoped memory for tpu_custom_call.1']
    #allocation10 [shape = 'u8[1024]{0}', space=vmem, size = 0x400, scoped, tag = 'input window, operand 4, single buffered']
    #allocation11 [shape = 'u8[262144]{0}', space=vmem, size = 0x40000, scoped, tag = 'input window, operand 5, single buffered']
    #allocation12 [shape = 's32[1]{0}', space=sflag, size = 0x4, scoped, tag = 'scoped memory for tpu_custom_call.1']
    #allocation13 [shape = 'u8[262144]{0}', space=vmem, size = 0x40000, scoped, tag = 'input window, operand 7, single buffered']
    #allocation14 [shape = 'u8[65536]{0}', space=vmem, size = 0x10000, scoped, tag = 'input window, operand 9, single buffered']
    #allocation15 [shape = 's32[1]{0}', space=sflag, size = 0x4, scoped, tag = 'scoped memory for tpu_custom_call.1']
    #allocation16 [shape = 'u8[8192]{0}', space=vmem, size = 0x2000, scoped, tag = 'output window, operand 0, single buffered']
    %16 = vsyncpa [#allocation3], 0
    %17 = vsyncpa [#allocation6], 0
    %18 = vsyncpa [#allocation9], 0
    %19 = vsyncpa [#allocation12], 0
    %20 = vsyncpa [#allocation15], 0
    %21 = vsyncpa [#allocation4], 0
    // Predicated region
    $region2: #{tpu_custom_call.1} parent=1 // pred_check
      _
    $region3: #{tpu_custom_call.1} parent=1 // pred_check_branch
      %23 = sbr.rel (0) target = $region5
    $region4: #{tpu_custom_call.1} parent=1 // pred_region
      %25 = vsyncadd [#allocation3], 0
      %s26 = sshll.u32 %s0, 4
      %s27 = int_to_ptr.hbm [resolvable:$true] %s26
      %s28 = sshll.u32 [#allocation2], 4
      %s29 = int_to_ptr.vmem [resolvable:$true] %s28
      %34 = dma.hbm_to_vmem [thread:$0]  %s27, 6144, %s29, [#allocation3], 3072, 3072, 192
    $region5: #{tpu_custom_call.1} parent=1 // pred_fallthru
      _
    // Predicated region
    $region6: #{tpu_custom_call.1} parent=1 // pred_check
      _
    $region7: #{tpu_custom_call.1} parent=1 // pred_check_branch
      %36 = sbr.rel (0) target = $region9
    $region8: #{tpu_custom_call.1} parent=1 // pred_region
      %38 = vsyncadd [#allocation6], 0
      %s39 = sshll.u32 %s1, 4
      %s40 = int_to_ptr.hbm [resolvable:$true] %s39
      %s41 = sshll.u32 [#allocation5], 4
      %s42 = int_to_ptr.vmem [resolvable:$true] %s41
      %47 = dma.hbm_to_vmem [thread:$0]  %s40, 24576, %s42, [#allocation6], 64, 64, 4
    $region9: #{tpu_custom_call.1} parent=1 // pred_fallthru
      _
    // Predicated region
    $region10: #{tpu_custom_call.1} parent=1 // pred_check
      _
    $region11: #{tpu_custom_call.1} parent=1 // pred_check_branch
      %49 = sbr.rel (0) target = $region13
    $region12: #{tpu_custom_call.1} parent=1 // pred_region
      %51 = vsyncadd [#allocation6], 0
      %s53 = sshll.u32 %s2, 4
      %s54 = int_to_ptr.hbm [resolvable:$true] %s53
      %s55 = sshll.u32 [#allocation7], 4
      %s56 = int_to_ptr.vmem [resolvable:$true] %s55
      %58 = dma.hbm_to_vmem [thread:$0]  %s54, 16, %s56, [#allocation6]
    $region13: #{tpu_custom_call.1} parent=1 // pred_fallthru
      _
    // Predicated region
    $region14: #{tpu_custom_call.1} parent=1 // pred_check
      _
    $region15: #{tpu_custom_call.1} parent=1 // pred_check_branch
      %60 = sbr.rel (0) target = $region17
    $region16: #{tpu_custom_call.1} parent=1 // pred_region
      %62 = vsyncadd [#allocation9], 0
      %s63 = sshll.u32 %s3, 4
      %s64 = int_to_ptr.hbm [resolvable:$true] %s63
      %s65 = sshll.u32 [#allocation8], 4
      %s66 = int_to_ptr.vmem [resolvable:$true] %s65
      %71 = dma.hbm_to_vmem [thread:$0]  %s64, 2048, %s66, [#allocation9], 128, 128, 8
    $region17: #{tpu_custom_call.1} parent=1 // pred_fallthru
      _
    // Predicated region
    $region18: #{tpu_custom_call.1} parent=1 // pred_check
      _
    $region19: #{tpu_custom_call.1} parent=1 // pred_check_branch
      %73 = sbr.rel (0) target = $region21
    $region20: #{tpu_custom_call.1} parent=1 // pred_region
      %75 = vsyncadd [#allocation9], 0
      %s77 = sshll.u32 %s4, 4
      %s78 = int_to_ptr.hbm [resolvable:$true] %s77
      %s79 = sshll.u32 [#allocation10], 4
      %s80 = int_to_ptr.vmem [resolvable:$true] %s79
      %82 = dma.hbm_to_vmem [thread:$0]  %s78, 32, %s80, [#allocation9]
    $region21: #{tpu_custom_call.1} parent=1 // pred_fallthru
      _
    // Predicated region
    $region22: #{tpu_custom_call.1} parent=1 // pred_check
      _
    $region23: #{tpu_custom_call.1} parent=1 // pred_check_branch
      %84 = sbr.rel (0) target = $region25
    $region24: #{tpu_custom_call.1} parent=1 // pred_region
      %86 = vsyncadd [#allocation12], 0
      %s87 = sshll.u32 %s5, 4
      %s88 = int_to_ptr.hbm [resolvable:$true] %s87
      %s89 = sshll.u32 [#allocation11], 4
      %s90 = int_to_ptr.vmem [resolvable:$true] %s89
      %95 = dma.hbm_to_vmem [thread:$0]  %s88, 8192, %s90, [#allocation12], 256, 256, 16
    $region25: #{tpu_custom_call.1} parent=1 // pred_fallthru
      _
    // Predicated region
    $region26: #{tpu_custom_call.1} parent=1 // pred_check
      _
    $region27: #{tpu_custom_call.1} parent=1 // pred_check_branch
      %97 = sbr.rel (0) target = $region29
    $region28: #{tpu_custom_call.1} parent=1 // pred_region
      _
    $region29: #{tpu_custom_call.1} parent=1 // pred_fallthru
      _
    // Predicated region
    $region30: #{tpu_custom_call.1} parent=1 // pred_check
      _
    $region31: #{tpu_custom_call.1} parent=1 // pred_check_branch
      %99 = sbr.rel (0) target = $region33
    $region32: #{tpu_custom_call.1} parent=1 // pred_region
      %101 = vsyncadd [#allocation12], 0
      %s102 = sshll.u32 %s7, 4
      %s103 = int_to_ptr.hbm [resolvable:$true] %s102
      %s104 = sshll.u32 [#allocation13], 4
      %s105 = int_to_ptr.vmem [resolvable:$true] %s104
      %110 = dma.hbm_to_vmem [thread:$0]  %s103, 8192, %s105, [#allocation12], 128, 128, 8
    $region33: #{tpu_custom_call.1} parent=1 // pred_fallthru
      _
    // Predicated region
    $region34: #{tpu_custom_call.1} parent=1 // pred_check
      _
    $region35: #{tpu_custom_call.1} parent=1 // pred_check_branch
      %112 = sbr.rel (0) target = $region37
    $region36: #{tpu_custom_call.1} parent=1 // pred_region
      _
    $region37: #{tpu_custom_call.1} parent=1 // pred_fallthru
      _
    // Predicated region
    $region38: #{tpu_custom_call.1} parent=1 // pred_check
      _
    $region39: #{tpu_custom_call.1} parent=1 // pred_check_branch
      %114 = sbr.rel (0) target = $region41
    $region40: #{tpu_custom_call.1} parent=1 // pred_region
      %116 = vsyncadd [#allocation15], 0
      %s117 = sshll.u32 %s9, 4
      %s118 = int_to_ptr.hbm [resolvable:$true] %s117
      %s119 = sshll.u32 [#allocation14], 4
      %s120 = int_to_ptr.vmem [resolvable:$true] %s119
      %125 = dma.hbm_to_vmem [thread:$0]  %s118, 2048, %s120, [#allocation15], 64, 64, 4
    $region41: #{tpu_custom_call.1} parent=1 // pred_fallthru
      _
    // Predicated region
    $region42: #{tpu_custom_call.1} parent=1 // pred_check
      _
    $region43: #{tpu_custom_call.1} parent=1 // pred_check_branch
      %127 = sbr.rel (0) target = $region45
    $region44: #{tpu_custom_call.1} parent=1 // pred_region
      _
    $region45: #{tpu_custom_call.1} parent=1 // pred_fallthru
      _
    // Predicated region
    $region46: #{tpu_custom_call.1} parent=1 // pred_check
      _
    $region47: #{tpu_custom_call.1} parent=1 // pred_check_branch
      %129 = sbr.rel (0) target = $region49
    $region48: #{tpu_custom_call.1} parent=1 // pred_region
      %131 = dma.done [#allocation3], 6144
    $region49: #{tpu_custom_call.1} parent=1 // pred_fallthru
      _
    // Predicated region
    $region50: #{tpu_custom_call.1} parent=1 // pred_check
      _
    $region51: #{tpu_custom_call.1} parent=1 // pred_check_branch
      %133 = sbr.rel (0) target = $region53
    $region52: #{tpu_custom_call.1} parent=1 // pred_region
      %135 = dma.done [#allocation6], 24576
    $region53: #{tpu_custom_call.1} parent=1 // pred_fallthru
      _
    // Predicated region
    $region54: #{tpu_custom_call.1} parent=1 // pred_check
      _
    $region55: #{tpu_custom_call.1} parent=1 // pred_check_branch
      %137 = sbr.rel (0) target = $region57
    $region56: #{tpu_custom_call.1} parent=1 // pred_region
      %139 = dma.done [#allocation6], 16
    $region57: #{tpu_custom_call.1} parent=1 // pred_fallthru
      _
    // Predicated region
    $region58: #{tpu_custom_call.1} parent=1 // pred_check
      _
    $region59: #{tpu_custom_call.1} parent=1 // pred_check_branch
      %141 = sbr.rel (0) target = $region61
    $region60: #{tpu_custom_call.1} parent=1 // pred_region
      %143 = dma.done [#allocation9], 2048
    $region61: #{tpu_custom_call.1} parent=1 // pred_fallthru
      _
    // Predicated region
    $region62: #{tpu_custom_call.1} parent=1 // pred_check
      _
    $region63: #{tpu_custom_call.1} parent=1 // pred_check_branch
      %145 = sbr.rel (0) target = $region65
    $region64: #{tpu_custom_call.1} parent=1 // pred_region
      %147 = dma.done [#allocation9], 32
    $region65: #{tpu_custom_call.1} parent=1 // pred_fallthru
      _
    // Predicated region
    $region66: #{tpu_custom_call.1} parent=1 // pred_check
      _
    $region67: #{tpu_custom_call.1} parent=1 // pred_check_branch
      %149 = sbr.rel (0) target = $region69
    $region68: #{tpu_custom_call.1} parent=1 // pred_region
      %151 = dma.done [#allocation12], 8192
    $region69: #{tpu_custom_call.1} parent=1 // pred_fallthru
      _
    // Predicated region
    $region70: #{tpu_custom_call.1} parent=1 // pred_check
      _
    $region71: #{tpu_custom_call.1} parent=1 // pred_check_branch
      %153 = sbr.rel (0) target = $region73
    $region72: #{tpu_custom_call.1} parent=1 // pred_region
      %155 = dma.done [#allocation12], 8192
    $region73: #{tpu_custom_call.1} parent=1 // pred_fallthru
      _
    // Predicated region
    $region74: #{tpu_custom_call.1} parent=1 // pred_check
      _
    $region75: #{tpu_custom_call.1} parent=1 // pred_check_branch
      %157 = sbr.rel (0) target = $region77
    $region76: #{tpu_custom_call.1} parent=1 // pred_region
      %159 = dma.done [#allocation15], 2048
    $region77: #{tpu_custom_call.1} parent=1 // pred_fallthru
      _
    %v160 = vld [vmem:[#allocation2] sm:$0xff]
    %v161 = vld [vmem:[#allocation2 + $0x8] sm:$0xff]
    %v162 = vld [vmem:[#allocation2 + $0x10] sm:$0xff]
    %v163 = vld [vmem:[#allocation2 + $0x18] sm:$0xff]
    %v164 = vld [vmem:[#allocation2 + $0x20] sm:$0xff]
    %v165 = vld [vmem:[#allocation2 + $0x28] sm:$0xff]
    %v166 = vld [vmem:[#allocation2 + $0x30] sm:$0xff]
    %v167 = vld [vmem:[#allocation2 + $0x38] sm:$0xff]
    %v168 = vld [vmem:[#allocation2 + $0x40] sm:$0xff]
    %v169 = vld [vmem:[#allocation2 + $0x48] sm:$0xff]
    %v170 = vld [vmem:[#allocation2 + $0x50] sm:$0xff]
    %v171 = vld [vmem:[#allocation2 + $0x58] sm:$0xff]
    %v172 = vld [vmem:[#allocation2 + $0x60] sm:$0xff]
    %v173 = vld [vmem:[#allocation2 + $0x68] sm:$0xff]
    %v174 = vld [vmem:[#allocation2 + $0x70] sm:$0xff]
    %v175 = vld [vmem:[#allocation2 + $0x78] sm:$0xff]
    %v176 = vld [vmem:[#allocation2 + $0x80] sm:$0xff]
    %v177 = vld [vmem:[#allocation2 + $0x88] sm:$0xff]
    %v178 = vld [vmem:[#allocation2 + $0x90] sm:$0xff]
    %v179 = vld [vmem:[#allocation2 + $0x98] sm:$0xff]
    %v180 = vld [vmem:[#allocation2 + $0xa0] sm:$0xff]
    %v181 = vld [vmem:[#allocation2 + $0xa8] sm:$0xff]
    %v182 = vld [vmem:[#allocation2 + $0xb0] sm:$0xff]
    %v183 = vld [vmem:[#allocation2 + $0xb8] sm:$0xff]
    %v184 = vld [vmem:[#allocation2 + $0xc0] sm:$0xff]
    %v185 = vld [vmem:[#allocation2 + $0xc8] sm:$0xff]
    %v186 = vld [vmem:[#allocation2 + $0xd0] sm:$0xff]
    %v187 = vld [vmem:[#allocation2 + $0xd8] sm:$0xff]
    %v188 = vld [vmem:[#allocation2 + $0xe0] sm:$0xff]
    %v189 = vld [vmem:[#allocation2 + $0xe8] sm:$0xff]
    %v190 = vld [vmem:[#allocation2 + $0xf0] sm:$0xff]
    %v191 = vld [vmem:[#allocation2 + $0xf8] sm:$0xff]
    %v192 = vld [vmem:[#allocation2 + $0x100] sm:$0xff]
    %v193 = vld [vmem:[#allocation2 + $0x108] sm:$0xff]
    %v194 = vld [vmem:[#allocation2 + $0x110] sm:$0xff]
    %v195 = vld [vmem:[#allocation2 + $0x118] sm:$0xff]
    %v196 = vld [vmem:[#allocation2 + $0x120] sm:$0xff]
    %v197 = vld [vmem:[#allocation2 + $0x128] sm:$0xff]
    %v198 = vld [vmem:[#allocation2 + $0x130] sm:$0xff]
    %v199 = vld [vmem:[#allocation2 + $0x138] sm:$0xff]
    %v200 = vld [vmem:[#allocation2 + $0x140] sm:$0xff]
    %v201 = vld [vmem:[#allocation2 + $0x148] sm:$0xff]
    %v202 = vld [vmem:[#allocation2 + $0x150] sm:$0xff]
    %v203 = vld [vmem:[#allocation2 + $0x158] sm:$0xff]
    %v204 = vld [vmem:[#allocation2 + $0x160] sm:$0xff]
    %v205 = vld [vmem:[#allocation2 + $0x168] sm:$0xff]
    %v206 = vld [vmem:[#allocation2 + $0x170] sm:$0xff]
    %v207 = vld [vmem:[#allocation2 + $0x178] sm:$0xff]
    %v208 = vpack.c.bf16 %v184, %v160
    %v209 = vpack.c.bf16 %v185, %v161
    %v210 = vpack.c.bf16 %v186, %v162
    %v211 = vpack.c.bf16 %v187, %v163
    %v212 = vpack.c.bf16 %v188, %v164
    %v213 = vpack.c.bf16 %v189, %v165
    %v214 = vpack.c.bf16 %v190, %v166
    %v215 = vpack.c.bf16 %v191, %v167
    %v216 = vpack.c.bf16 %v192, %v168
    %v217 = vpack.c.bf16 %v193, %v169
    %v218 = vpack.c.bf16 %v194, %v170
    %v219 = vpack.c.bf16 %v195, %v171
    %v220 = vpack.c.bf16 %v196, %v172
    %v221 = vpack.c.bf16 %v197, %v173
    %v222 = vpack.c.bf16 %v198, %v174
    %v223 = vpack.c.bf16 %v199, %v175
    %v224 = vpack.c.bf16 %v200, %v176
    %v225 = vpack.c.bf16 %v201, %v177
    %v226 = vpack.c.bf16 %v202, %v178
    %v227 = vpack.c.bf16 %v203, %v179
    %v228 = vpack.c.bf16 %v204, %v180
    %v229 = vpack.c.bf16 %v205, %v181
    %v230 = vpack.c.bf16 %v206, %v182
    %v231 = vpack.c.bf16 %v207, %v183
    %v232 = vld [vmem:[#allocation5] sm:$0xf]
    %v233 = vld [vmem:[#allocation5 + $0x4] sm:$0xf]
    %v234 = vld [vmem:[#allocation5 + $0x8] sm:$0xf]
    %v235 = vld [vmem:[#allocation5 + $0xc] sm:$0xf]
    %v236 = vld [vmem:[#allocation5 + $0x10] sm:$0xf]
    %v237 = vld [vmem:[#allocation5 + $0x14] sm:$0xf]
    %v238 = vld [vmem:[#allocation5 + $0x18] sm:$0xf]
    %v239 = vld [vmem:[#allocation5 + $0x1c] sm:$0xf]
    %v240 = vld [vmem:[#allocation5 + $0x20] sm:$0xf]
    %v241 = vld [vmem:[#allocation5 + $0x24] sm:$0xf]
    %v242 = vld [vmem:[#allocation5 + $0x28] sm:$0xf]
    %v243 = vld [vmem:[#allocation5 + $0x2c] sm:$0xf]
    %v244 = vld [vmem:[#allocation5 + $0x30] sm:$0xf]
    %v245 = vld [vmem:[#allocation5 + $0x34] sm:$0xf]
    %v246 = vld [vmem:[#allocation5 + $0x38] sm:$0xf]
    %v247 = vld [vmem:[#allocation5 + $0x3c] sm:$0xf]
    %v248 = vld [vmem:[#allocation5 + $0x40] sm:$0xf]
    %v249 = vld [vmem:[#allocation5 + $0x44] sm:$0xf]
    %v250 = vld [vmem:[#allocation5 + $0x48] sm:$0xf]
    %v251 = vld [vmem:[#allocation5 + $0x4c] sm:$0xf]
    %v252 = vld [vmem:[#allocation5 + $0x50] sm:$0xf]
    %v253 = vld [vmem:[#allocation5 + $0x54] sm:$0xf]
    %v254 = vld [vmem:[#allocation5 + $0x58] sm:$0xf]
    %v255 = vld [vmem:[#allocation5 + $0x5c] sm:$0xf]
    %v256 = vld [vmem:[#allocation5 + $0x60] sm:$0xf]
    %v257 = vld [vmem:[#allocation5 + $0x64] sm:$0xf]
    %v258 = vld [vmem:[#allocation5 + $0x68] sm:$0xf]
    %v259 = vld [vmem:[#allocation5 + $0x6c] sm:$0xf]
    %v260 = vld [vmem:[#allocation5 + $0x70] sm:$0xf]
    %v261 = vld [vmem:[#allocation5 + $0x74] sm:$0xf]
    %v262 = vld [vmem:[#allocation5 + $0x78] sm:$0xf]
    %v263 = vld [vmem:[#allocation5 + $0x7c] sm:$0xf]
    %v264 = vld [vmem:[#allocation5 + $0x80] sm:$0xf]
    %v265 = vld [vmem:[#allocation5 + $0x84] sm:$0xf]
    %v266 = vld [vmem:[#allocation5 + $0x88] sm:$0xf]
    %v267 = vld [vmem:[#allocation5 + $0x8c] sm:$0xf]
    %v268 = vld [vmem:[#allocation5 + $0x90] sm:$0xf]
    %v269 = vld [vmem:[#allocation5 + $0x94] sm:$0xf]
    %v270 = vld [vmem:[#allocation5 + $0x98] sm:$0xf]
    %v271 = vld [vmem:[#allocation5 + $0x9c] sm:$0xf]
    %v272 = vld [vmem:[#allocation5 + $0xa0] sm:$0xf]
    %v273 = vld [vmem:[#allocation5 + $0xa4] sm:$0xf]
    %v274 = vld [vmem:[#allocation5 + $0xa8] sm:$0xf]
    %v275 = vld [vmem:[#allocation5 + $0xac] sm:$0xf]
    %v276 = vld [vmem:[#allocation5 + $0xb0] sm:$0xf]
    %v277 = vld [vmem:[#allocation5 + $0xb4] sm:$0xf]
    %v278 = vld [vmem:[#allocation5 + $0xb8] sm:$0xf]
    %v279 = vld [vmem:[#allocation5 + $0xbc] sm:$0xf]
    %v280 = vld [vmem:[#allocation5 + $0xc0] sm:$0xf]
    %v281 = vld [vmem:[#allocation5 + $0xc4] sm:$0xf]
    %v282 = vld [vmem:[#allocation5 + $0xc8] sm:$0xf]
    %v283 = vld [vmem:[#allocation5 + $0xcc] sm:$0xf]
    %v284 = vld [vmem:[#allocation5 + $0xd0] sm:$0xf]
    %v285 = vld [vmem:[#allocation5 + $0xd4] sm:$0xf]
    %v286 = vld [vmem:[#allocation5 + $0xd8] sm:$0xf]
    %v287 = vld [vmem:[#allocation5 + $0xdc] sm:$0xf]
    %v288 = vld [vmem:[#allocation5 + $0xe0] sm:$0xf]
    %v289 = vld [vmem:[#allocation5 + $0xe4] sm:$0xf]
    %v290 = vld [vmem:[#allocation5 + $0xe8] sm:$0xf]
    %v291 = vld [vmem:[#allocation5 + $0xec] sm:$0xf]
    %v292 = vld [vmem:[#allocation5 + $0xf0] sm:$0xf]
    %v293 = vld [vmem:[#allocation5 + $0xf4] sm:$0xf]
    %v294 = vld [vmem:[#allocation5 + $0xf8] sm:$0xf]
    %v295 = vld [vmem:[#allocation5 + $0xfc] sm:$0xf]
    %v296 = vld [vmem:[#allocation5 + $0x100] sm:$0xf]
    %v297 = vld [vmem:[#allocation5 + $0x104] sm:$0xf]
    %v298 = vld [vmem:[#allocation5 + $0x108] sm:$0xf]
    %v299 = vld [vmem:[#allocation5 + $0x10c] sm:$0xf]
    %v300 = vld [vmem:[#allocation5 + $0x110] sm:$0xf]
    %v301 = vld [vmem:[#allocation5 + $0x114] sm:$0xf]
    %v302 = vld [vmem:[#allocation5 + $0x118] sm:$0xf]
    %v303 = vld [vmem:[#allocation5 + $0x11c] sm:$0xf]
    %v304 = vld [vmem:[#allocation5 + $0x120] sm:$0xf]
    %v305 = vld [vmem:[#allocation5 + $0x124] sm:$0xf]
    %v306 = vld [vmem:[#allocation5 + $0x128] sm:$0xf]
    %v307 = vld [vmem:[#allocation5 + $0x12c] sm:$0xf]
    %v308 = vld [vmem:[#allocation5 + $0x130] sm:$0xf]
    %v309 = vld [vmem:[#allocation5 + $0x134] sm:$0xf]
    %v310 = vld [vmem:[#allocation5 + $0x138] sm:$0xf]
    %v311 = vld [vmem:[#allocation5 + $0x13c] sm:$0xf]
    %v312 = vld [vmem:[#allocation5 + $0x140] sm:$0xf]
    %v313 = vld [vmem:[#allocation5 + $0x144] sm:$0xf]
    %v314 = vld [vmem:[#allocation5 + $0x148] sm:$0xf]
    %v315 = vld [vmem:[#allocation5 + $0x14c] sm:$0xf]
    %v316 = vld [vmem:[#allocation5 + $0x150] sm:$0xf]
    %v317 = vld [vmem:[#allocation5 + $0x154] sm:$0xf]
    %v318 = vld [vmem:[#allocation5 + $0x158] sm:$0xf]
    %v319 = vld [vmem:[#allocation5 + $0x15c] sm:$0xf]
    %v320 = vld [vmem:[#allocation5 + $0x160] sm:$0xf]
    %v321 = vld [vmem:[#allocation5 + $0x164] sm:$0xf]
    %v322 = vld [vmem:[#allocation5 + $0x168] sm:$0xf]
    %v323 = vld [vmem:[#allocation5 + $0x16c] sm:$0xf]
    %v324 = vld [vmem:[#allocation5 + $0x170] sm:$0xf]
    %v325 = vld [vmem:[#allocation5 + $0x174] sm:$0xf]
    %v326 = vld [vmem:[#allocation5 + $0x178] sm:$0xf]
    %v327 = vld [vmem:[#allocation5 + $0x17c] sm:$0xf]
    %v328 = vld [vmem:[#allocation5 + $0x180] sm:$0xf]
    %v329 = vld [vmem:[#allocation5 + $0x184] sm:$0xf]
    %v330 = vld [vmem:[#allocation5 + $0x188] sm:$0xf]
    %v331 = vld [vmem:[#allocation5 + $0x18c] sm:$0xf]
    %v332 = vld [vmem:[#allocation5 + $0x190] sm:$0xf]
    %v333 = vld [vmem:[#allocation5 + $0x194] sm:$0xf]
    %v334 = vld [vmem:[#allocation5 + $0x198] sm:$0xf]
    %v335 = vld [vmem:[#allocation5 + $0x19c] sm:$0xf]
    %v336 = vld [vmem:[#allocation5 + $0x1a0] sm:$0xf]
    %v337 = vld [vmem:[#allocation5 + $0x1a4] sm:$0xf]
    %v338 = vld [vmem:[#allocation5 + $0x1a8] sm:$0xf]
    %v339 = vld [vmem:[#allocation5 + $0x1ac] sm:$0xf]
    %v340 = vld [vmem:[#allocation5 + $0x1b0] sm:$0xf]
    %v341 = vld [vmem:[#allocation5 + $0x1b4] sm:$0xf]
    %v342 = vld [vmem:[#allocation5 + $0x1b8] sm:$0xf]
    %v343 = vld [vmem:[#allocation5 + $0x1bc] sm:$0xf]
    %v344 = vld [vmem:[#allocation5 + $0x1c0] sm:$0xf]
    %v345 = vld [vmem:[#allocation5 + $0x1c4] sm:$0xf]
    %v346 = vld [vmem:[#allocation5 + $0x1c8] sm:$0xf]
    %v347 = vld [vmem:[#allocation5 + $0x1cc] sm:$0xf]
    %v348 = vld [vmem:[#allocation5 + $0x1d0] sm:$0xf]
    %v349 = vld [vmem:[#allocation5 + $0x1d4] sm:$0xf]
    %v350 = vld [vmem:[#allocation5 + $0x1d8] sm:$0xf]
    %v351 = vld [vmem:[#allocation5 + $0x1dc] sm:$0xf]
    %v352 = vld [vmem:[#allocation5 + $0x1e0] sm:$0xf]
    %v353 = vld [vmem:[#allocation5 + $0x1e4] sm:$0xf]
    %v354 = vld [vmem:[#allocation5 + $0x1e8] sm:$0xf]
    %v355 = vld [vmem:[#allocation5 + $0x1ec] sm:$0xf]
    %v356 = vld [vmem:[#allocation5 + $0x1f0] sm:$0xf]
    %v357 = vld [vmem:[#allocation5 + $0x1f4] sm:$0xf]
    %v358 = vld [vmem:[#allocation5 + $0x1f8] sm:$0xf]
    %v359 = vld [vmem:[#allocation5 + $0x1fc] sm:$0xf]
    %v360 = vld [vmem:[#allocation5 + $0x200] sm:$0xf]
    %v361 = vld [vmem:[#allocation5 + $0x204] sm:$0xf]
    %v362 = vld [vmem:[#allocation5 + $0x208] sm:$0xf]
    %v363 = vld [vmem:[#allocation5 + $0x20c] sm:$0xf]
    %v364 = vld [vmem:[#allocation5 + $0x210] sm:$0xf]
    %v365 = vld [vmem:[#allocation5 + $0x214] sm:$0xf]
    %v366 = vld [vmem:[#allocation5 + $0x218] sm:$0xf]
    %v367 = vld [vmem:[#allocation5 + $0x21c] sm:$0xf]
    %v368 = vld [vmem:[#allocation5 + $0x220] sm:$0xf]
    %v369 = vld [vmem:[#allocation5 + $0x224] sm:$0xf]
    %v370 = vld [vmem:[#allocation5 + $0x228] sm:$0xf]
    %v371 = vld [vmem:[#allocation5 + $0x22c] sm:$0xf]
    %v372 = vld [vmem:[#allocation5 + $0x230] sm:$0xf]
    %v373 = vld [vmem:[#allocation5 + $0x234] sm:$0xf]
    %v374 = vld [vmem:[#allocation5 + $0x238] sm:$0xf]
    %v375 = vld [vmem:[#allocation5 + $0x23c] sm:$0xf]
    %v376 = vld [vmem:[#allocation5 + $0x240] sm:$0xf]
    %v377 = vld [vmem:[#allocation5 + $0x244] sm:$0xf]
    %v378 = vld [vmem:[#allocation5 + $0x248] sm:$0xf]
    %v379 = vld [vmem:[#allocation5 + $0x24c] sm:$0xf]
    %v380 = vld [vmem:[#allocation5 + $0x250] sm:$0xf]
    %v381 = vld [vmem:[#allocation5 + $0x254] sm:$0xf]
    %v382 = vld [vmem:[#allocation5 + $0x258] sm:$0xf]
    %v383 = vld [vmem:[#allocation5 + $0x25c] sm:$0xf]
    %v384 = vld [vmem:[#allocation5 + $0x260] sm:$0xf]
    %v385 = vld [vmem:[#allocation5 + $0x264] sm:$0xf]
    %v386 = vld [vmem:[#allocation5 + $0x268] sm:$0xf]
    %v387 = vld [vmem:[#allocation5 + $0x26c] sm:$0xf]
    %v388 = vld [vmem:[#allocation5 + $0x270] sm:$0xf]
    %v389 = vld [vmem:[#allocation5 + $0x274] sm:$0xf]
    %v390 = vld [vmem:[#allocation5 + $0x278] sm:$0xf]
    %v391 = vld [vmem:[#allocation5 + $0x27c] sm:$0xf]
    %v392 = vld [vmem:[#allocation5 + $0x280] sm:$0xf]
    %v393 = vld [vmem:[#allocation5 + $0x284] sm:$0xf]
    %v394 = vld [vmem:[#allocation5 + $0x288] sm:$0xf]
    %v395 = vld [vmem:[#allocation5 + $0x28c] sm:$0xf]
    %v396 = vld [vmem:[#allocation5 + $0x290] sm:$0xf]
    %v397 = vld [vmem:[#allocation5 + $0x294] sm:$0xf]
    %v398 = vld [vmem:[#allocation5 + $0x298] sm:$0xf]
    %v399 = vld [vmem:[#allocation5 + $0x29c] sm:$0xf]
    %v400 = vld [vmem:[#allocation5 + $0x2a0] sm:$0xf]
    %v401 = vld [vmem:[#allocation5 + $0x2a4] sm:$0xf]
    %v402 = vld [vmem:[#allocation5 + $0x2a8] sm:$0xf]
    %v403 = vld [vmem:[#allocation5 + $0x2ac] sm:$0xf]
    %v404 = vld [vmem:[#allocation5 + $0x2b0] sm:$0xf]
    %v405 = vld [vmem:[#allocation5 + $0x2b4] sm:$0xf]
    %v406 = vld [vmem:[#allocation5 + $0x2b8] sm:$0xf]
    %v407 = vld [vmem:[#allocation5 + $0x2bc] sm:$0xf]
    %v408 = vld [vmem:[#allocation5 + $0x2c0] sm:$0xf]
    %v409 = vld [vmem:[#allocation5 + $0x2c4] sm:$0xf]
    %v410 = vld [vmem:[#allocation5 + $0x2c8] sm:$0xf]
    %v411 = vld [vmem:[#allocation5 + $0x2cc] sm:$0xf]
    %v412 = vld [vmem:[#allocation5 + $0x2d0] sm:$0xf]
    %v413 = vld [vmem:[#allocation5 + $0x2d4] sm:$0xf]
    %v414 = vld [vmem:[#allocation5 + $0x2d8] sm:$0xf]
    %v415 = vld [vmem:[#allocation5 + $0x2dc] sm:$0xf]
    %v416 = vld [vmem:[#allocation5 + $0x2e0] sm:$0xf]
    %v417 = vld [vmem:[#allocation5 + $0x2e4] sm:$0xf]
    %v418 = vld [vmem:[#allocation5 + $0x2e8] sm:$0xf]
    %v419 = vld [vmem:[#allocation5 + $0x2ec] sm:$0xf]
    %v420 = vld [vmem:[#allocation5 + $0x2f0] sm:$0xf]
    %v421 = vld [vmem:[#allocation5 + $0x2f4] sm:$0xf]
    %v422 = vld [vmem:[#allocation5 + $0x2f8] sm:$0xf]
    %v423 = vld [vmem:[#allocation5 + $0x2fc] sm:$0xf]
    %v424 = vld [vmem:[#allocation5 + $0x300] sm:$0xf]
    %v425 = vld [vmem:[#allocation5 + $0x304] sm:$0xf]
    %v426 = vld [vmem:[#allocation5 + $0x308] sm:$0xf]
    %v427 = vld [vmem:[#allocation5 + $0x30c] sm:$0xf]
    %v428 = vld [vmem:[#allocation5 + $0x310] sm:$0xf]
    %v429 = vld [vmem:[#allocation5 + $0x314] sm:$0xf]
    %v430 = vld [vmem:[#allocation5 + $0x318] sm:$0xf]
    %v431 = vld [vmem:[#allocation5 + $0x31c] sm:$0xf]
    %v432 = vld [vmem:[#allocation5 + $0x320] sm:$0xf]
    %v433 = vld [vmem:[#allocation5 + $0x324] sm:$0xf]
    %v434 = vld [vmem:[#allocation5 + $0x328] sm:$0xf]
    %v435 = vld [vmem:[#allocation5 + $0x32c] sm:$0xf]
    %v436 = vld [vmem:[#allocation5 + $0x330] sm:$0xf]
    %v437 = vld [vmem:[#allocation5 + $0x334] sm:$0xf]
    %v438 = vld [vmem:[#allocation5 + $0x338] sm:$0xf]
    %v439 = vld [vmem:[#allocation5 + $0x33c] sm:$0xf]
    %v440 = vld [vmem:[#allocation5 + $0x340] sm:$0xf]
    %v441 = vld [vmem:[#allocation5 + $0x344] sm:$0xf]
    %v442 = vld [vmem:[#allocation5 + $0x348] sm:$0xf]
    %v443 = vld [vmem:[#allocation5 + $0x34c] sm:$0xf]
    %v444 = vld [vmem:[#allocation5 + $0x350] sm:$0xf]
    %v445 = vld [vmem:[#allocation5 + $0x354] sm:$0xf]
    %v446 = vld [vmem:[#allocation5 + $0x358] sm:$0xf]
    %v447 = vld [vmem:[#allocation5 + $0x35c] sm:$0xf]
    %v448 = vld [vmem:[#allocation5 + $0x360] sm:$0xf]
    %v449 = vld [vmem:[#allocation5 + $0x364] sm:$0xf]
    %v450 = vld [vmem:[#allocation5 + $0x368] sm:$0xf]
    %v451 = vld [vmem:[#allocation5 + $0x36c] sm:$0xf]
    %v452 = vld [vmem:[#allocation5 + $0x370] sm:$0xf]
    %v453 = vld [vmem:[#allocation5 + $0x374] sm:$0xf]
    %v454 = vld [vmem:[#allocation5 + $0x378] sm:$0xf]
    %v455 = vld [vmem:[#allocation5 + $0x37c] sm:$0xf]
    %v456 = vld [vmem:[#allocation5 + $0x380] sm:$0xf]
    %v457 = vld [vmem:[#allocation5 + $0x384] sm:$0xf]
    %v458 = vld [vmem:[#allocation5 + $0x388] sm:$0xf]
    %v459 = vld [vmem:[#allocation5 + $0x38c] sm:$0xf]
    %v460 = vld [vmem:[#allocation5 + $0x390] sm:$0xf]
    %v461 = vld [vmem:[#allocation5 + $0x394] sm:$0xf]
    %v462 = vld [vmem:[#allocation5 + $0x398] sm:$0xf]
    %v463 = vld [vmem:[#allocation5 + $0x39c] sm:$0xf]
    %v464 = vld [vmem:[#allocation5 + $0x3a0] sm:$0xf]
    %v465 = vld [vmem:[#allocation5 + $0x3a4] sm:$0xf]
    %v466 = vld [vmem:[#allocation5 + $0x3a8] sm:$0xf]
    %v467 = vld [vmem:[#allocation5 + $0x3ac] sm:$0xf]
    %v468 = vld [vmem:[#allocation5 + $0x3b0] sm:$0xf]
    %v469 = vld [vmem:[#allocation5 + $0x3b4] sm:$0xf]
    %v470 = vld [vmem:[#allocation5 + $0x3b8] sm:$0xf]
    %v471 = vld [vmem:[#allocation5 + $0x3bc] sm:$0xf]
    %v472 = vld [vmem:[#allocation5 + $0x3c0] sm:$0xf]
    %v473 = vld [vmem:[#allocation5 + $0x3c4] sm:$0xf]
    %v474 = vld [vmem:[#allocation5 + $0x3c8] sm:$0xf]
    %v475 = vld [vmem:[#allocation5 + $0x3cc] sm:$0xf]
    %v476 = vld [vmem:[#allocation5 + $0x3d0] sm:$0xf]
    %v477 = vld [vmem:[#allocation5 + $0x3d4] sm:$0xf]
    %v478 = vld [vmem:[#allocation5 + $0x3d8] sm:$0xf]
    %v479 = vld [vmem:[#allocation5 + $0x3dc] sm:$0xf]
    %v480 = vld [vmem:[#allocation5 + $0x3e0] sm:$0xf]
    %v481 = vld [vmem:[#allocation5 + $0x3e4] sm:$0xf]
    %v482 = vld [vmem:[#allocation5 + $0x3e8] sm:$0xf]
    %v483 = vld [vmem:[#allocation5 + $0x3ec] sm:$0xf]
    %v484 = vld [vmem:[#allocation5 + $0x3f0] sm:$0xf]
    %v485 = vld [vmem:[#allocation5 + $0x3f4] sm:$0xf]
    %v486 = vld [vmem:[#allocation5 + $0x3f8] sm:$0xf]
    %v487 = vld [vmem:[#allocation5 + $0x3fc] sm:$0xf]
    %v488 = vld [vmem:[#allocation5 + $0x400] sm:$0xf]
    %v489 = vld [vmem:[#allocation5 + $0x404] sm:$0xf]
    %v490 = vld [vmem:[#allocation5 + $0x408] sm:$0xf]
    %v491 = vld [vmem:[#allocation5 + $0x40c] sm:$0xf]
    %v492 = vld [vmem:[#allocation5 + $0x410] sm:$0xf]
    %v493 = vld [vmem:[#allocation5 + $0x414] sm:$0xf]
    %v494 = vld [vmem:[#allocation5 + $0x418] sm:$0xf]
    %v495 = vld [vmem:[#allocation5 + $0x41c] sm:$0xf]
    %v496 = vld [vmem:[#allocation5 + $0x420] sm:$0xf]
    %v497 = vld [vmem:[#allocation5 + $0x424] sm:$0xf]
    %v498 = vld [vmem:[#allocation5 + $0x428] sm:$0xf]
    %v499 = vld [vmem:[#allocation5 + $0x42c] sm:$0xf]
    %v500 = vld [vmem:[#allocation5 + $0x430] sm:$0xf]
    %v501 = vld [vmem:[#allocation5 + $0x434] sm:$0xf]
    %v502 = vld [vmem:[#allocation5 + $0x438] sm:$0xf]
    %v503 = vld [vmem:[#allocation5 + $0x43c] sm:$0xf]
    %v504 = vld [vmem:[#allocation5 + $0x440] sm:$0xf]
    %v505 = vld [vmem:[#allocation5 + $0x444] sm:$0xf]
    %v506 = vld [vmem:[#allocation5 + $0x448] sm:$0xf]
    %v507 = vld [vmem:[#allocation5 + $0x44c] sm:$0xf]
    %v508 = vld [vmem:[#allocation5 + $0x450] sm:$0xf]
    %v509 = vld [vmem:[#allocation5 + $0x454] sm:$0xf]
    %v510 = vld [vmem:[#allocation5 + $0x458] sm:$0xf]
    %v511 = vld [vmem:[#allocation5 + $0x45c] sm:$0xf]
    %v512 = vld [vmem:[#allocation5 + $0x460] sm:$0xf]
    %v513 = vld [vmem:[#allocation5 + $0x464] sm:$0xf]
    %v514 = vld [vmem:[#allocation5 + $0x468] sm:$0xf]
    %v515 = vld [vmem:[#allocation5 + $0x46c] sm:$0xf]
    %v516 = vld [vmem:[#allocation5 + $0x470] sm:$0xf]
    %v517 = vld [vmem:[#allocation5 + $0x474] sm:$0xf]
    %v518 = vld [vmem:[#allocation5 + $0x478] sm:$0xf]
    %v519 = vld [vmem:[#allocation5 + $0x47c] sm:$0xf]
    %v520 = vld [vmem:[#allocation5 + $0x480] sm:$0xf]
    %v521 = vld [vmem:[#allocation5 + $0x484] sm:$0xf]
    %v522 = vld [vmem:[#allocation5 + $0x488] sm:$0xf]
    %v523 = vld [vmem:[#allocation5 + $0x48c] sm:$0xf]
    %v524 = vld [vmem:[#allocation5 + $0x490] sm:$0xf]
    %v525 = vld [vmem:[#allocation5 + $0x494] sm:$0xf]
    %v526 = vld [vmem:[#allocation5 + $0x498] sm:$0xf]
    %v527 = vld [vmem:[#allocation5 + $0x49c] sm:$0xf]
    %v528 = vld [vmem:[#allocation5 + $0x4a0] sm:$0xf]
    %v529 = vld [vmem:[#allocation5 + $0x4a4] sm:$0xf]
    %v530 = vld [vmem:[#allocation5 + $0x4a8] sm:$0xf]
    %v531 = vld [vmem:[#allocation5 + $0x4ac] sm:$0xf]
    %v532 = vld [vmem:[#allocation5 + $0x4b0] sm:$0xf]
    %v533 = vld [vmem:[#allocation5 + $0x4b4] sm:$0xf]
    %v534 = vld [vmem:[#allocation5 + $0x4b8] sm:$0xf]
    %v535 = vld [vmem:[#allocation5 + $0x4bc] sm:$0xf]
    %v536 = vld [vmem:[#allocation5 + $0x4c0] sm:$0xf]
    %v537 = vld [vmem:[#allocation5 + $0x4c4] sm:$0xf]
    %v538 = vld [vmem:[#allocation5 + $0x4c8] sm:$0xf]
    %v539 = vld [vmem:[#allocation5 + $0x4cc] sm:$0xf]
    %v540 = vld [vmem:[#allocation5 + $0x4d0] sm:$0xf]
    %v541 = vld [vmem:[#allocation5 + $0x4d4] sm:$0xf]
    %v542 = vld [vmem:[#allocation5 + $0x4d8] sm:$0xf]
    %v543 = vld [vmem:[#allocation5 + $0x4dc] sm:$0xf]
    %v544 = vld [vmem:[#allocation5 + $0x4e0] sm:$0xf]
    %v545 = vld [vmem:[#allocation5 + $0x4e4] sm:$0xf]
    %v546 = vld [vmem:[#allocation5 + $0x4e8] sm:$0xf]
    %v547 = vld [vmem:[#allocation5 + $0x4ec] sm:$0xf]
    %v548 = vld [vmem:[#allocation5 + $0x4f0] sm:$0xf]
    %v549 = vld [vmem:[#allocation5 + $0x4f4] sm:$0xf]
    %v550 = vld [vmem:[#allocation5 + $0x4f8] sm:$0xf]
    %v551 = vld [vmem:[#allocation5 + $0x4fc] sm:$0xf]
    %v552 = vld [vmem:[#allocation5 + $0x500] sm:$0xf]
    %v553 = vld [vmem:[#allocation5 + $0x504] sm:$0xf]
    %v554 = vld [vmem:[#allocation5 + $0x508] sm:$0xf]
    %v555 = vld [vmem:[#allocation5 + $0x50c] sm:$0xf]
    %v556 = vld [vmem:[#allocation5 + $0x510] sm:$0xf]
    %v557 = vld [vmem:[#allocation5 + $0x514] sm:$0xf]
    %v558 = vld [vmem:[#allocation5 + $0x518] sm:$0xf]
    %v559 = vld [vmem:[#allocation5 + $0x51c] sm:$0xf]
    %v560 = vld [vmem:[#allocation5 + $0x520] sm:$0xf]
    %v561 = vld [vmem:[#allocation5 + $0x524] sm:$0xf]
    %v562 = vld [vmem:[#allocation5 + $0x528] sm:$0xf]
    %v563 = vld [vmem:[#allocation5 + $0x52c] sm:$0xf]
    %v564 = vld [vmem:[#allocation5 + $0x530] sm:$0xf]
    %v565 = vld [vmem:[#allocation5 + $0x534] sm:$0xf]
    %v566 = vld [vmem:[#allocation5 + $0x538] sm:$0xf]
    %v567 = vld [vmem:[#allocation5 + $0x53c] sm:$0xf]
    %v568 = vld [vmem:[#allocation5 + $0x540] sm:$0xf]
    %v569 = vld [vmem:[#allocation5 + $0x544] sm:$0xf]
    %v570 = vld [vmem:[#allocation5 + $0x548] sm:$0xf]
    %v571 = vld [vmem:[#allocation5 + $0x54c] sm:$0xf]
    %v572 = vld [vmem:[#allocation5 + $0x550] sm:$0xf]
    %v573 = vld [vmem:[#allocation5 + $0x554] sm:$0xf]
    %v574 = vld [vmem:[#allocation5 + $0x558] sm:$0xf]
    %v575 = vld [vmem:[#allocation5 + $0x55c] sm:$0xf]
    %v576 = vld [vmem:[#allocation5 + $0x560] sm:$0xf]
    %v577 = vld [vmem:[#allocation5 + $0x564] sm:$0xf]
    %v578 = vld [vmem:[#allocation5 + $0x568] sm:$0xf]
    %v579 = vld [vmem:[#allocation5 + $0x56c] sm:$0xf]
    %v580 = vld [vmem:[#allocation5 + $0x570] sm:$0xf]
    %v581 = vld [vmem:[#allocation5 + $0x574] sm:$0xf]
    %v582 = vld [vmem:[#allocation5 + $0x578] sm:$0xf]
    %v583 = vld [vmem:[#allocation5 + $0x57c] sm:$0xf]
    %v584 = vld [vmem:[#allocation5 + $0x580] sm:$0xf]
    %v585 = vld [vmem:[#allocation5 + $0x584] sm:$0xf]
    %v586 = vld [vmem:[#allocation5 + $0x588] sm:$0xf]
    %v587 = vld [vmem:[#allocation5 + $0x58c] sm:$0xf]
    %v588 = vld [vmem:[#allocation5 + $0x590] sm:$0xf]
    %v589 = vld [vmem:[#allocation5 + $0x594] sm:$0xf]
    %v590 = vld [vmem:[#allocation5 + $0x598] sm:$0xf]
    %v591 = vld [vmem:[#allocation5 + $0x59c] sm:$0xf]
    %v592 = vld [vmem:[#allocation5 + $0x5a0] sm:$0xf]
    %v593 = vld [vmem:[#allocation5 + $0x5a4] sm:$0xf]
    %v594 = vld [vmem:[#allocation5 + $0x5a8] sm:$0xf]
    %v595 = vld [vmem:[#allocation5 + $0x5ac] sm:$0xf]
    %v596 = vld [vmem:[#allocation5 + $0x5b0] sm:$0xf]
    %v597 = vld [vmem:[#allocation5 + $0x5b4] sm:$0xf]
    %v598 = vld [vmem:[#allocation5 + $0x5b8] sm:$0xf]
    %v599 = vld [vmem:[#allocation5 + $0x5bc] sm:$0xf]
    %v600 = vld [vmem:[#allocation5 + $0x5c0] sm:$0xf]
    %v601 = vld [vmem:[#allocation5 + $0x5c4] sm:$0xf]
    %v602 = vld [vmem:[#allocation5 + $0x5c8] sm:$0xf]
    %v603 = vld [vmem:[#allocation5 + $0x5cc] sm:$0xf]
    %v604 = vld [vmem:[#allocation5 + $0x5d0] sm:$0xf]
    %v605 = vld [vmem:[#allocation5 + $0x5d4] sm:$0xf]
    %v606 = vld [vmem:[#allocation5 + $0x5d8] sm:$0xf]
    %v607 = vld [vmem:[#allocation5 + $0x5dc] sm:$0xf]
    %v608 = vld [vmem:[#allocation5 + $0x5e0] sm:$0xf]
    %v609 = vld [vmem:[#allocation5 + $0x5e4] sm:$0xf]
    %v610 = vld [vmem:[#allocation5 + $0x5e8] sm:$0xf]
    %v611 = vld [vmem:[#allocation5 + $0x5ec] sm:$0xf]
    %v612 = vld [vmem:[#allocation5 + $0x5f0] sm:$0xf]
    %v613 = vld [vmem:[#allocation5 + $0x5f4] sm:$0xf]
    %v614 = vld [vmem:[#allocation5 + $0x5f8] sm:$0xf]
    %v615 = vld [vmem:[#allocation5 + $0x5fc] sm:$0xf]
    %v616 = vld [vmem:[#allocation7] sm:$0x1]
    %v618 = vperm.slane %v616, 0
    %v1004 = vunpack.c.l.b16 %v232
    %v1005 = vunpack.c.l.b16 %v233
    %v1006 = vunpack.c.l.b16 %v234
    %v1007 = vunpack.c.l.b16 %v235
    %v1008 = vunpack.c.l.b16 %v236
    %v1009 = vunpack.c.l.b16 %v237
    %v1010 = vunpack.c.l.b16 %v238
    %v1011 = vunpack.c.l.b16 %v239
    %v1012 = vunpack.c.l.b16 %v240
    %v1013 = vunpack.c.l.b16 %v241
    %v1014 = vunpack.c.l.b16 %v242
    %v1015 = vunpack.c.l.b16 %v243
    %v1016 = vunpack.c.l.b16 %v244
    %v1017 = vunpack.c.l.b16 %v245
    %v1018 = vunpack.c.l.b16 %v246
    %v1019 = vunpack.c.l.b16 %v247
    %v1020 = vunpack.c.l.b16 %v248
    %v1021 = vunpack.c.l.b16 %v249
    %v1022 = vunpack.c.l.b16 %v250
    %v1023 = vunpack.c.l.b16 %v251
    %v1024 = vunpack.c.l.b16 %v252
    %v1025 = vunpack.c.l.b16 %v253
    %v1026 = vunpack.c.l.b16 %v254
    %v1027 = vunpack.c.l.b16 %v255
    %v1028 = vunpack.c.l.b16 %v256
    %v1029 = vunpack.c.l.b16 %v257
    %v1030 = vunpack.c.l.b16 %v258
    %v1031 = vunpack.c.l.b16 %v259
    %v1032 = vunpack.c.l.b16 %v260
    %v1033 = vunpack.c.l.b16 %v261
    %v1034 = vunpack.c.l.b16 %v262
    %v1035 = vunpack.c.l.b16 %v263
    %v1036 = vunpack.c.l.b16 %v264
    %v1037 = vunpack.c.l.b16 %v265
    %v1038 = vunpack.c.l.b16 %v266
    %v1039 = vunpack.c.l.b16 %v267
    %v1040 = vunpack.c.l.b16 %v268
    %v1041 = vunpack.c.l.b16 %v269
    %v1042 = vunpack.c.l.b16 %v270
    %v1043 = vunpack.c.l.b16 %v271
    %v1044 = vunpack.c.l.b16 %v272
    %v1045 = vunpack.c.l.b16 %v273
    %v1046 = vunpack.c.l.b16 %v274
    %v1047 = vunpack.c.l.b16 %v275
    %v1048 = vunpack.c.l.b16 %v276
    %v1049 = vunpack.c.l.b16 %v277
    %v1050 = vunpack.c.l.b16 %v278
    %v1051 = vunpack.c.l.b16 %v279
    %v1052 = vunpack.c.l.b16 %v280
    %v1053 = vunpack.c.l.b16 %v281
    %v1054 = vunpack.c.l.b16 %v282
    %v1055 = vunpack.c.l.b16 %v283
    %v1056 = vunpack.c.l.b16 %v284
    %v1057 = vunpack.c.l.b16 %v285
    %v1058 = vunpack.c.l.b16 %v286
    %v1059 = vunpack.c.l.b16 %v287
    %v1060 = vunpack.c.l.b16 %v288
    %v1061 = vunpack.c.l.b16 %v289
    %v1062 = vunpack.c.l.b16 %v290
    %v1063 = vunpack.c.l.b16 %v291
    %v1064 = vunpack.c.l.b16 %v292
    %v1065 = vunpack.c.l.b16 %v293
    %v1066 = vunpack.c.l.b16 %v294
    %v1067 = vunpack.c.l.b16 %v295
    %v1068 = vunpack.c.l.b16 %v296
    %v1069 = vunpack.c.l.b16 %v297
    %v1070 = vunpack.c.l.b16 %v298
    %v1071 = vunpack.c.l.b16 %v299
    %v1072 = vunpack.c.l.b16 %v300
    %v1073 = vunpack.c.l.b16 %v301
    %v1074 = vunpack.c.l.b16 %v302
    %v1075 = vunpack.c.l.b16 %v303
    %v1076 = vunpack.c.l.b16 %v304
    %v1077 = vunpack.c.l.b16 %v305
    %v1078 = vunpack.c.l.b16 %v306
    %v1079 = vunpack.c.l.b16 %v307
    %v1080 = vunpack.c.l.b16 %v308
    %v1081 = vunpack.c.l.b16 %v309
    %v1082 = vunpack.c.l.b16 %v310
    %v1083 = vunpack.c.l.b16 %v311
    %v1084 = vunpack.c.l.b16 %v312
    %v1085 = vunpack.c.l.b16 %v313
    %v1086 = vunpack.c.l.b16 %v314
    %v1087 = vunpack.c.l.b16 %v315
    %v1088 = vunpack.c.l.b16 %v316
    %v1089 = vunpack.c.l.b16 %v317
    %v1090 = vunpack.c.l.b16 %v318
    %v1091 = vunpack.c.l.b16 %v319
    %v1092 = vunpack.c.l.b16 %v320
    %v1093 = vunpack.c.l.b16 %v321
    %v1094 = vunpack.c.l.b16 %v322
    %v1095 = vunpack.c.l.b16 %v323
    %v1096 = vunpack.c.l.b16 %v324
    %v1097 = vunpack.c.l.b16 %v325
    %v1098 = vunpack.c.l.b16 %v326
    %v1099 = vunpack.c.l.b16 %v327
    %v1100 = vunpack.c.l.b16 %v328
    %v1101 = vunpack.c.l.b16 %v329
    %v1102 = vunpack.c.l.b16 %v330
    %v1103 = vunpack.c.l.b16 %v331
    %v1104 = vunpack.c.l.b16 %v332
    %v1105 = vunpack.c.l.b16 %v333
    %v1106 = vunpack.c.l.b16 %v334
    %v1107 = vunpack.c.l.b16 %v335
    %v1108 = vunpack.c.l.b16 %v336
    %v1109 = vunpack.c.l.b16 %v337
    %v1110 = vunpack.c.l.b16 %v338
    %v1111 = vunpack.c.l.b16 %v339
    %v1112 = vunpack.c.l.b16 %v340
    %v1113 = vunpack.c.l.b16 %v341
    %v1114 = vunpack.c.l.b16 %v342
    %v1115 = vunpack.c.l.b16 %v343
    %v1116 = vunpack.c.l.b16 %v344
    %v1117 = vunpack.c.l.b16 %v345
    %v1118 = vunpack.c.l.b16 %v346
    %v1119 = vunpack.c.l.b16 %v347
    %v1120 = vunpack.c.l.b16 %v348
    %v1121 = vunpack.c.l.b16 %v349
    %v1122 = vunpack.c.l.b16 %v350
    %v1123 = vunpack.c.l.b16 %v351
    %v1124 = vunpack.c.l.b16 %v352
    %v1125 = vunpack.c.l.b16 %v353
    %v1126 = vunpack.c.l.b16 %v354
    %v1127 = vunpack.c.l.b16 %v355
    %v1128 = vunpack.c.l.b16 %v356
    %v1129 = vunpack.c.l.b16 %v357
    %v1130 = vunpack.c.l.b16 %v358
    %v1131 = vunpack.c.l.b16 %v359
    %v1132 = vunpack.c.l.b16 %v360
    %v1133 = vunpack.c.l.b16 %v361
    %v1134 = vunpack.c.l.b16 %v362
    %v1135 = vunpack.c.l.b16 %v363
    %v1136 = vunpack.c.l.b16 %v364
    %v1137 = vunpack.c.l.b16 %v365
    %v1138 = vunpack.c.l.b16 %v366
    %v1139 = vunpack.c.l.b16 %v367
    %v1140 = vunpack.c.l.b16 %v368
    %v1141 = vunpack.c.l.b16 %v369
    %v1142 = vunpack.c.l.b16 %v370
    %v1143 = vunpack.c.l.b16 %v371
    %v1144 = vunpack.c.l.b16 %v372
    %v1145 = vunpack.c.l.b16 %v373
    %v1146 = vunpack.c.l.b16 %v374
    %v1147 = vunpack.c.l.b16 %v375
    %v1148 = vunpack.c.l.b16 %v376
    %v1149 = vunpack.c.l.b16 %v377
    %v1150 = vunpack.c.l.b16 %v378
    %v1151 = vunpack.c.l.b16 %v379
    %v1152 = vunpack.c.l.b16 %v380
    %v1153 = vunpack.c.l.b16 %v381
    %v1154 = vunpack.c.l.b16 %v382
    %v1155 = vunpack.c.l.b16 %v383
    %v1156 = vunpack.c.l.b16 %v384
    %v1157 = vunpack.c.l.b16 %v385
    %v1158 = vunpack.c.l.b16 %v386
    %v1159 = vunpack.c.l.b16 %v387
    %v1160 = vunpack.c.l.b16 %v388
    %v1161 = vunpack.c.l.b16 %v389
    %v1162 = vunpack.c.l.b16 %v390
    %v1163 = vunpack.c.l.b16 %v391
    %v1164 = vunpack.c.l.b16 %v392
    %v1165 = vunpack.c.l.b16 %v393
    %v1166 = vunpack.c.l.b16 %v394
    %v1167 = vunpack.c.l.b16 %v395
    %v1168 = vunpack.c.l.b16 %v396
    %v1169 = vunpack.c.l.b16 %v397
    %v1170 = vunpack.c.l.b16 %v398
    %v1171 = vunpack.c.l.b16 %v399
    %v1172 = vunpack.c.l.b16 %v400
    %v1173 = vunpack.c.l.b16 %v401
    %v1174 = vunpack.c.l.b16 %v402
    %v1175 = vunpack.c.l.b16 %v403
    %v1176 = vunpack.c.l.b16 %v404
    %v1177 = vunpack.c.l.b16 %v405
    %v1178 = vunpack.c.l.b16 %v406
    %v1179 = vunpack.c.l.b16 %v407
    %v1180 = vunpack.c.l.b16 %v408
    %v1181 = vunpack.c.l.b16 %v409
    %v1182 = vunpack.c.l.b16 %v410
    %v1183 = vunpack.c.l.b16 %v411
    %v1184 = vunpack.c.l.b16 %v412
    %v1185 = vunpack.c.l.b16 %v413
    %v1186 = vunpack.c.l.b16 %v414
    %v1187 = vunpack.c.l.b16 %v415
    %v1188 = vunpack.c.l.b16 %v416
    %v1189 = vunpack.c.l.b16 %v417
    %v1190 = vunpack.c.l.b16 %v418
    %v1191 = vunpack.c.l.b16 %v419
    %v1192 = vunpack.c.l.b16 %v420
    %v1193 = vunpack.c.l.b16 %v421
    %v1194 = vunpack.c.l.b16 %v422
    %v1195 = vunpack.c.l.b16 %v423
    %v1196 = vunpack.c.l.b16 %v424
    %v1197 = vunpack.c.l.b16 %v425
    %v1198 = vunpack.c.l.b16 %v426
    %v1199 = vunpack.c.l.b16 %v427
    %v1200 = vunpack.c.l.b16 %v428
    %v1201 = vunpack.c.l.b16 %v429
    %v1202 = vunpack.c.l.b16 %v430
    %v1203 = vunpack.c.l.b16 %v431
    %v1204 = vunpack.c.l.b16 %v432
    %v1205 = vunpack.c.l.b16 %v433
    %v1206 = vunpack.c.l.b16 %v434
    %v1207 = vunpack.c.l.b16 %v435
    %v1208 = vunpack.c.l.b16 %v436
    %v1209 = vunpack.c.l.b16 %v437
    %v1210 = vunpack.c.l.b16 %v438
    %v1211 = vunpack.c.l.b16 %v439
    %v1212 = vunpack.c.l.b16 %v440
    %v1213 = vunpack.c.l.b16 %v441
    %v1214 = vunpack.c.l.b16 %v442
    %v1215 = vunpack.c.l.b16 %v443
    %v1216 = vunpack.c.l.b16 %v444
    %v1217 = vunpack.c.l.b16 %v445
    %v1218 = vunpack.c.l.b16 %v446
    %v1219 = vunpack.c.l.b16 %v447
    %v1220 = vunpack.c.l.b16 %v448
    %v1221 = vunpack.c.l.b16 %v449
    %v1222 = vunpack.c.l.b16 %v450
    %v1223 = vunpack.c.l.b16 %v451
    %v1224 = vunpack.c.l.b16 %v452
    %v1225 = vunpack.c.l.b16 %v453
    %v1226 = vunpack.c.l.b16 %v454
    %v1227 = vunpack.c.l.b16 %v455
    %v1228 = vunpack.c.l.b16 %v456
    %v1229 = vunpack.c.l.b16 %v457
    %v1230 = vunpack.c.l.b16 %v458
    %v1231 = vunpack.c.l.b16 %v459
    %v1232 = vunpack.c.l.b16 %v460
    %v1233 = vunpack.c.l.b16 %v461
    %v1234 = vunpack.c.l.b16 %v462
    %v1235 = vunpack.c.l.b16 %v463
    %v1236 = vunpack.c.l.b16 %v464
    %v1237 = vunpack.c.l.b16 %v465
    %v1238 = vunpack.c.l.b16 %v466
    %v1239 = vunpack.c.l.b16 %v467
    %v1240 = vunpack.c.l.b16 %v468
    %v1241 = vunpack.c.l.b16 %v469
    %v1242 = vunpack.c.l.b16 %v470
    %v1243 = vunpack.c.l.b16 %v471
    %v1244 = vunpack.c.l.b16 %v472
    %v1245 = vunpack.c.l.b16 %v473
    %v1246 = vunpack.c.l.b16 %v474
    %v1247 = vunpack.c.l.b16 %v475
    %v1248 = vunpack.c.l.b16 %v476
    %v1249 = vunpack.c.l.b16 %v477
    %v1250 = vunpack.c.l.b16 %v478
    %v1251 = vunpack.c.l.b16 %v479
    %v1252 = vunpack.c.l.b16 %v480
    %v1253 = vunpack.c.l.b16 %v481
    %v1254 = vunpack.c.l.b16 %v482
    %v1255 = vunpack.c.l.b16 %v483
    %v1256 = vunpack.c.l.b16 %v484
    %v1257 = vunpack.c.l.b16 %v485
    %v1258 = vunpack.c.l.b16 %v486
    %v1259 = vunpack.c.l.b16 %v487
    %v1260 = vunpack.c.l.b16 %v488
    %v1261 = vunpack.c.l.b16 %v489
    %v1262 = vunpack.c.l.b16 %v490
    %v1263 = vunpack.c.l.b16 %v491
    %v1264 = vunpack.c.l.b16 %v492
    %v1265 = vunpack.c.l.b16 %v493
    %v1266 = vunpack.c.l.b16 %v494
    %v1267 = vunpack.c.l.b16 %v495
    %v1268 = vunpack.c.l.b16 %v496
    %v1269 = vunpack.c.l.b16 %v497
    %v1270 = vunpack.c.l.b16 %v498
    %v1271 = vunpack.c.l.b16 %v499
    %v1272 = vunpack.c.l.b16 %v500
    %v1273 = vunpack.c.l.b16 %v501
    %v1274 = vunpack.c.l.b16 %v502
    %v1275 = vunpack.c.l.b16 %v503
    %v1276 = vunpack.c.l.b16 %v504
    %v1277 = vunpack.c.l.b16 %v505
    %v1278 = vunpack.c.l.b16 %v506
    %v1279 = vunpack.c.l.b16 %v507
    %v1280 = vunpack.c.l.b16 %v508
    %v1281 = vunpack.c.l.b16 %v509
    %v1282 = vunpack.c.l.b16 %v510
    %v1283 = vunpack.c.l.b16 %v511
    %v1284 = vunpack.c.l.b16 %v512
    %v1285 = vunpack.c.l.b16 %v513
    %v1286 = vunpack.c.l.b16 %v514
    %v1287 = vunpack.c.l.b16 %v515
    %v1288 = vunpack.c.l.b16 %v516
    %v1289 = vunpack.c.l.b16 %v517
    %v1290 = vunpack.c.l.b16 %v518
    %v1291 = vunpack.c.l.b16 %v519
    %v1292 = vunpack.c.l.b16 %v520
    %v1293 = vunpack.c.l.b16 %v521
    %v1294 = vunpack.c.l.b16 %v522
    %v1295 = vunpack.c.l.b16 %v523
    %v1296 = vunpack.c.l.b16 %v524
    %v1297 = vunpack.c.l.b16 %v525
    %v1298 = vunpack.c.l.b16 %v526
    %v1299 = vunpack.c.l.b16 %v527
    %v1300 = vunpack.c.l.b16 %v528
    %v1301 = vunpack.c.l.b16 %v529
    %v1302 = vunpack.c.l.b16 %v530
    %v1303 = vunpack.c.l.b16 %v531
    %v1304 = vunpack.c.l.b16 %v532
    %v1305 = vunpack.c.l.b16 %v533
    %v1306 = vunpack.c.l.b16 %v534
    %v1307 = vunpack.c.l.b16 %v535
    %v1308 = vunpack.c.l.b16 %v536
    %v1309 = vunpack.c.l.b16 %v537
    %v1310 = vunpack.c.l.b16 %v538
    %v1311 = vunpack.c.l.b16 %v539
    %v1312 = vunpack.c.l.b16 %v540
    %v1313 = vunpack.c.l.b16 %v541
    %v1314 = vunpack.c.l.b16 %v542
    %v1315 = vunpack.c.l.b16 %v543
    %v1316 = vunpack.c.l.b16 %v544
    %v1317 = vunpack.c.l.b16 %v545
    %v1318 = vunpack.c.l.b16 %v546
    %v1319 = vunpack.c.l.b16 %v547
    %v1320 = vunpack.c.l.b16 %v548
    %v1321 = vunpack.c.l.b16 %v549
    %v1322 = vunpack.c.l.b16 %v550
    %v1323 = vunpack.c.l.b16 %v551
    %v1324 = vunpack.c.l.b16 %v552
    %v1325 = vunpack.c.l.b16 %v553
    %v1326 = vunpack.c.l.b16 %v554
    %v1327 = vunpack.c.l.b16 %v555
    %v1328 = vunpack.c.l.b16 %v556
    %v1329 = vunpack.c.l.b16 %v557
    %v1330 = vunpack.c.l.b16 %v558
    %v1331 = vunpack.c.l.b16 %v559
    %v1332 = vunpack.c.l.b16 %v560
    %v1333 = vunpack.c.l.b16 %v561
    %v1334 = vunpack.c.l.b16 %v562
    %v1335 = vunpack.c.l.b16 %v563
    %v1336 = vunpack.c.l.b16 %v564
    %v1337 = vunpack.c.l.b16 %v565
    %v1338 = vunpack.c.l.b16 %v566
    %v1339 = vunpack.c.l.b16 %v567
    %v1340 = vunpack.c.l.b16 %v568
    %v1341 = vunpack.c.l.b16 %v569
    %v1342 = vunpack.c.l.b16 %v570
    %v1343 = vunpack.c.l.b16 %v571
    %v1344 = vunpack.c.l.b16 %v572
    %v1345 = vunpack.c.l.b16 %v573
    %v1346 = vunpack.c.l.b16 %v574
    %v1347 = vunpack.c.l.b16 %v575
    %v1348 = vunpack.c.l.b16 %v576
    %v1349 = vunpack.c.l.b16 %v577
    %v1350 = vunpack.c.l.b16 %v578
    %v1351 = vunpack.c.l.b16 %v579
    %v1352 = vunpack.c.l.b16 %v580
    %v1353 = vunpack.c.l.b16 %v581
    %v1354 = vunpack.c.l.b16 %v582
    %v1355 = vunpack.c.l.b16 %v583
    %v1356 = vunpack.c.l.b16 %v584
    %v1357 = vunpack.c.l.b16 %v585
    %v1358 = vunpack.c.l.b16 %v586
    %v1359 = vunpack.c.l.b16 %v587
    %v1360 = vunpack.c.l.b16 %v588
    %v1361 = vunpack.c.l.b16 %v589
    %v1362 = vunpack.c.l.b16 %v590
    %v1363 = vunpack.c.l.b16 %v591
    %v1364 = vunpack.c.l.b16 %v592
    %v1365 = vunpack.c.l.b16 %v593
    %v1366 = vunpack.c.l.b16 %v594
    %v1367 = vunpack.c.l.b16 %v595
    %v1368 = vunpack.c.l.b16 %v596
    %v1369 = vunpack.c.l.b16 %v597
    %v1370 = vunpack.c.l.b16 %v598
    %v1371 = vunpack.c.l.b16 %v599
    %v1372 = vunpack.c.l.b16 %v600
    %v1373 = vunpack.c.l.b16 %v601
    %v1374 = vunpack.c.l.b16 %v602
    %v1375 = vunpack.c.l.b16 %v603
    %v1376 = vunpack.c.l.b16 %v604
    %v1377 = vunpack.c.l.b16 %v605
    %v1378 = vunpack.c.l.b16 %v606
    %v1379 = vunpack.c.l.b16 %v607
    %v1380 = vunpack.c.l.b16 %v608
    %v1381 = vunpack.c.l.b16 %v609
    %v1382 = vunpack.c.l.b16 %v610
    %v1383 = vunpack.c.l.b16 %v611
    %v1384 = vunpack.c.l.b16 %v612
    %v1385 = vunpack.c.l.b16 %v613
    %v1386 = vunpack.c.l.b16 %v614
    %v1387 = vunpack.c.l.b16 %v615
    %v1388 = vpack.c.b16 %v1005, %v1004
    %v1389 = vpack.c.b16 %v1007, %v1006
    %v1390 = vpack.c.b16 %v1009, %v1008
    %v1391 = vpack.c.b16 %v1011, %v1010
    %v1392 = vpack.c.b16 %v1013, %v1012
    %v1393 = vpack.c.b16 %v1015, %v1014
    %v1394 = vpack.c.b16 %v1017, %v1016
    %v1395 = vpack.c.b16 %v1019, %v1018
    %v1396 = vpack.c.b16 %v1021, %v1020
    %v1397 = vpack.c.b16 %v1023, %v1022
    %v1398 = vpack.c.b16 %v1025, %v1024
    %v1399 = vpack.c.b16 %v1027, %v1026
    %v1400 = vpack.c.b16 %v1029, %v1028
    %v1401 = vpack.c.b16 %v1031, %v1030
    %v1402 = vpack.c.b16 %v1033, %v1032
    %v1403 = vpack.c.b16 %v1035, %v1034
    %v1404 = vpack.c.b16 %v1037, %v1036
    %v1405 = vpack.c.b16 %v1039, %v1038
    %v1406 = vpack.c.b16 %v1041, %v1040
    %v1407 = vpack.c.b16 %v1043, %v1042
    %v1408 = vpack.c.b16 %v1045, %v1044
    %v1409 = vpack.c.b16 %v1047, %v1046
    %v1410 = vpack.c.b16 %v1049, %v1048
    %v1411 = vpack.c.b16 %v1051, %v1050
    %v1412 = vpack.c.b16 %v1053, %v1052
    %v1413 = vpack.c.b16 %v1055, %v1054
    %v1414 = vpack.c.b16 %v1057, %v1056
    %v1415 = vpack.c.b16 %v1059, %v1058
    %v1416 = vpack.c.b16 %v1061, %v1060
    %v1417 = vpack.c.b16 %v1063, %v1062
    %v1418 = vpack.c.b16 %v1065, %v1064
    %v1419 = vpack.c.b16 %v1067, %v1066
    %v1420 = vpack.c.b16 %v1069, %v1068
    %v1421 = vpack.c.b16 %v1071, %v1070
    %v1422 = vpack.c.b16 %v1073, %v1072
    %v1423 = vpack.c.b16 %v1075, %v1074
    %v1424 = vpack.c.b16 %v1077, %v1076
    %v1425 = vpack.c.b16 %v1079, %v1078
    %v1426 = vpack.c.b16 %v1081, %v1080
    %v1427 = vpack.c.b16 %v1083, %v1082
    %v1428 = vpack.c.b16 %v1085, %v1084
    %v1429 = vpack.c.b16 %v1087, %v1086
    %v1430 = vpack.c.b16 %v1089, %v1088
    %v1431 = vpack.c.b16 %v1091, %v1090
    %v1432 = vpack.c.b16 %v1093, %v1092
    %v1433 = vpack.c.b16 %v1095, %v1094
    %v1434 = vpack.c.b16 %v1097, %v1096
    %v1435 = vpack.c.b16 %v1099, %v1098
    %v1436 = vpack.c.b16 %v1101, %v1100
    %v1437 = vpack.c.b16 %v1103, %v1102
    %v1438 = vpack.c.b16 %v1105, %v1104
    %v1439 = vpack.c.b16 %v1107, %v1106
    %v1440 = vpack.c.b16 %v1109, %v1108
    %v1441 = vpack.c.b16 %v1111, %v1110
    %v1442 = vpack.c.b16 %v1113, %v1112
    %v1443 = vpack.c.b16 %v1115, %v1114
    %v1444 = vpack.c.b16 %v1117, %v1116
    %v1445 = vpack.c.b16 %v1119, %v1118
    %v1446 = vpack.c.b16 %v1121, %v1120
    %v1447 = vpack.c.b16 %v1123, %v1122
    %v1448 = vpack.c.b16 %v1125, %v1124
    %v1449 = vpack.c.b16 %v1127, %v1126
    %v1450 = vpack.c.b16 %v1129, %v1128
    %v1451 = vpack.c.b16 %v1131, %v1130
    %v1452 = vpack.c.b16 %v1133, %v1132
    %v1453 = vpack.c.b16 %v1135, %v1134
    %v1454 = vpack.c.b16 %v1137, %v1136
    %v1455 = vpack.c.b16 %v1139, %v1138
    %v1456 = vpack.c.b16 %v1141, %v1140
    %v1457 = vpack.c.b16 %v1143, %v1142
    %v1458 = vpack.c.b16 %v1145, %v1144
    %v1459 = vpack.c.b16 %v1147, %v1146
    %v1460 = vpack.c.b16 %v1149, %v1148
    %v1461 = vpack.c.b16 %v1151, %v1150
    %v1462 = vpack.c.b16 %v1153, %v1152
    %v1463 = vpack.c.b16 %v1155, %v1154
    %v1464 = vpack.c.b16 %v1157, %v1156
    %v1465 = vpack.c.b16 %v1159, %v1158
    %v1466 = vpack.c.b16 %v1161, %v1160
    %v1467 = vpack.c.b16 %v1163, %v1162
    %v1468 = vpack.c.b16 %v1165, %v1164
    %v1469 = vpack.c.b16 %v1167, %v1166
    %v1470 = vpack.c.b16 %v1169, %v1168
    %v1471 = vpack.c.b16 %v1171, %v1170
    %v1472 = vpack.c.b16 %v1173, %v1172
    %v1473 = vpack.c.b16 %v1175, %v1174
    %v1474 = vpack.c.b16 %v1177, %v1176
    %v1475 = vpack.c.b16 %v1179, %v1178
    %v1476 = vpack.c.b16 %v1181, %v1180
    %v1477 = vpack.c.b16 %v1183, %v1182
    %v1478 = vpack.c.b16 %v1185, %v1184
    %v1479 = vpack.c.b16 %v1187, %v1186
    %v1480 = vpack.c.b16 %v1189, %v1188
    %v1481 = vpack.c.b16 %v1191, %v1190
    %v1482 = vpack.c.b16 %v1193, %v1192
    %v1483 = vpack.c.b16 %v1195, %v1194
    %v1484 = vpack.c.b16 %v1197, %v1196
    %v1485 = vpack.c.b16 %v1199, %v1198
    %v1486 = vpack.c.b16 %v1201, %v1200
    %v1487 = vpack.c.b16 %v1203, %v1202
    %v1488 = vpack.c.b16 %v1205, %v1204
    %v1489 = vpack.c.b16 %v1207, %v1206
    %v1490 = vpack.c.b16 %v1209, %v1208
    %v1491 = vpack.c.b16 %v1211, %v1210
    %v1492 = vpack.c.b16 %v1213, %v1212
    %v1493 = vpack.c.b16 %v1215, %v1214
    %v1494 = vpack.c.b16 %v1217, %v1216
    %v1495 = vpack.c.b16 %v1219, %v1218
    %v1496 = vpack.c.b16 %v1221, %v1220
    %v1497 = vpack.c.b16 %v1223, %v1222
    %v1498 = vpack.c.b16 %v1225, %v1224
    %v1499 = vpack.c.b16 %v1227, %v1226
    %v1500 = vpack.c.b16 %v1229, %v1228
    %v1501 = vpack.c.b16 %v1231, %v1230
    %v1502 = vpack.c.b16 %v1233, %v1232
    %v1503 = vpack.c.b16 %v1235, %v1234
    %v1504 = vpack.c.b16 %v1237, %v1236
    %v1505 = vpack.c.b16 %v1239, %v1238
    %v1506 = vpack.c.b16 %v1241, %v1240
    %v1507 = vpack.c.b16 %v1243, %v1242
    %v1508 = vpack.c.b16 %v1245, %v1244
    %v1509 = vpack.c.b16 %v1247, %v1246
    %v1510 = vpack.c.b16 %v1249, %v1248
    %v1511 = vpack.c.b16 %v1251, %v1250
    %v1512 = vpack.c.b16 %v1253, %v1252
    %v1513 = vpack.c.b16 %v1255, %v1254
    %v1514 = vpack.c.b16 %v1257, %v1256
    %v1515 = vpack.c.b16 %v1259, %v1258
    %v1516 = vpack.c.b16 %v1261, %v1260
    %v1517 = vpack.c.b16 %v1263, %v1262
    %v1518 = vpack.c.b16 %v1265, %v1264
    %v1519 = vpack.c.b16 %v1267, %v1266
    %v1520 = vpack.c.b16 %v1269, %v1268
    %v1521 = vpack.c.b16 %v1271, %v1270
    %v1522 = vpack.c.b16 %v1273, %v1272
    %v1523 = vpack.c.b16 %v1275, %v1274
    %v1524 = vpack.c.b16 %v1277, %v1276
    %v1525 = vpack.c.b16 %v1279, %v1278
    %v1526 = vpack.c.b16 %v1281, %v1280
    %v1527 = vpack.c.b16 %v1283, %v1282
    %v1528 = vpack.c.b16 %v1285, %v1284
    %v1529 = vpack.c.b16 %v1287, %v1286
    %v1530 = vpack.c.b16 %v1289, %v1288
    %v1531 = vpack.c.b16 %v1291, %v1290
    %v1532 = vpack.c.b16 %v1293, %v1292
    %v1533 = vpack.c.b16 %v1295, %v1294
    %v1534 = vpack.c.b16 %v1297, %v1296
    %v1535 = vpack.c.b16 %v1299, %v1298
    %v1536 = vpack.c.b16 %v1301, %v1300
    %v1537 = vpack.c.b16 %v1303, %v1302
    %v1538 = vpack.c.b16 %v1305, %v1304
    %v1539 = vpack.c.b16 %v1307, %v1306
    %v1540 = vpack.c.b16 %v1309, %v1308
    %v1541 = vpack.c.b16 %v1311, %v1310
    %v1542 = vpack.c.b16 %v1313, %v1312
    %v1543 = vpack.c.b16 %v1315, %v1314
    %v1544 = vpack.c.b16 %v1317, %v1316
    %v1545 = vpack.c.b16 %v1319, %v1318
    %v1546 = vpack.c.b16 %v1321, %v1320
    %v1547 = vpack.c.b16 %v1323, %v1322
    %v1548 = vpack.c.b16 %v1325, %v1324
    %v1549 = vpack.c.b16 %v1327, %v1326
    %v1550 = vpack.c.b16 %v1329, %v1328
    %v1551 = vpack.c.b16 %v1331, %v1330
    %v1552 = vpack.c.b16 %v1333, %v1332
    %v1553 = vpack.c.b16 %v1335, %v1334
    %v1554 = vpack.c.b16 %v1337, %v1336
    %v1555 = vpack.c.b16 %v1339, %v1338
    %v1556 = vpack.c.b16 %v1341, %v1340
    %v1557 = vpack.c.b16 %v1343, %v1342
    %v1558 = vpack.c.b16 %v1345, %v1344
    %v1559 = vpack.c.b16 %v1347, %v1346
    %v1560 = vpack.c.b16 %v1349, %v1348
    %v1561 = vpack.c.b16 %v1351, %v1350
    %v1562 = vpack.c.b16 %v1353, %v1352
    %v1563 = vpack.c.b16 %v1355, %v1354
    %v1564 = vpack.c.b16 %v1357, %v1356
    %v1565 = vpack.c.b16 %v1359, %v1358
    %v1566 = vpack.c.b16 %v1361, %v1360
    %v1567 = vpack.c.b16 %v1363, %v1362
    %v1568 = vpack.c.b16 %v1365, %v1364
    %v1569 = vpack.c.b16 %v1367, %v1366
    %v1570 = vpack.c.b16 %v1369, %v1368
    %v1571 = vpack.c.b16 %v1371, %v1370
    %v1572 = vpack.c.b16 %v1373, %v1372
    %v1573 = vpack.c.b16 %v1375, %v1374
    %v1574 = vpack.c.b16 %v1377, %v1376
    %v1575 = vpack.c.b16 %v1379, %v1378
    %v1576 = vpack.c.b16 %v1381, %v1380
    %v1577 = vpack.c.b16 %v1383, %v1382
    %v1578 = vpack.c.b16 %v1385, %v1384
    %v1579 = vpack.c.b16 %v1387, %v1386
    %1772 = vmatpush.bf16.msra.mxu0 %v1395
    %1773 = vmatpush.bf16.msra.mxu0 %v1394
    %1774 = vmatpush.bf16.msra.mxu0 %v1393
    %1775 = vmatpush.bf16.msra.mxu0 %v1392
    %1776 = vmatpush.bf16.msra.mxu0 %v1391
    %1777 = vmatpush.bf16.msra.mxu0 %v1390
    %1778 = vmatpush.bf16.msra.mxu0 %v1389
    %1779 = vmatpush.bf16.msra.mxu0 %v1388
    %1780 = vmatmul.bf16.gmra.mxu0 %v208
    %v1781 = vpop.f32.mrf.mxu0
    %v1782 = vadd.f32 %v618, %v1781
    %v1783 = vpop.f32.mrf.mxu0
    %v1784 = vadd.f32 %v618, %v1783
    %1785 = vdwg.mxu0
    %1786 = vmatpush.bf16.msra.mxu0 %v1403
    %1787 = vmatpush.bf16.msra.mxu0 %v1402
    %1788 = vmatpush.bf16.msra.mxu0 %v1401
    %1789 = vmatpush.bf16.msra.mxu0 %v1400
    %1790 = vmatpush.bf16.msra.mxu0 %v1399
    %1791 = vmatpush.bf16.msra.mxu0 %v1398
    %1792 = vmatpush.bf16.msra.mxu0 %v1397
    %1793 = vmatpush.bf16.msra.mxu0 %v1396
    %1794 = vmatmul.bf16.gmra.mxu0 %v209
    %v1795 = vpop.f32.mrf.mxu0
    %v1796 = vadd.f32 %v1782, %v1795
    %v1797 = vpop.f32.mrf.mxu0
    %v1798 = vadd.f32 %v1784, %v1797
    %1799 = vdwg.mxu0
    %1800 = vmatpush.bf16.msra.mxu0 %v1411
    %1801 = vmatpush.bf16.msra.mxu0 %v1410
    %1802 = vmatpush.bf16.msra.mxu0 %v1409
    %1803 = vmatpush.bf16.msra.mxu0 %v1408
    %1804 = vmatpush.bf16.msra.mxu0 %v1407
    %1805 = vmatpush.bf16.msra.mxu0 %v1406
    %1806 = vmatpush.bf16.msra.mxu0 %v1405
    %1807 = vmatpush.bf16.msra.mxu0 %v1404
    %1808 = vmatmul.bf16.gmra.mxu0 %v210
    %v1809 = vpop.f32.mrf.mxu0
    %v1810 = vadd.f32 %v1796, %v1809
    %v1811 = vpop.f32.mrf.mxu0
    %v1812 = vadd.f32 %v1798, %v1811
    %1813 = vdwg.mxu0
    %1814 = vmatpush.bf16.msra.mxu0 %v1419
    %1815 = vmatpush.bf16.msra.mxu0 %v1418
    %1816 = vmatpush.bf16.msra.mxu0 %v1417
    %1817 = vmatpush.bf16.msra.mxu0 %v1416
    %1818 = vmatpush.bf16.msra.mxu0 %v1415
    %1819 = vmatpush.bf16.msra.mxu0 %v1414
    %1820 = vmatpush.bf16.msra.mxu0 %v1413
    %1821 = vmatpush.bf16.msra.mxu0 %v1412
    %1822 = vmatmul.bf16.gmra.mxu0 %v211
    %v1823 = vpop.f32.mrf.mxu0
    %v1824 = vadd.f32 %v1810, %v1823
    %v1825 = vpop.f32.mrf.mxu0
    %v1826 = vadd.f32 %v1812, %v1825
    %1827 = vdwg.mxu0
    %1828 = vmatpush.bf16.msra.mxu0 %v1427
    %1829 = vmatpush.bf16.msra.mxu0 %v1426
    %1830 = vmatpush.bf16.msra.mxu0 %v1425
    %1831 = vmatpush.bf16.msra.mxu0 %v1424
    %1832 = vmatpush.bf16.msra.mxu0 %v1423
    %1833 = vmatpush.bf16.msra.mxu0 %v1422
    %1834 = vmatpush.bf16.msra.mxu0 %v1421
    %1835 = vmatpush.bf16.msra.mxu0 %v1420
    %1836 = vmatmul.bf16.gmra.mxu0 %v212
    %v1837 = vpop.f32.mrf.mxu0
    %v1838 = vadd.f32 %v1824, %v1837
    %v1839 = vpop.f32.mrf.mxu0
    %v1840 = vadd.f32 %v1826, %v1839
    %1841 = vdwg.mxu0
    %1842 = vmatpush.bf16.msra.mxu0 %v1435
    %1843 = vmatpush.bf16.msra.mxu0 %v1434
    %1844 = vmatpush.bf16.msra.mxu0 %v1433
    %1845 = vmatpush.bf16.msra.mxu0 %v1432
    %1846 = vmatpush.bf16.msra.mxu0 %v1431
    %1847 = vmatpush.bf16.msra.mxu0 %v1430
    %1848 = vmatpush.bf16.msra.mxu0 %v1429
    %1849 = vmatpush.bf16.msra.mxu0 %v1428
    %1850 = vmatmul.bf16.gmra.mxu0 %v213
    %v1851 = vpop.f32.mrf.mxu0
    %v1852 = vadd.f32 %v1838, %v1851
    %v1853 = vpop.f32.mrf.mxu0
    %v1854 = vadd.f32 %v1840, %v1853
    %1855 = vdwg.mxu0
    %1856 = vmatpush.bf16.msra.mxu0 %v1443
    %1857 = vmatpush.bf16.msra.mxu0 %v1442
    %1858 = vmatpush.bf16.msra.mxu0 %v1441
    %1859 = vmatpush.bf16.msra.mxu0 %v1440
    %1860 = vmatpush.bf16.msra.mxu0 %v1439
    %1861 = vmatpush.bf16.msra.mxu0 %v1438
    %1862 = vmatpush.bf16.msra.mxu0 %v1437
    %1863 = vmatpush.bf16.msra.mxu0 %v1436
    %1864 = vmatmul.bf16.gmra.mxu0 %v214
    %v1865 = vpop.f32.mrf.mxu0
    %v1866 = vadd.f32 %v1852, %v1865
    %v1867 = vpop.f32.mrf.mxu0
    %v1868 = vadd.f32 %v1854, %v1867
    %1869 = vdwg.mxu0
    %1870 = vmatpush.bf16.msra.mxu0 %v1451
    %1871 = vmatpush.bf16.msra.mxu0 %v1450
    %1872 = vmatpush.bf16.msra.mxu0 %v1449
    %1873 = vmatpush.bf16.msra.mxu0 %v1448
    %1874 = vmatpush.bf16.msra.mxu0 %v1447
    %1875 = vmatpush.bf16.msra.mxu0 %v1446
    %1876 = vmatpush.bf16.msra.mxu0 %v1445
    %1877 = vmatpush.bf16.msra.mxu0 %v1444
    %1878 = vmatmul.bf16.gmra.mxu0 %v215
    %v1879 = vpop.f32.mrf.mxu0
    %v1880 = vadd.f32 %v1866, %v1879
    %v1881 = vpop.f32.mrf.mxu0
    %v1882 = vadd.f32 %v1868, %v1881
    %1883 = vdwg.mxu0
    %1884 = vmatpush.bf16.msra.mxu0 %v1459
    %1885 = vmatpush.bf16.msra.mxu0 %v1458
    %1886 = vmatpush.bf16.msra.mxu0 %v1457
    %1887 = vmatpush.bf16.msra.mxu0 %v1456
    %1888 = vmatpush.bf16.msra.mxu0 %v1455
    %1889 = vmatpush.bf16.msra.mxu0 %v1454
    %1890 = vmatpush.bf16.msra.mxu0 %v1453
    %1891 = vmatpush.bf16.msra.mxu0 %v1452
    %1892 = vmatmul.bf16.gmra.mxu0 %v216
    %v1893 = vpop.f32.mrf.mxu0
    %v1894 = vadd.f32 %v1880, %v1893
    %v1895 = vpop.f32.mrf.mxu0
    %v1896 = vadd.f32 %v1882, %v1895
    %1897 = vdwg.mxu0
    %1898 = vmatpush.bf16.msra.mxu0 %v1467
    %1899 = vmatpush.bf16.msra.mxu0 %v1466
    %1900 = vmatpush.bf16.msra.mxu0 %v1465
    %1901 = vmatpush.bf16.msra.mxu0 %v1464
    %1902 = vmatpush.bf16.msra.mxu0 %v1463
    %1903 = vmatpush.bf16.msra.mxu0 %v1462
    %1904 = vmatpush.bf16.msra.mxu0 %v1461
    %1905 = vmatpush.bf16.msra.mxu0 %v1460
    %1906 = vmatmul.bf16.gmra.mxu0 %v217
    %v1907 = vpop.f32.mrf.mxu0
    %v1908 = vadd.f32 %v1894, %v1907
    %v1909 = vpop.f32.mrf.mxu0
    %v1910 = vadd.f32 %v1896, %v1909
    %1911 = vdwg.mxu0
    %1912 = vmatpush.bf16.msra.mxu0 %v1475
    %1913 = vmatpush.bf16.msra.mxu0 %v1474
    %1914 = vmatpush.bf16.msra.mxu0 %v1473
    %1915 = vmatpush.bf16.msra.mxu0 %v1472
    %1916 = vmatpush.bf16.msra.mxu0 %v1471
    %1917 = vmatpush.bf16.msra.mxu0 %v1470
    %1918 = vmatpush.bf16.msra.mxu0 %v1469
    %1919 = vmatpush.bf16.msra.mxu0 %v1468
    %1920 = vmatmul.bf16.gmra.mxu0 %v218
    %v1921 = vpop.f32.mrf.mxu0
    %v1922 = vadd.f32 %v1908, %v1921
    %v1923 = vpop.f32.mrf.mxu0
    %v1924 = vadd.f32 %v1910, %v1923
    %1925 = vdwg.mxu0
    %1926 = vmatpush.bf16.msra.mxu0 %v1483
    %1927 = vmatpush.bf16.msra.mxu0 %v1482
    %1928 = vmatpush.bf16.msra.mxu0 %v1481
    %1929 = vmatpush.bf16.msra.mxu0 %v1480
    %1930 = vmatpush.bf16.msra.mxu0 %v1479
    %1931 = vmatpush.bf16.msra.mxu0 %v1478
    %1932 = vmatpush.bf16.msra.mxu0 %v1477
    %1933 = vmatpush.bf16.msra.mxu0 %v1476
    %1934 = vmatmul.bf16.gmra.mxu0 %v219
    %v1935 = vpop.f32.mrf.mxu0
    %v1936 = vadd.f32 %v1922, %v1935
    %v1937 = vpop.f32.mrf.mxu0
    %v1938 = vadd.f32 %v1924, %v1937
    %1939 = vdwg.mxu0
    %1940 = vmatpush.bf16.msra.mxu0 %v1491
    %1941 = vmatpush.bf16.msra.mxu0 %v1490
    %1942 = vmatpush.bf16.msra.mxu0 %v1489
    %1943 = vmatpush.bf16.msra.mxu0 %v1488
    %1944 = vmatpush.bf16.msra.mxu0 %v1487
    %1945 = vmatpush.bf16.msra.mxu0 %v1486
    %1946 = vmatpush.bf16.msra.mxu0 %v1485
    %1947 = vmatpush.bf16.msra.mxu0 %v1484
    %1948 = vmatmul.bf16.gmra.mxu0 %v220
    %v1949 = vpop.f32.mrf.mxu0
    %v1950 = vadd.f32 %v1936, %v1949
    %v1951 = vpop.f32.mrf.mxu0
    %v1952 = vadd.f32 %v1938, %v1951
    %1953 = vdwg.mxu0
    %1954 = vmatpush.bf16.msra.mxu0 %v1499
    %1955 = vmatpush.bf16.msra.mxu0 %v1498
    %1956 = vmatpush.bf16.msra.mxu0 %v1497
    %1957 = vmatpush.bf16.msra.mxu0 %v1496
    %1958 = vmatpush.bf16.msra.mxu0 %v1495
    %1959 = vmatpush.bf16.msra.mxu0 %v1494
    %1960 = vmatpush.bf16.msra.mxu0 %v1493
    %1961 = vmatpush.bf16.msra.mxu0 %v1492
    %1962 = vmatmul.bf16.gmra.mxu0 %v221
    %v1963 = vpop.f32.mrf.mxu0
    %v1964 = vadd.f32 %v1950, %v1963
    %v1965 = vpop.f32.mrf.mxu0
    %v1966 = vadd.f32 %v1952, %v1965
    %1967 = vdwg.mxu0
    %1968 = vmatpush.bf16.msra.mxu0 %v1507
    %1969 = vmatpush.bf16.msra.mxu0 %v1506
    %1970 = vmatpush.bf16.msra.mxu0 %v1505
    %1971 = vmatpush.bf16.msra.mxu0 %v1504
    %1972 = vmatpush.bf16.msra.mxu0 %v1503
    %1973 = vmatpush.bf16.msra.mxu0 %v1502
    %1974 = vmatpush.bf16.msra.mxu0 %v1501
    %1975 = vmatpush.bf16.msra.mxu0 %v1500
    %1976 = vmatmul.bf16.gmra.mxu0 %v222
    %v1977 = vpop.f32.mrf.mxu0
    %v1978 = vadd.f32 %v1964, %v1977
    %v1979 = vpop.f32.mrf.mxu0
    %v1980 = vadd.f32 %v1966, %v1979
    %1981 = vdwg.mxu0
    %1982 = vmatpush.bf16.msra.mxu0 %v1515
    %1983 = vmatpush.bf16.msra.mxu0 %v1514
    %1984 = vmatpush.bf16.msra.mxu0 %v1513
    %1985 = vmatpush.bf16.msra.mxu0 %v1512
    %1986 = vmatpush.bf16.msra.mxu0 %v1511
    %1987 = vmatpush.bf16.msra.mxu0 %v1510
    %1988 = vmatpush.bf16.msra.mxu0 %v1509
    %1989 = vmatpush.bf16.msra.mxu0 %v1508
    %1990 = vmatmul.bf16.gmra.mxu0 %v223
    %v1991 = vpop.f32.mrf.mxu0
    %v1992 = vadd.f32 %v1978, %v1991
    %v1993 = vpop.f32.mrf.mxu0
    %v1994 = vadd.f32 %v1980, %v1993
    %1995 = vdwg.mxu0
    %1996 = vmatpush.bf16.msra.mxu0 %v1523
    %1997 = vmatpush.bf16.msra.mxu0 %v1522
    %1998 = vmatpush.bf16.msra.mxu0 %v1521
    %1999 = vmatpush.bf16.msra.mxu0 %v1520
    %2000 = vmatpush.bf16.msra.mxu0 %v1519
    %2001 = vmatpush.bf16.msra.mxu0 %v1518
    %2002 = vmatpush.bf16.msra.mxu0 %v1517
    %2003 = vmatpush.bf16.msra.mxu0 %v1516
    %2004 = vmatmul.bf16.gmra.mxu0 %v224
    %v2005 = vpop.f32.mrf.mxu0
    %v2006 = vadd.f32 %v1992, %v2005
    %v2007 = vpop.f32.mrf.mxu0
    %v2008 = vadd.f32 %v1994, %v2007
    %2009 = vdwg.mxu0
    %2010 = vmatpush.bf16.msra.mxu0 %v1531
    %2011 = vmatpush.bf16.msra.mxu0 %v1530
    %2012 = vmatpush.bf16.msra.mxu0 %v1529
    %2013 = vmatpush.bf16.msra.mxu0 %v1528
    %2014 = vmatpush.bf16.msra.mxu0 %v1527
    %2015 = vmatpush.bf16.msra.mxu0 %v1526
    %2016 = vmatpush.bf16.msra.mxu0 %v1525
    %2017 = vmatpush.bf16.msra.mxu0 %v1524
    %2018 = vmatmul.bf16.gmra.mxu0 %v225
    %v2019 = vpop.f32.mrf.mxu0
    %v2020 = vadd.f32 %v2006, %v2019
    %v2021 = vpop.f32.mrf.mxu0
    %v2022 = vadd.f32 %v2008, %v2021
    %2023 = vdwg.mxu0
    %2024 = vmatpush.bf16.msra.mxu0 %v1539
    %2025 = vmatpush.bf16.msra.mxu0 %v1538
    %2026 = vmatpush.bf16.msra.mxu0 %v1537
    %2027 = vmatpush.bf16.msra.mxu0 %v1536
    %2028 = vmatpush.bf16.msra.mxu0 %v1535
    %2029 = vmatpush.bf16.msra.mxu0 %v1534
    %2030 = vmatpush.bf16.msra.mxu0 %v1533
    %2031 = vmatpush.bf16.msra.mxu0 %v1532
    %2032 = vmatmul.bf16.gmra.mxu0 %v226
    %v2033 = vpop.f32.mrf.mxu0
    %v2034 = vadd.f32 %v2020, %v2033
    %v2035 = vpop.f32.mrf.mxu0
    %v2036 = vadd.f32 %v2022, %v2035
    %2037 = vdwg.mxu0
    %2038 = vmatpush.bf16.msra.mxu0 %v1547
    %2039 = vmatpush.bf16.msra.mxu0 %v1546
    %2040 = vmatpush.bf16.msra.mxu0 %v1545
    %2041 = vmatpush.bf16.msra.mxu0 %v1544
    %2042 = vmatpush.bf16.msra.mxu0 %v1543
    %2043 = vmatpush.bf16.msra.mxu0 %v1542
    %2044 = vmatpush.bf16.msra.mxu0 %v1541
    %2045 = vmatpush.bf16.msra.mxu0 %v1540
    %2046 = vmatmul.bf16.gmra.mxu0 %v227
    %v2047 = vpop.f32.mrf.mxu0
    %v2048 = vadd.f32 %v2034, %v2047
    %v2049 = vpop.f32.mrf.mxu0
    %v2050 = vadd.f32 %v2036, %v2049
    %2051 = vdwg.mxu0
    %2052 = vmatpush.bf16.msra.mxu0 %v1555
    %2053 = vmatpush.bf16.msra.mxu0 %v1554
    %2054 = vmatpush.bf16.msra.mxu0 %v1553
    %2055 = vmatpush.bf16.msra.mxu0 %v1552
    %2056 = vmatpush.bf16.msra.mxu0 %v1551
    %2057 = vmatpush.bf16.msra.mxu0 %v1550
    %2058 = vmatpush.bf16.msra.mxu0 %v1549
    %2059 = vmatpush.bf16.msra.mxu0 %v1548
    %2060 = vmatmul.bf16.gmra.mxu0 %v228
    %v2061 = vpop.f32.mrf.mxu0
    %v2062 = vadd.f32 %v2048, %v2061
    %v2063 = vpop.f32.mrf.mxu0
    %v2064 = vadd.f32 %v2050, %v2063
    %2065 = vdwg.mxu0
    %2066 = vmatpush.bf16.msra.mxu0 %v1563
    %2067 = vmatpush.bf16.msra.mxu0 %v1562
    %2068 = vmatpush.bf16.msra.mxu0 %v1561
    %2069 = vmatpush.bf16.msra.mxu0 %v1560
    %2070 = vmatpush.bf16.msra.mxu0 %v1559
    %2071 = vmatpush.bf16.msra.mxu0 %v1558
    %2072 = vmatpush.bf16.msra.mxu0 %v1557
    %2073 = vmatpush.bf16.msra.mxu0 %v1556
    %2074 = vmatmul.bf16.gmra.mxu0 %v229
    %v2075 = vpop.f32.mrf.mxu0
    %v2076 = vadd.f32 %v2062, %v2075
    %v2077 = vpop.f32.mrf.mxu0
    %v2078 = vadd.f32 %v2064, %v2077
    %2079 = vdwg.mxu0
    %2080 = vmatpush.bf16.msra.mxu0 %v1571
    %2081 = vmatpush.bf16.msra.mxu0 %v1570
    %2082 = vmatpush.bf16.msra.mxu0 %v1569
    %2083 = vmatpush.bf16.msra.mxu0 %v1568
    %2084 = vmatpush.bf16.msra.mxu0 %v1567
    %2085 = vmatpush.bf16.msra.mxu0 %v1566
    %2086 = vmatpush.bf16.msra.mxu0 %v1565
    %2087 = vmatpush.bf16.msra.mxu0 %v1564
    %2088 = vmatmul.bf16.gmra.mxu0 %v230
    %v2089 = vpop.f32.mrf.mxu0
    %v2090 = vadd.f32 %v2076, %v2089
    %v2091 = vpop.f32.mrf.mxu0
    %v2092 = vadd.f32 %v2078, %v2091
    %2093 = vdwg.mxu0
    %2094 = vmatpush.bf16.msra.mxu0 %v1579
    %2095 = vmatpush.bf16.msra.mxu0 %v1578
    %2096 = vmatpush.bf16.msra.mxu0 %v1577
    %2097 = vmatpush.bf16.msra.mxu0 %v1576
    %2098 = vmatpush.bf16.msra.mxu0 %v1575
    %2099 = vmatpush.bf16.msra.mxu0 %v1574
    %2100 = vmatpush.bf16.msra.mxu0 %v1573
    %2101 = vmatpush.bf16.msra.mxu0 %v1572
    %2102 = vmatmul.bf16.gmra.mxu0 %v231
    %v2103 = vpop.f32.mrf.mxu0
    %v2104 = vadd.f32 %v2090, %v2103
    %v2105 = vpop.f32.mrf.mxu0
    %v2106 = vadd.f32 %v2092, %v2105
    %2107 = vdwg.mxu0
    %v2108 = vmax.f32 %v2104, 0.0
    %v2109 = vmax.f32 %v2106, 0.0
    %v2110 = vpack.c.bf16 %v2109, %v2108
    %v2111 = vld [vmem:[#allocation8] sm:$0xff]
    %v2112 = vld [vmem:[#allocation8 + $0x8] sm:$0xff]
    %v2113 = vld [vmem:[#allocation8 + $0x10] sm:$0xff]
    %v2114 = vld [vmem:[#allocation8 + $0x18] sm:$0xff]
    %v2115 = vld [vmem:[#allocation8 + $0x20] sm:$0xff]
    %v2116 = vld [vmem:[#allocation8 + $0x28] sm:$0xff]
    %v2117 = vld [vmem:[#allocation8 + $0x30] sm:$0xff]
    %v2118 = vld [vmem:[#allocation8 + $0x38] sm:$0xff]
    %v2119 = vld [vmem:[#allocation8 + $0x40] sm:$0xff]
    %v2120 = vld [vmem:[#allocation8 + $0x48] sm:$0xff]
    %v2121 = vld [vmem:[#allocation8 + $0x50] sm:$0xff]
    %v2122 = vld [vmem:[#allocation8 + $0x58] sm:$0xff]
    %v2123 = vld [vmem:[#allocation8 + $0x60] sm:$0xff]
    %v2124 = vld [vmem:[#allocation8 + $0x68] sm:$0xff]
    %v2125 = vld [vmem:[#allocation8 + $0x70] sm:$0xff]
    %v2126 = vld [vmem:[#allocation8 + $0x78] sm:$0xff]
    %v2127 = vld [vmem:[#allocation10] sm:$0x3]
    %v2129 = vperm.slane %v2127, 0
    %v2130 = vperm.slane %v2127, 1
    %v2149 = vunpack.c.l.b16 %v2111
    %v2150 = vunpack.c.h.b16 %v2111
    %v2151 = vunpack.c.l.b16 %v2112
    %v2152 = vunpack.c.h.b16 %v2112
    %v2153 = vunpack.c.l.b16 %v2113
    %v2154 = vunpack.c.h.b16 %v2113
    %v2155 = vunpack.c.l.b16 %v2114
    %v2156 = vunpack.c.h.b16 %v2114
    %v2157 = vunpack.c.l.b16 %v2115
    %v2158 = vunpack.c.h.b16 %v2115
    %v2159 = vunpack.c.l.b16 %v2116
    %v2160 = vunpack.c.h.b16 %v2116
    %v2161 = vunpack.c.l.b16 %v2117
    %v2162 = vunpack.c.h.b16 %v2117
    %v2163 = vunpack.c.l.b16 %v2118
    %v2164 = vunpack.c.h.b16 %v2118
    %v2165 = vunpack.c.l.b16 %v2119
    %v2166 = vunpack.c.h.b16 %v2119
    %v2167 = vunpack.c.l.b16 %v2120
    %v2168 = vunpack.c.h.b16 %v2120
    %v2169 = vunpack.c.l.b16 %v2121
    %v2170 = vunpack.c.h.b16 %v2121
    %v2171 = vunpack.c.l.b16 %v2122
    %v2172 = vunpack.c.h.b16 %v2122
    %v2173 = vunpack.c.l.b16 %v2123
    %v2174 = vunpack.c.h.b16 %v2123
    %v2175 = vunpack.c.l.b16 %v2124
    %v2176 = vunpack.c.h.b16 %v2124
    %v2177 = vunpack.c.l.b16 %v2125
    %v2178 = vunpack.c.h.b16 %v2125
    %v2179 = vunpack.c.l.b16 %v2126
    %v2180 = vunpack.c.h.b16 %v2126
    %v2181 = vpack.c.b16 %v2151, %v2149
    %v2182 = vpack.c.b16 %v2152, %v2150
    %v2183 = vpack.c.b16 %v2155, %v2153
    %v2184 = vpack.c.b16 %v2156, %v2154
    %v2185 = vpack.c.b16 %v2159, %v2157
    %v2186 = vpack.c.b16 %v2160, %v2158
    %v2187 = vpack.c.b16 %v2163, %v2161
    %v2188 = vpack.c.b16 %v2164, %v2162
    %v2189 = vpack.c.b16 %v2167, %v2165
    %v2190 = vpack.c.b16 %v2168, %v2166
    %v2191 = vpack.c.b16 %v2171, %v2169
    %v2192 = vpack.c.b16 %v2172, %v2170
    %v2193 = vpack.c.b16 %v2175, %v2173
    %v2194 = vpack.c.b16 %v2176, %v2174
    %v2195 = vpack.c.b16 %v2179, %v2177
    %v2196 = vpack.c.b16 %v2180, %v2178
    %2213 = vmatpush.bf16.msra.mxu0 %v2195
    %2214 = vmatpush.bf16.msra.mxu0 %v2193
    %2215 = vmatpush.bf16.msra.mxu0 %v2191
    %2216 = vmatpush.bf16.msra.mxu0 %v2189
    %2217 = vmatpush.bf16.msra.mxu0 %v2187
    %2218 = vmatpush.bf16.msra.mxu0 %v2185
    %2219 = vmatpush.bf16.msra.mxu0 %v2183
    %2220 = vmatpush.bf16.msra.mxu0 %v2181
    %2221 = vmatmul.bf16.gmra.mxu0 %v2110
    %v2222 = vpop.f32.mrf.mxu0
    %v2223 = vadd.f32 %v2129, %v2222
    %v2224 = vpop.f32.mrf.mxu0
    %v2225 = vadd.f32 %v2129, %v2224
    %2226 = vdwg.mxu0
    %2227 = vmatpush.bf16.msra.mxu0 %v2196
    %2228 = vmatpush.bf16.msra.mxu0 %v2194
    %2229 = vmatpush.bf16.msra.mxu0 %v2192
    %2230 = vmatpush.bf16.msra.mxu0 %v2190
    %2231 = vmatpush.bf16.msra.mxu0 %v2188
    %2232 = vmatpush.bf16.msra.mxu0 %v2186
    %2233 = vmatpush.bf16.msra.mxu0 %v2184
    %2234 = vmatpush.bf16.msra.mxu0 %v2182
    %2235 = vmatmul.bf16.gmra.mxu0 %v2110
    %v2236 = vpop.f32.mrf.mxu0
    %v2237 = vadd.f32 %v2130, %v2236
    %v2238 = vpop.f32.mrf.mxu0
    %v2239 = vadd.f32 %v2130, %v2238
    %2240 = vdwg.mxu0
    %v2241 = vmax.f32 %v2223, 0.0
    %v2242 = vmax.f32 %v2237, 0.0
    %v2243 = vmax.f32 %v2225, 0.0
    %v2244 = vmax.f32 %v2239, 0.0
    %v2245 = vpack.c.bf16 %v2243, %v2241
    %v2246 = vpack.c.bf16 %v2244, %v2242
    %v2247 = vld [vmem:[#allocation11] sm:$0xff]
    %v2248 = vld [vmem:[#allocation11 + $0x8] sm:$0xff]
    %v2249 = vld [vmem:[#allocation11 + $0x10] sm:$0xff]
    %v2250 = vld [vmem:[#allocation11 + $0x18] sm:$0xff]
    %v2251 = vld [vmem:[#allocation11 + $0x20] sm:$0xff]
    %v2252 = vld [vmem:[#allocation11 + $0x28] sm:$0xff]
    %v2253 = vld [vmem:[#allocation11 + $0x30] sm:$0xff]
    %v2254 = vld [vmem:[#allocation11 + $0x38] sm:$0xff]
    %v2255 = vld [vmem:[#allocation11 + $0x40] sm:$0xff]
    %v2256 = vld [vmem:[#allocation11 + $0x48] sm:$0xff]
    %v2257 = vld [vmem:[#allocation11 + $0x50] sm:$0xff]
    %v2258 = vld [vmem:[#allocation11 + $0x58] sm:$0xff]
    %v2259 = vld [vmem:[#allocation11 + $0x60] sm:$0xff]
    %v2260 = vld [vmem:[#allocation11 + $0x68] sm:$0xff]
    %v2261 = vld [vmem:[#allocation11 + $0x70] sm:$0xff]
    %v2262 = vld [vmem:[#allocation11 + $0x78] sm:$0xff]
    %v2263 = vld [vmem:[#allocation11 + $0x80] sm:$0xff]
    %v2264 = vld [vmem:[#allocation11 + $0x88] sm:$0xff]
    %v2265 = vld [vmem:[#allocation11 + $0x90] sm:$0xff]
    %v2266 = vld [vmem:[#allocation11 + $0x98] sm:$0xff]
    %v2267 = vld [vmem:[#allocation11 + $0xa0] sm:$0xff]
    %v2268 = vld [vmem:[#allocation11 + $0xa8] sm:$0xff]
    %v2269 = vld [vmem:[#allocation11 + $0xb0] sm:$0xff]
    %v2270 = vld [vmem:[#allocation11 + $0xb8] sm:$0xff]
    %v2271 = vld [vmem:[#allocation11 + $0xc0] sm:$0xff]
    %v2272 = vld [vmem:[#allocation11 + $0xc8] sm:$0xff]
    %v2273 = vld [vmem:[#allocation11 + $0xd0] sm:$0xff]
    %v2274 = vld [vmem:[#allocation11 + $0xd8] sm:$0xff]
    %v2275 = vld [vmem:[#allocation11 + $0xe0] sm:$0xff]
    %v2276 = vld [vmem:[#allocation11 + $0xe8] sm:$0xff]
    %v2277 = vld [vmem:[#allocation11 + $0xf0] sm:$0xff]
    %v2278 = vld [vmem:[#allocation11 + $0xf8] sm:$0xff]
    %v2279 = vld [vmem:[#allocation11 + $0x100] sm:$0xff]
    %v2280 = vld [vmem:[#allocation11 + $0x108] sm:$0xff]
    %v2281 = vld [vmem:[#allocation11 + $0x110] sm:$0xff]
    %v2282 = vld [vmem:[#allocation11 + $0x118] sm:$0xff]
    %v2283 = vld [vmem:[#allocation11 + $0x120] sm:$0xff]
    %v2284 = vld [vmem:[#allocation11 + $0x128] sm:$0xff]
    %v2285 = vld [vmem:[#allocation11 + $0x130] sm:$0xff]
    %v2286 = vld [vmem:[#allocation11 + $0x138] sm:$0xff]
    %v2287 = vld [vmem:[#allocation11 + $0x140] sm:$0xff]
    %v2288 = vld [vmem:[#allocation11 + $0x148] sm:$0xff]
    %v2289 = vld [vmem:[#allocation11 + $0x150] sm:$0xff]
    %v2290 = vld [vmem:[#allocation11 + $0x158] sm:$0xff]
    %v2291 = vld [vmem:[#allocation11 + $0x160] sm:$0xff]
    %v2292 = vld [vmem:[#allocation11 + $0x168] sm:$0xff]
    %v2293 = vld [vmem:[#allocation11 + $0x170] sm:$0xff]
    %v2294 = vld [vmem:[#allocation11 + $0x178] sm:$0xff]
    %v2295 = vld [vmem:[#allocation11 + $0x180] sm:$0xff]
    %v2296 = vld [vmem:[#allocation11 + $0x188] sm:$0xff]
    %v2297 = vld [vmem:[#allocation11 + $0x190] sm:$0xff]
    %v2298 = vld [vmem:[#allocation11 + $0x198] sm:$0xff]
    %v2299 = vld [vmem:[#allocation11 + $0x1a0] sm:$0xff]
    %v2300 = vld [vmem:[#allocation11 + $0x1a8] sm:$0xff]
    %v2301 = vld [vmem:[#allocation11 + $0x1b0] sm:$0xff]
    %v2302 = vld [vmem:[#allocation11 + $0x1b8] sm:$0xff]
    %v2303 = vld [vmem:[#allocation11 + $0x1c0] sm:$0xff]
    %v2304 = vld [vmem:[#allocation11 + $0x1c8] sm:$0xff]
    %v2305 = vld [vmem:[#allocation11 + $0x1d0] sm:$0xff]
    %v2306 = vld [vmem:[#allocation11 + $0x1d8] sm:$0xff]
    %v2307 = vld [vmem:[#allocation11 + $0x1e0] sm:$0xff]
    %v2308 = vld [vmem:[#allocation11 + $0x1e8] sm:$0xff]
    %v2309 = vld [vmem:[#allocation11 + $0x1f0] sm:$0xff]
    %v2310 = vld [vmem:[#allocation11 + $0x1f8] sm:$0xff]
    %v2311 = vld [vmem:[%s6] sm:$0xf]
    %v2313 = vperm.slane %v2311, 0
    %v2314 = vperm.slane %v2311, 1
    %v2315 = vperm.slane %v2311, 2
    %v2316 = vperm.slane %v2311, 3
    %v2385 = vunpack.c.l.b16 %v2247
    %v2386 = vunpack.c.h.b16 %v2247
    %v2387 = vunpack.c.l.b16 %v2248
    %v2388 = vunpack.c.h.b16 %v2248
    %v2389 = vunpack.c.l.b16 %v2249
    %v2390 = vunpack.c.h.b16 %v2249
    %v2391 = vunpack.c.l.b16 %v2250
    %v2392 = vunpack.c.h.b16 %v2250
    %v2393 = vunpack.c.l.b16 %v2251
    %v2394 = vunpack.c.h.b16 %v2251
    %v2395 = vunpack.c.l.b16 %v2252
    %v2396 = vunpack.c.h.b16 %v2252
    %v2397 = vunpack.c.l.b16 %v2253
    %v2398 = vunpack.c.h.b16 %v2253
    %v2399 = vunpack.c.l.b16 %v2254
    %v2400 = vunpack.c.h.b16 %v2254
    %v2401 = vunpack.c.l.b16 %v2255
    %v2402 = vunpack.c.h.b16 %v2255
    %v2403 = vunpack.c.l.b16 %v2256
    %v2404 = vunpack.c.h.b16 %v2256
    %v2405 = vunpack.c.l.b16 %v2257
    %v2406 = vunpack.c.h.b16 %v2257
    %v2407 = vunpack.c.l.b16 %v2258
    %v2408 = vunpack.c.h.b16 %v2258
    %v2409 = vunpack.c.l.b16 %v2259
    %v2410 = vunpack.c.h.b16 %v2259
    %v2411 = vunpack.c.l.b16 %v2260
    %v2412 = vunpack.c.h.b16 %v2260
    %v2413 = vunpack.c.l.b16 %v2261
    %v2414 = vunpack.c.h.b16 %v2261
    %v2415 = vunpack.c.l.b16 %v2262
    %v2416 = vunpack.c.h.b16 %v2262
    %v2417 = vunpack.c.l.b16 %v2263
    %v2418 = vunpack.c.h.b16 %v2263
    %v2419 = vunpack.c.l.b16 %v2264
    %v2420 = vunpack.c.h.b16 %v2264
    %v2421 = vunpack.c.l.b16 %v2265
    %v2422 = vunpack.c.h.b16 %v2265
    %v2423 = vunpack.c.l.b16 %v2266
    %v2424 = vunpack.c.h.b16 %v2266
    %v2425 = vunpack.c.l.b16 %v2267
    %v2426 = vunpack.c.h.b16 %v2267
    %v2427 = vunpack.c.l.b16 %v2268
    %v2428 = vunpack.c.h.b16 %v2268
    %v2429 = vunpack.c.l.b16 %v2269
    %v2430 = vunpack.c.h.b16 %v2269
    %v2431 = vunpack.c.l.b16 %v2270
    %v2432 = vunpack.c.h.b16 %v2270
    %v2433 = vunpack.c.l.b16 %v2271
    %v2434 = vunpack.c.h.b16 %v2271
    %v2435 = vunpack.c.l.b16 %v2272
    %v2436 = vunpack.c.h.b16 %v2272
    %v2437 = vunpack.c.l.b16 %v2273
    %v2438 = vunpack.c.h.b16 %v2273
    %v2439 = vunpack.c.l.b16 %v2274
    %v2440 = vunpack.c.h.b16 %v2274
    %v2441 = vunpack.c.l.b16 %v2275
    %v2442 = vunpack.c.h.b16 %v2275
    %v2443 = vunpack.c.l.b16 %v2276
    %v2444 = vunpack.c.h.b16 %v2276
    %v2445 = vunpack.c.l.b16 %v2277
    %v2446 = vunpack.c.h.b16 %v2277
    %v2447 = vunpack.c.l.b16 %v2278
    %v2448 = vunpack.c.h.b16 %v2278
    %v2449 = vunpack.c.l.b16 %v2279
    %v2450 = vunpack.c.h.b16 %v2279
    %v2451 = vunpack.c.l.b16 %v2280
    %v2452 = vunpack.c.h.b16 %v2280
    %v2453 = vunpack.c.l.b16 %v2281
    %v2454 = vunpack.c.h.b16 %v2281
    %v2455 = vunpack.c.l.b16 %v2282
    %v2456 = vunpack.c.h.b16 %v2282
    %v2457 = vunpack.c.l.b16 %v2283
    %v2458 = vunpack.c.h.b16 %v2283
    %v2459 = vunpack.c.l.b16 %v2284
    %v2460 = vunpack.c.h.b16 %v2284
    %v2461 = vunpack.c.l.b16 %v2285
    %v2462 = vunpack.c.h.b16 %v2285
    %v2463 = vunpack.c.l.b16 %v2286
    %v2464 = vunpack.c.h.b16 %v2286
    %v2465 = vunpack.c.l.b16 %v2287
    %v2466 = vunpack.c.h.b16 %v2287
    %v2467 = vunpack.c.l.b16 %v2288
    %v2468 = vunpack.c.h.b16 %v2288
    %v2469 = vunpack.c.l.b16 %v2289
    %v2470 = vunpack.c.h.b16 %v2289
    %v2471 = vunpack.c.l.b16 %v2290
    %v2472 = vunpack.c.h.b16 %v2290
    %v2473 = vunpack.c.l.b16 %v2291
    %v2474 = vunpack.c.h.b16 %v2291
    %v2475 = vunpack.c.l.b16 %v2292
    %v2476 = vunpack.c.h.b16 %v2292
    %v2477 = vunpack.c.l.b16 %v2293
    %v2478 = vunpack.c.h.b16 %v2293
    %v2479 = vunpack.c.l.b16 %v2294
    %v2480 = vunpack.c.h.b16 %v2294
    %v2481 = vunpack.c.l.b16 %v2295
    %v2482 = vunpack.c.h.b16 %v2295
    %v2483 = vunpack.c.l.b16 %v2296
    %v2484 = vunpack.c.h.b16 %v2296
    %v2485 = vunpack.c.l.b16 %v2297
    %v2486 = vunpack.c.h.b16 %v2297
    %v2487 = vunpack.c.l.b16 %v2298
    %v2488 = vunpack.c.h.b16 %v2298
    %v2489 = vunpack.c.l.b16 %v2299
    %v2490 = vunpack.c.h.b16 %v2299
    %v2491 = vunpack.c.l.b16 %v2300
    %v2492 = vunpack.c.h.b16 %v2300
    %v2493 = vunpack.c.l.b16 %v2301
    %v2494 = vunpack.c.h.b16 %v2301
    %v2495 = vunpack.c.l.b16 %v2302
    %v2496 = vunpack.c.h.b16 %v2302
    %v2497 = vunpack.c.l.b16 %v2303
    %v2498 = vunpack.c.h.b16 %v2303
    %v2499 = vunpack.c.l.b16 %v2304
    %v2500 = vunpack.c.h.b16 %v2304
    %v2501 = vunpack.c.l.b16 %v2305
    %v2502 = vunpack.c.h.b16 %v2305
    %v2503 = vunpack.c.l.b16 %v2306
    %v2504 = vunpack.c.h.b16 %v2306
    %v2505 = vunpack.c.l.b16 %v2307
    %v2506 = vunpack.c.h.b16 %v2307
    %v2507 = vunpack.c.l.b16 %v2308
    %v2508 = vunpack.c.h.b16 %v2308
    %v2509 = vunpack.c.l.b16 %v2309
    %v2510 = vunpack.c.h.b16 %v2309
    %v2511 = vunpack.c.l.b16 %v2310
    %v2512 = vunpack.c.h.b16 %v2310
    %v2513 = vpack.c.b16 %v2389, %v2385
    %v2514 = vpack.c.b16 %v2390, %v2386
    %v2515 = vpack.c.b16 %v2391, %v2387
    %v2516 = vpack.c.b16 %v2392, %v2388
    %v2517 = vpack.c.b16 %v2397, %v2393
    %v2518 = vpack.c.b16 %v2398, %v2394
    %v2519 = vpack.c.b16 %v2399, %v2395
    %v2520 = vpack.c.b16 %v2400, %v2396
    %v2521 = vpack.c.b16 %v2405, %v2401
    %v2522 = vpack.c.b16 %v2406, %v2402
    %v2523 = vpack.c.b16 %v2407, %v2403
    %v2524 = vpack.c.b16 %v2408, %v2404
    %v2525 = vpack.c.b16 %v2413, %v2409
    %v2526 = vpack.c.b16 %v2414, %v2410
    %v2527 = vpack.c.b16 %v2415, %v2411
    %v2528 = vpack.c.b16 %v2416, %v2412
    %v2529 = vpack.c.b16 %v2421, %v2417
    %v2530 = vpack.c.b16 %v2422, %v2418
    %v2531 = vpack.c.b16 %v2423, %v2419
    %v2532 = vpack.c.b16 %v2424, %v2420
    %v2533 = vpack.c.b16 %v2429, %v2425
    %v2534 = vpack.c.b16 %v2430, %v2426
    %v2535 = vpack.c.b16 %v2431, %v2427
    %v2536 = vpack.c.b16 %v2432, %v2428
    %v2537 = vpack.c.b16 %v2437, %v2433
    %v2538 = vpack.c.b16 %v2438, %v2434
    %v2539 = vpack.c.b16 %v2439, %v2435
    %v2540 = vpack.c.b16 %v2440, %v2436
    %v2541 = vpack.c.b16 %v2445, %v2441
    %v2542 = vpack.c.b16 %v2446, %v2442
    %v2543 = vpack.c.b16 %v2447, %v2443
    %v2544 = vpack.c.b16 %v2448, %v2444
    %v2545 = vpack.c.b16 %v2453, %v2449
    %v2546 = vpack.c.b16 %v2454, %v2450
    %v2547 = vpack.c.b16 %v2455, %v2451
    %v2548 = vpack.c.b16 %v2456, %v2452
    %v2549 = vpack.c.b16 %v2461, %v2457
    %v2550 = vpack.c.b16 %v2462, %v2458
    %v2551 = vpack.c.b16 %v2463, %v2459
    %v2552 = vpack.c.b16 %v2464, %v2460
    %v2553 = vpack.c.b16 %v2469, %v2465
    %v2554 = vpack.c.b16 %v2470, %v2466
    %v2555 = vpack.c.b16 %v2471, %v2467
    %v2556 = vpack.c.b16 %v2472, %v2468
    %v2557 = vpack.c.b16 %v2477, %v2473
    %v2558 = vpack.c.b16 %v2478, %v2474
    %v2559 = vpack.c.b16 %v2479, %v2475
    %v2560 = vpack.c.b16 %v2480, %v2476
    %v2561 = vpack.c.b16 %v2485, %v2481
    %v2562 = vpack.c.b16 %v2486, %v2482
    %v2563 = vpack.c.b16 %v2487, %v2483
    %v2564 = vpack.c.b16 %v2488, %v2484
    %v2565 = vpack.c.b16 %v2493, %v2489
    %v2566 = vpack.c.b16 %v2494, %v2490
    %v2567 = vpack.c.b16 %v2495, %v2491
    %v2568 = vpack.c.b16 %v2496, %v2492
    %v2569 = vpack.c.b16 %v2501, %v2497
    %v2570 = vpack.c.b16 %v2502, %v2498
    %v2571 = vpack.c.b16 %v2503, %v2499
    %v2572 = vpack.c.b16 %v2504, %v2500
    %v2573 = vpack.c.b16 %v2509, %v2505
    %v2574 = vpack.c.b16 %v2510, %v2506
    %v2575 = vpack.c.b16 %v2511, %v2507
    %v2576 = vpack.c.b16 %v2512, %v2508
    %2641 = vmatpush.bf16.msra.mxu0 %v2541
    %2642 = vmatpush.bf16.msra.mxu0 %v2537
    %2643 = vmatpush.bf16.msra.mxu0 %v2533
    %2644 = vmatpush.bf16.msra.mxu0 %v2529
    %2645 = vmatpush.bf16.msra.mxu0 %v2525
    %2646 = vmatpush.bf16.msra.mxu0 %v2521
    %2647 = vmatpush.bf16.msra.mxu0 %v2517
    %2648 = vmatpush.bf16.msra.mxu0 %v2513
    %2649 = vmatmul.bf16.gmra.mxu0 %v2245
    %v2650 = vpop.f32.mrf.mxu0
    %v2651 = vadd.f32 %v2313, %v2650
    %v2652 = vpop.f32.mrf.mxu0
    %v2653 = vadd.f32 %v2313, %v2652
    %2654 = vdwg.mxu0
    %2655 = vmatpush.bf16.msra.mxu0 %v2573
    %2656 = vmatpush.bf16.msra.mxu0 %v2569
    %2657 = vmatpush.bf16.msra.mxu0 %v2565
    %2658 = vmatpush.bf16.msra.mxu0 %v2561
    %2659 = vmatpush.bf16.msra.mxu0 %v2557
    %2660 = vmatpush.bf16.msra.mxu0 %v2553
    %2661 = vmatpush.bf16.msra.mxu0 %v2549
    %2662 = vmatpush.bf16.msra.mxu0 %v2545
    %2663 = vmatmul.bf16.gmra.mxu0 %v2246
    %v2664 = vpop.f32.mrf.mxu0
    %v2665 = vadd.f32 %v2651, %v2664
    %v2666 = vpop.f32.mrf.mxu0
    %v2667 = vadd.f32 %v2653, %v2666
    %2668 = vdwg.mxu0
    %2669 = vmatpush.bf16.msra.mxu0 %v2542
    %2670 = vmatpush.bf16.msra.mxu0 %v2538
    %2671 = vmatpush.bf16.msra.mxu0 %v2534
    %2672 = vmatpush.bf16.msra.mxu0 %v2530
    %2673 = vmatpush.bf16.msra.mxu0 %v2526
    %2674 = vmatpush.bf16.msra.mxu0 %v2522
    %2675 = vmatpush.bf16.msra.mxu0 %v2518
    %2676 = vmatpush.bf16.msra.mxu0 %v2514
    %2677 = vmatmul.bf16.gmra.mxu0 %v2245
    %v2678 = vpop.f32.mrf.mxu0
    %v2679 = vadd.f32 %v2314, %v2678
    %v2680 = vpop.f32.mrf.mxu0
    %v2681 = vadd.f32 %v2314, %v2680
    %2682 = vdwg.mxu0
    %2683 = vmatpush.bf16.msra.mxu0 %v2574
    %2684 = vmatpush.bf16.msra.mxu0 %v2570
    %2685 = vmatpush.bf16.msra.mxu0 %v2566
    %2686 = vmatpush.bf16.msra.mxu0 %v2562
    %2687 = vmatpush.bf16.msra.mxu0 %v2558
    %2688 = vmatpush.bf16.msra.mxu0 %v2554
    %2689 = vmatpush.bf16.msra.mxu0 %v2550
    %2690 = vmatpush.bf16.msra.mxu0 %v2546
    %2691 = vmatmul.bf16.gmra.mxu0 %v2246
    %v2692 = vpop.f32.mrf.mxu0
    %v2693 = vadd.f32 %v2679, %v2692
    %v2694 = vpop.f32.mrf.mxu0
    %v2695 = vadd.f32 %v2681, %v2694
    %2696 = vdwg.mxu0
    %2697 = vmatpush.bf16.msra.mxu0 %v2543
    %2698 = vmatpush.bf16.msra.mxu0 %v2539
    %2699 = vmatpush.bf16.msra.mxu0 %v2535
    %2700 = vmatpush.bf16.msra.mxu0 %v2531
    %2701 = vmatpush.bf16.msra.mxu0 %v2527
    %2702 = vmatpush.bf16.msra.mxu0 %v2523
    %2703 = vmatpush.bf16.msra.mxu0 %v2519
    %2704 = vmatpush.bf16.msra.mxu0 %v2515
    %2705 = vmatmul.bf16.gmra.mxu0 %v2245
    %v2706 = vpop.f32.mrf.mxu0
    %v2707 = vadd.f32 %v2315, %v2706
    %v2708 = vpop.f32.mrf.mxu0
    %v2709 = vadd.f32 %v2315, %v2708
    %2710 = vdwg.mxu0
    %2711 = vmatpush.bf16.msra.mxu0 %v2575
    %2712 = vmatpush.bf16.msra.mxu0 %v2571
    %2713 = vmatpush.bf16.msra.mxu0 %v2567
    %2714 = vmatpush.bf16.msra.mxu0 %v2563
    %2715 = vmatpush.bf16.msra.mxu0 %v2559
    %2716 = vmatpush.bf16.msra.mxu0 %v2555
    %2717 = vmatpush.bf16.msra.mxu0 %v2551
    %2718 = vmatpush.bf16.msra.mxu0 %v2547
    %2719 = vmatmul.bf16.gmra.mxu0 %v2246
    %v2720 = vpop.f32.mrf.mxu0
    %v2721 = vadd.f32 %v2707, %v2720
    %v2722 = vpop.f32.mrf.mxu0
    %v2723 = vadd.f32 %v2709, %v2722
    %2724 = vdwg.mxu0
    %2725 = vmatpush.bf16.msra.mxu0 %v2544
    %2726 = vmatpush.bf16.msra.mxu0 %v2540
    %2727 = vmatpush.bf16.msra.mxu0 %v2536
    %2728 = vmatpush.bf16.msra.mxu0 %v2532
    %2729 = vmatpush.bf16.msra.mxu0 %v2528
    %2730 = vmatpush.bf16.msra.mxu0 %v2524
    %2731 = vmatpush.bf16.msra.mxu0 %v2520
    %2732 = vmatpush.bf16.msra.mxu0 %v2516
    %2733 = vmatmul.bf16.gmra.mxu0 %v2245
    %v2734 = vpop.f32.mrf.mxu0
    %v2735 = vadd.f32 %v2316, %v2734
    %v2736 = vpop.f32.mrf.mxu0
    %v2737 = vadd.f32 %v2316, %v2736
    %2738 = vdwg.mxu0
    %2739 = vmatpush.bf16.msra.mxu0 %v2576
    %2740 = vmatpush.bf16.msra.mxu0 %v2572
    %2741 = vmatpush.bf16.msra.mxu0 %v2568
    %2742 = vmatpush.bf16.msra.mxu0 %v2564
    %2743 = vmatpush.bf16.msra.mxu0 %v2560
    %2744 = vmatpush.bf16.msra.mxu0 %v2556
    %2745 = vmatpush.bf16.msra.mxu0 %v2552
    %2746 = vmatpush.bf16.msra.mxu0 %v2548
    %2747 = vmatmul.bf16.gmra.mxu0 %v2246
    %v2748 = vpop.f32.mrf.mxu0
    %v2749 = vadd.f32 %v2735, %v2748
    %v2750 = vpop.f32.mrf.mxu0
    %v2751 = vadd.f32 %v2737, %v2750
    %2752 = vdwg.mxu0
    %v2753 = vmax.f32 %v2665, 0.0
    %v2754 = vmax.f32 %v2693, 0.0
    %v2755 = vmax.f32 %v2721, 0.0
    %v2756 = vmax.f32 %v2749, 0.0
    %v2757 = vmax.f32 %v2667, 0.0
    %v2758 = vmax.f32 %v2695, 0.0
    %v2759 = vmax.f32 %v2723, 0.0
    %v2760 = vmax.f32 %v2751, 0.0
    %v2761 = vpack.c.bf16 %v2757, %v2753
    %v2762 = vpack.c.bf16 %v2758, %v2754
    %v2763 = vpack.c.bf16 %v2759, %v2755
    %v2764 = vpack.c.bf16 %v2760, %v2756
    %v2765 = vld [vmem:[#allocation13] sm:$0xff]
    %v2766 = vld [vmem:[#allocation13 + $0x8] sm:$0xff]
    %v2767 = vld [vmem:[#allocation13 + $0x10] sm:$0xff]
    %v2768 = vld [vmem:[#allocation13 + $0x18] sm:$0xff]
    %v2769 = vld [vmem:[#allocation13 + $0x20] sm:$0xff]
    %v2770 = vld [vmem:[#allocation13 + $0x28] sm:$0xff]
    %v2771 = vld [vmem:[#allocation13 + $0x30] sm:$0xff]
    %v2772 = vld [vmem:[#allocation13 + $0x38] sm:$0xff]
    %v2773 = vld [vmem:[#allocation13 + $0x40] sm:$0xff]
    %v2774 = vld [vmem:[#allocation13 + $0x48] sm:$0xff]
    %v2775 = vld [vmem:[#allocation13 + $0x50] sm:$0xff]
    %v2776 = vld [vmem:[#allocation13 + $0x58] sm:$0xff]
    %v2777 = vld [vmem:[#allocation13 + $0x60] sm:$0xff]
    %v2778 = vld [vmem:[#allocation13 + $0x68] sm:$0xff]
    %v2779 = vld [vmem:[#allocation13 + $0x70] sm:$0xff]
    %v2780 = vld [vmem:[#allocation13 + $0x78] sm:$0xff]
    %v2781 = vld [vmem:[#allocation13 + $0x80] sm:$0xff]
    %v2782 = vld [vmem:[#allocation13 + $0x88] sm:$0xff]
    %v2783 = vld [vmem:[#allocation13 + $0x90] sm:$0xff]
    %v2784 = vld [vmem:[#allocation13 + $0x98] sm:$0xff]
    %v2785 = vld [vmem:[#allocation13 + $0xa0] sm:$0xff]
    %v2786 = vld [vmem:[#allocation13 + $0xa8] sm:$0xff]
    %v2787 = vld [vmem:[#allocation13 + $0xb0] sm:$0xff]
    %v2788 = vld [vmem:[#allocation13 + $0xb8] sm:$0xff]
    %v2789 = vld [vmem:[#allocation13 + $0xc0] sm:$0xff]
    %v2790 = vld [vmem:[#allocation13 + $0xc8] sm:$0xff]
    %v2791 = vld [vmem:[#allocation13 + $0xd0] sm:$0xff]
    %v2792 = vld [vmem:[#allocation13 + $0xd8] sm:$0xff]
    %v2793 = vld [vmem:[#allocation13 + $0xe0] sm:$0xff]
    %v2794 = vld [vmem:[#allocation13 + $0xe8] sm:$0xff]
    %v2795 = vld [vmem:[#allocation13 + $0xf0] sm:$0xff]
    %v2796 = vld [vmem:[#allocation13 + $0xf8] sm:$0xff]
    %v2797 = vld [vmem:[#allocation13 + $0x100] sm:$0xff]
    %v2798 = vld [vmem:[#allocation13 + $0x108] sm:$0xff]
    %v2799 = vld [vmem:[#allocation13 + $0x110] sm:$0xff]
    %v2800 = vld [vmem:[#allocation13 + $0x118] sm:$0xff]
    %v2801 = vld [vmem:[#allocation13 + $0x120] sm:$0xff]
    %v2802 = vld [vmem:[#allocation13 + $0x128] sm:$0xff]
    %v2803 = vld [vmem:[#allocation13 + $0x130] sm:$0xff]
    %v2804 = vld [vmem:[#allocation13 + $0x138] sm:$0xff]
    %v2805 = vld [vmem:[#allocation13 + $0x140] sm:$0xff]
    %v2806 = vld [vmem:[#allocation13 + $0x148] sm:$0xff]
    %v2807 = vld [vmem:[#allocation13 + $0x150] sm:$0xff]
    %v2808 = vld [vmem:[#allocation13 + $0x158] sm:$0xff]
    %v2809 = vld [vmem:[#allocation13 + $0x160] sm:$0xff]
    %v2810 = vld [vmem:[#allocation13 + $0x168] sm:$0xff]
    %v2811 = vld [vmem:[#allocation13 + $0x170] sm:$0xff]
    %v2812 = vld [vmem:[#allocation13 + $0x178] sm:$0xff]
    %v2813 = vld [vmem:[#allocation13 + $0x180] sm:$0xff]
    %v2814 = vld [vmem:[#allocation13 + $0x188] sm:$0xff]
    %v2815 = vld [vmem:[#allocation13 + $0x190] sm:$0xff]
    %v2816 = vld [vmem:[#allocation13 + $0x198] sm:$0xff]
    %v2817 = vld [vmem:[#allocation13 + $0x1a0] sm:$0xff]
    %v2818 = vld [vmem:[#allocation13 + $0x1a8] sm:$0xff]
    %v2819 = vld [vmem:[#allocation13 + $0x1b0] sm:$0xff]
    %v2820 = vld [vmem:[#allocation13 + $0x1b8] sm:$0xff]
    %v2821 = vld [vmem:[#allocation13 + $0x1c0] sm:$0xff]
    %v2822 = vld [vmem:[#allocation13 + $0x1c8] sm:$0xff]
    %v2823 = vld [vmem:[#allocation13 + $0x1d0] sm:$0xff]
    %v2824 = vld [vmem:[#allocation13 + $0x1d8] sm:$0xff]
    %v2825 = vld [vmem:[#allocation13 + $0x1e0] sm:$0xff]
    %v2826 = vld [vmem:[#allocation13 + $0x1e8] sm:$0xff]
    %v2827 = vld [vmem:[#allocation13 + $0x1f0] sm:$0xff]
    %v2828 = vld [vmem:[#allocation13 + $0x1f8] sm:$0xff]
    %v2829 = vld [vmem:[%s8] sm:$0x3]
    %v2831 = vperm.slane %v2829, 0
    %v2832 = vperm.slane %v2829, 1
    %v2899 = vunpack.c.l.b16 %v2765
    %v2900 = vunpack.c.h.b16 %v2765
    %v2901 = vunpack.c.l.b16 %v2766
    %v2902 = vunpack.c.h.b16 %v2766
    %v2903 = vunpack.c.l.b16 %v2767
    %v2904 = vunpack.c.h.b16 %v2767
    %v2905 = vunpack.c.l.b16 %v2768
    %v2906 = vunpack.c.h.b16 %v2768
    %v2907 = vunpack.c.l.b16 %v2769
    %v2908 = vunpack.c.h.b16 %v2769
    %v2909 = vunpack.c.l.b16 %v2770
    %v2910 = vunpack.c.h.b16 %v2770
    %v2911 = vunpack.c.l.b16 %v2771
    %v2912 = vunpack.c.h.b16 %v2771
    %v2913 = vunpack.c.l.b16 %v2772
    %v2914 = vunpack.c.h.b16 %v2772
    %v2915 = vunpack.c.l.b16 %v2773
    %v2916 = vunpack.c.h.b16 %v2773
    %v2917 = vunpack.c.l.b16 %v2774
    %v2918 = vunpack.c.h.b16 %v2774
    %v2919 = vunpack.c.l.b16 %v2775
    %v2920 = vunpack.c.h.b16 %v2775
    %v2921 = vunpack.c.l.b16 %v2776
    %v2922 = vunpack.c.h.b16 %v2776
    %v2923 = vunpack.c.l.b16 %v2777
    %v2924 = vunpack.c.h.b16 %v2777
    %v2925 = vunpack.c.l.b16 %v2778
    %v2926 = vunpack.c.h.b16 %v2778
    %v2927 = vunpack.c.l.b16 %v2779
    %v2928 = vunpack.c.h.b16 %v2779
    %v2929 = vunpack.c.l.b16 %v2780
    %v2930 = vunpack.c.h.b16 %v2780
    %v2931 = vunpack.c.l.b16 %v2781
    %v2932 = vunpack.c.h.b16 %v2781
    %v2933 = vunpack.c.l.b16 %v2782
    %v2934 = vunpack.c.h.b16 %v2782
    %v2935 = vunpack.c.l.b16 %v2783
    %v2936 = vunpack.c.h.b16 %v2783
    %v2937 = vunpack.c.l.b16 %v2784
    %v2938 = vunpack.c.h.b16 %v2784
    %v2939 = vunpack.c.l.b16 %v2785
    %v2940 = vunpack.c.h.b16 %v2785
    %v2941 = vunpack.c.l.b16 %v2786
    %v2942 = vunpack.c.h.b16 %v2786
    %v2943 = vunpack.c.l.b16 %v2787
    %v2944 = vunpack.c.h.b16 %v2787
    %v2945 = vunpack.c.l.b16 %v2788
    %v2946 = vunpack.c.h.b16 %v2788
    %v2947 = vunpack.c.l.b16 %v2789
    %v2948 = vunpack.c.h.b16 %v2789
    %v2949 = vunpack.c.l.b16 %v2790
    %v2950 = vunpack.c.h.b16 %v2790
    %v2951 = vunpack.c.l.b16 %v2791
    %v2952 = vunpack.c.h.b16 %v2791
    %v2953 = vunpack.c.l.b16 %v2792
    %v2954 = vunpack.c.h.b16 %v2792
    %v2955 = vunpack.c.l.b16 %v2793
    %v2956 = vunpack.c.h.b16 %v2793
    %v2957 = vunpack.c.l.b16 %v2794
    %v2958 = vunpack.c.h.b16 %v2794
    %v2959 = vunpack.c.l.b16 %v2795
    %v2960 = vunpack.c.h.b16 %v2795
    %v2961 = vunpack.c.l.b16 %v2796
    %v2962 = vunpack.c.h.b16 %v2796
    %v2963 = vunpack.c.l.b16 %v2797
    %v2964 = vunpack.c.h.b16 %v2797
    %v2965 = vunpack.c.l.b16 %v2798
    %v2966 = vunpack.c.h.b16 %v2798
    %v2967 = vunpack.c.l.b16 %v2799
    %v2968 = vunpack.c.h.b16 %v2799
    %v2969 = vunpack.c.l.b16 %v2800
    %v2970 = vunpack.c.h.b16 %v2800
    %v2971 = vunpack.c.l.b16 %v2801
    %v2972 = vunpack.c.h.b16 %v2801
    %v2973 = vunpack.c.l.b16 %v2802
    %v2974 = vunpack.c.h.b16 %v2802
    %v2975 = vunpack.c.l.b16 %v2803
    %v2976 = vunpack.c.h.b16 %v2803
    %v2977 = vunpack.c.l.b16 %v2804
    %v2978 = vunpack.c.h.b16 %v2804
    %v2979 = vunpack.c.l.b16 %v2805
    %v2980 = vunpack.c.h.b16 %v2805
    %v2981 = vunpack.c.l.b16 %v2806
    %v2982 = vunpack.c.h.b16 %v2806
    %v2983 = vunpack.c.l.b16 %v2807
    %v2984 = vunpack.c.h.b16 %v2807
    %v2985 = vunpack.c.l.b16 %v2808
    %v2986 = vunpack.c.h.b16 %v2808
    %v2987 = vunpack.c.l.b16 %v2809
    %v2988 = vunpack.c.h.b16 %v2809
    %v2989 = vunpack.c.l.b16 %v2810
    %v2990 = vunpack.c.h.b16 %v2810
    %v2991 = vunpack.c.l.b16 %v2811
    %v2992 = vunpack.c.h.b16 %v2811
    %v2993 = vunpack.c.l.b16 %v2812
    %v2994 = vunpack.c.h.b16 %v2812
    %v2995 = vunpack.c.l.b16 %v2813
    %v2996 = vunpack.c.h.b16 %v2813
    %v2997 = vunpack.c.l.b16 %v2814
    %v2998 = vunpack.c.h.b16 %v2814
    %v2999 = vunpack.c.l.b16 %v2815
    %v3000 = vunpack.c.h.b16 %v2815
    %v3001 = vunpack.c.l.b16 %v2816
    %v3002 = vunpack.c.h.b16 %v2816
    %v3003 = vunpack.c.l.b16 %v2817
    %v3004 = vunpack.c.h.b16 %v2817
    %v3005 = vunpack.c.l.b16 %v2818
    %v3006 = vunpack.c.h.b16 %v2818
    %v3007 = vunpack.c.l.b16 %v2819
    %v3008 = vunpack.c.h.b16 %v2819
    %v3009 = vunpack.c.l.b16 %v2820
    %v3010 = vunpack.c.h.b16 %v2820
    %v3011 = vunpack.c.l.b16 %v2821
    %v3012 = vunpack.c.h.b16 %v2821
    %v3013 = vunpack.c.l.b16 %v2822
    %v3014 = vunpack.c.h.b16 %v2822
    %v3015 = vunpack.c.l.b16 %v2823
    %v3016 = vunpack.c.h.b16 %v2823
    %v3017 = vunpack.c.l.b16 %v2824
    %v3018 = vunpack.c.h.b16 %v2824
    %v3019 = vunpack.c.l.b16 %v2825
    %v3020 = vunpack.c.h.b16 %v2825
    %v3021 = vunpack.c.l.b16 %v2826
    %v3022 = vunpack.c.h.b16 %v2826
    %v3023 = vunpack.c.l.b16 %v2827
    %v3024 = vunpack.c.h.b16 %v2827
    %v3025 = vunpack.c.l.b16 %v2828
    %v3026 = vunpack.c.h.b16 %v2828
    %v3027 = vpack.c.b16 %v2901, %v2899
    %v3028 = vpack.c.b16 %v2902, %v2900
    %v3029 = vpack.c.b16 %v2905, %v2903
    %v3030 = vpack.c.b16 %v2906, %v2904
    %v3031 = vpack.c.b16 %v2909, %v2907
    %v3032 = vpack.c.b16 %v2910, %v2908
    %v3033 = vpack.c.b16 %v2913, %v2911
    %v3034 = vpack.c.b16 %v2914, %v2912
    %v3035 = vpack.c.b16 %v2917, %v2915
    %v3036 = vpack.c.b16 %v2918, %v2916
    %v3037 = vpack.c.b16 %v2921, %v2919
    %v3038 = vpack.c.b16 %v2922, %v2920
    %v3039 = vpack.c.b16 %v2925, %v2923
    %v3040 = vpack.c.b16 %v2926, %v2924
    %v3041 = vpack.c.b16 %v2929, %v2927
    %v3042 = vpack.c.b16 %v2930, %v2928
    %v3043 = vpack.c.b16 %v2933, %v2931
    %v3044 = vpack.c.b16 %v2934, %v2932
    %v3045 = vpack.c.b16 %v2937, %v2935
    %v3046 = vpack.c.b16 %v2938, %v2936
    %v3047 = vpack.c.b16 %v2941, %v2939
    %v3048 = vpack.c.b16 %v2942, %v2940
    %v3049 = vpack.c.b16 %v2945, %v2943
    %v3050 = vpack.c.b16 %v2946, %v2944
    %v3051 = vpack.c.b16 %v2949, %v2947
    %v3052 = vpack.c.b16 %v2950, %v2948
    %v3053 = vpack.c.b16 %v2953, %v2951
    %v3054 = vpack.c.b16 %v2954, %v2952
    %v3055 = vpack.c.b16 %v2957, %v2955
    %v3056 = vpack.c.b16 %v2958, %v2956
    %v3057 = vpack.c.b16 %v2961, %v2959
    %v3058 = vpack.c.b16 %v2962, %v2960
    %v3059 = vpack.c.b16 %v2965, %v2963
    %v3060 = vpack.c.b16 %v2966, %v2964
    %v3061 = vpack.c.b16 %v2969, %v2967
    %v3062 = vpack.c.b16 %v2970, %v2968
    %v3063 = vpack.c.b16 %v2973, %v2971
    %v3064 = vpack.c.b16 %v2974, %v2972
    %v3065 = vpack.c.b16 %v2977, %v2975
    %v3066 = vpack.c.b16 %v2978, %v2976
    %v3067 = vpack.c.b16 %v2981, %v2979
    %v3068 = vpack.c.b16 %v2982, %v2980
    %v3069 = vpack.c.b16 %v2985, %v2983
    %v3070 = vpack.c.b16 %v2986, %v2984
    %v3071 = vpack.c.b16 %v2989, %v2987
    %v3072 = vpack.c.b16 %v2990, %v2988
    %v3073 = vpack.c.b16 %v2993, %v2991
    %v3074 = vpack.c.b16 %v2994, %v2992
    %v3075 = vpack.c.b16 %v2997, %v2995
    %v3076 = vpack.c.b16 %v2998, %v2996
    %v3077 = vpack.c.b16 %v3001, %v2999
    %v3078 = vpack.c.b16 %v3002, %v3000
    %v3079 = vpack.c.b16 %v3005, %v3003
    %v3080 = vpack.c.b16 %v3006, %v3004
    %v3081 = vpack.c.b16 %v3009, %v3007
    %v3082 = vpack.c.b16 %v3010, %v3008
    %v3083 = vpack.c.b16 %v3013, %v3011
    %v3084 = vpack.c.b16 %v3014, %v3012
    %v3085 = vpack.c.b16 %v3017, %v3015
    %v3086 = vpack.c.b16 %v3018, %v3016
    %v3087 = vpack.c.b16 %v3021, %v3019
    %v3088 = vpack.c.b16 %v3022, %v3020
    %v3089 = vpack.c.b16 %v3025, %v3023
    %v3090 = vpack.c.b16 %v3026, %v3024
    %3155 = vmatpush.bf16.msra.mxu0 %v3041
    %3156 = vmatpush.bf16.msra.mxu0 %v3039
    %3157 = vmatpush.bf16.msra.mxu0 %v3037
    %3158 = vmatpush.bf16.msra.mxu0 %v3035
    %3159 = vmatpush.bf16.msra.mxu0 %v3033
    %3160 = vmatpush.bf16.msra.mxu0 %v3031
    %3161 = vmatpush.bf16.msra.mxu0 %v3029
    %3162 = vmatpush.bf16.msra.mxu0 %v3027
    %3163 = vmatmul.bf16.gmra.mxu0 %v2761
    %v3164 = vpop.f32.mrf.mxu0
    %v3165 = vadd.f32 %v2831, %v3164
    %v3166 = vpop.f32.mrf.mxu0
    %v3167 = vadd.f32 %v2831, %v3166
    %3168 = vdwg.mxu0
    %3169 = vmatpush.bf16.msra.mxu0 %v3057
    %3170 = vmatpush.bf16.msra.mxu0 %v3055
    %3171 = vmatpush.bf16.msra.mxu0 %v3053
    %3172 = vmatpush.bf16.msra.mxu0 %v3051
    %3173 = vmatpush.bf16.msra.mxu0 %v3049
    %3174 = vmatpush.bf16.msra.mxu0 %v3047
    %3175 = vmatpush.bf16.msra.mxu0 %v3045
    %3176 = vmatpush.bf16.msra.mxu0 %v3043
    %3177 = vmatmul.bf16.gmra.mxu0 %v2762
    %v3178 = vpop.f32.mrf.mxu0
    %v3179 = vadd.f32 %v3165, %v3178
    %v3180 = vpop.f32.mrf.mxu0
    %v3181 = vadd.f32 %v3167, %v3180
    %3182 = vdwg.mxu0
    %3183 = vmatpush.bf16.msra.mxu0 %v3073
    %3184 = vmatpush.bf16.msra.mxu0 %v3071
    %3185 = vmatpush.bf16.msra.mxu0 %v3069
    %3186 = vmatpush.bf16.msra.mxu0 %v3067
    %3187 = vmatpush.bf16.msra.mxu0 %v3065
    %3188 = vmatpush.bf16.msra.mxu0 %v3063
    %3189 = vmatpush.bf16.msra.mxu0 %v3061
    %3190 = vmatpush.bf16.msra.mxu0 %v3059
    %3191 = vmatmul.bf16.gmra.mxu0 %v2763
    %v3192 = vpop.f32.mrf.mxu0
    %v3193 = vadd.f32 %v3179, %v3192
    %v3194 = vpop.f32.mrf.mxu0
    %v3195 = vadd.f32 %v3181, %v3194
    %3196 = vdwg.mxu0
    %3197 = vmatpush.bf16.msra.mxu0 %v3089
    %3198 = vmatpush.bf16.msra.mxu0 %v3087
    %3199 = vmatpush.bf16.msra.mxu0 %v3085
    %3200 = vmatpush.bf16.msra.mxu0 %v3083
    %3201 = vmatpush.bf16.msra.mxu0 %v3081
    %3202 = vmatpush.bf16.msra.mxu0 %v3079
    %3203 = vmatpush.bf16.msra.mxu0 %v3077
    %3204 = vmatpush.bf16.msra.mxu0 %v3075
    %3205 = vmatmul.bf16.gmra.mxu0 %v2764
    %v3206 = vpop.f32.mrf.mxu0
    %v3207 = vadd.f32 %v3193, %v3206
    %v3208 = vpop.f32.mrf.mxu0
    %v3209 = vadd.f32 %v3195, %v3208
    %3210 = vdwg.mxu0
    %3211 = vmatpush.bf16.msra.mxu0 %v3042
    %3212 = vmatpush.bf16.msra.mxu0 %v3040
    %3213 = vmatpush.bf16.msra.mxu0 %v3038
    %3214 = vmatpush.bf16.msra.mxu0 %v3036
    %3215 = vmatpush.bf16.msra.mxu0 %v3034
    %3216 = vmatpush.bf16.msra.mxu0 %v3032
    %3217 = vmatpush.bf16.msra.mxu0 %v3030
    %3218 = vmatpush.bf16.msra.mxu0 %v3028
    %3219 = vmatmul.bf16.gmra.mxu0 %v2761
    %v3220 = vpop.f32.mrf.mxu0
    %v3221 = vadd.f32 %v2832, %v3220
    %v3222 = vpop.f32.mrf.mxu0
    %v3223 = vadd.f32 %v2832, %v3222
    %3224 = vdwg.mxu0
    %3225 = vmatpush.bf16.msra.mxu0 %v3058
    %3226 = vmatpush.bf16.msra.mxu0 %v3056
    %3227 = vmatpush.bf16.msra.mxu0 %v3054
    %3228 = vmatpush.bf16.msra.mxu0 %v3052
    %3229 = vmatpush.bf16.msra.mxu0 %v3050
    %3230 = vmatpush.bf16.msra.mxu0 %v3048
    %3231 = vmatpush.bf16.msra.mxu0 %v3046
    %3232 = vmatpush.bf16.msra.mxu0 %v3044
    %3233 = vmatmul.bf16.gmra.mxu0 %v2762
    %v3234 = vpop.f32.mrf.mxu0
    %v3235 = vadd.f32 %v3221, %v3234
    %v3236 = vpop.f32.mrf.mxu0
    %v3237 = vadd.f32 %v3223, %v3236
    %3238 = vdwg.mxu0
    %3239 = vmatpush.bf16.msra.mxu0 %v3074
    %3240 = vmatpush.bf16.msra.mxu0 %v3072
    %3241 = vmatpush.bf16.msra.mxu0 %v3070
    %3242 = vmatpush.bf16.msra.mxu0 %v3068
    %3243 = vmatpush.bf16.msra.mxu0 %v3066
    %3244 = vmatpush.bf16.msra.mxu0 %v3064
    %3245 = vmatpush.bf16.msra.mxu0 %v3062
    %3246 = vmatpush.bf16.msra.mxu0 %v3060
    %3247 = vmatmul.bf16.gmra.mxu0 %v2763
    %v3248 = vpop.f32.mrf.mxu0
    %v3249 = vadd.f32 %v3235, %v3248
    %v3250 = vpop.f32.mrf.mxu0
    %v3251 = vadd.f32 %v3237, %v3250
    %3252 = vdwg.mxu0
    %3253 = vmatpush.bf16.msra.mxu0 %v3090
    %3254 = vmatpush.bf16.msra.mxu0 %v3088
    %3255 = vmatpush.bf16.msra.mxu0 %v3086
    %3256 = vmatpush.bf16.msra.mxu0 %v3084
    %3257 = vmatpush.bf16.msra.mxu0 %v3082
    %3258 = vmatpush.bf16.msra.mxu0 %v3080
    %3259 = vmatpush.bf16.msra.mxu0 %v3078
    %3260 = vmatpush.bf16.msra.mxu0 %v3076
    %3261 = vmatmul.bf16.gmra.mxu0 %v2764
    %v3262 = vpop.f32.mrf.mxu0
    %v3263 = vadd.f32 %v3249, %v3262
    %v3264 = vpop.f32.mrf.mxu0
    %v3265 = vadd.f32 %v3251, %v3264
    %3266 = vdwg.mxu0
    %v3267 = vmax.f32 %v3207, 0.0
    %v3268 = vmax.f32 %v3263, 0.0
    %v3269 = vmax.f32 %v3209, 0.0
    %v3270 = vmax.f32 %v3265, 0.0
    %v3271 = vpack.c.bf16 %v3269, %v3267
    %v3272 = vpack.c.bf16 %v3270, %v3268
    %v3273 = vld [vmem:[#allocation14] sm:$0xf]
    %v3274 = vld [vmem:[#allocation14 + $0x4] sm:$0xf]
    %v3275 = vld [vmem:[#allocation14 + $0x8] sm:$0xf]
    %v3276 = vld [vmem:[#allocation14 + $0xc] sm:$0xf]
    %v3277 = vld [vmem:[#allocation14 + $0x10] sm:$0xf]
    %v3278 = vld [vmem:[#allocation14 + $0x14] sm:$0xf]
    %v3279 = vld [vmem:[#allocation14 + $0x18] sm:$0xf]
    %v3280 = vld [vmem:[#allocation14 + $0x1c] sm:$0xf]
    %v3281 = vld [vmem:[#allocation14 + $0x20] sm:$0xf]
    %v3282 = vld [vmem:[#allocation14 + $0x24] sm:$0xf]
    %v3283 = vld [vmem:[#allocation14 + $0x28] sm:$0xf]
    %v3284 = vld [vmem:[#allocation14 + $0x2c] sm:$0xf]
    %v3285 = vld [vmem:[#allocation14 + $0x30] sm:$0xf]
    %v3286 = vld [vmem:[#allocation14 + $0x34] sm:$0xf]
    %v3287 = vld [vmem:[#allocation14 + $0x38] sm:$0xf]
    %v3288 = vld [vmem:[#allocation14 + $0x3c] sm:$0xf]
    %v3289 = vld [vmem:[#allocation14 + $0x40] sm:$0xf]
    %v3290 = vld [vmem:[#allocation14 + $0x44] sm:$0xf]
    %v3291 = vld [vmem:[#allocation14 + $0x48] sm:$0xf]
    %v3292 = vld [vmem:[#allocation14 + $0x4c] sm:$0xf]
    %v3293 = vld [vmem:[#allocation14 + $0x50] sm:$0xf]
    %v3294 = vld [vmem:[#allocation14 + $0x54] sm:$0xf]
    %v3295 = vld [vmem:[#allocation14 + $0x58] sm:$0xf]
    %v3296 = vld [vmem:[#allocation14 + $0x5c] sm:$0xf]
    %v3297 = vld [vmem:[#allocation14 + $0x60] sm:$0xf]
    %v3298 = vld [vmem:[#allocation14 + $0x64] sm:$0xf]
    %v3299 = vld [vmem:[#allocation14 + $0x68] sm:$0xf]
    %v3300 = vld [vmem:[#allocation14 + $0x6c] sm:$0xf]
    %v3301 = vld [vmem:[#allocation14 + $0x70] sm:$0xf]
    %v3302 = vld [vmem:[#allocation14 + $0x74] sm:$0xf]
    %v3303 = vld [vmem:[#allocation14 + $0x78] sm:$0xf]
    %v3304 = vld [vmem:[#allocation14 + $0x7c] sm:$0xf]
    %v3305 = vld [vmem:[%s10] sm:$0x1]
    %v3307 = vperm.slane %v3305, 0
    %v3341 = vunpack.c.l.b16 %v3273
    %v3342 = vunpack.c.l.b16 %v3274
    %v3343 = vunpack.c.l.b16 %v3275
    %v3344 = vunpack.c.l.b16 %v3276
    %v3345 = vunpack.c.l.b16 %v3277
    %v3346 = vunpack.c.l.b16 %v3278
    %v3347 = vunpack.c.l.b16 %v3279
    %v3348 = vunpack.c.l.b16 %v3280
    %v3349 = vunpack.c.l.b16 %v3281
    %v3350 = vunpack.c.l.b16 %v3282
    %v3351 = vunpack.c.l.b16 %v3283
    %v3352 = vunpack.c.l.b16 %v3284
    %v3353 = vunpack.c.l.b16 %v3285
    %v3354 = vunpack.c.l.b16 %v3286
    %v3355 = vunpack.c.l.b16 %v3287
    %v3356 = vunpack.c.l.b16 %v3288
    %v3357 = vunpack.c.l.b16 %v3289
    %v3358 = vunpack.c.l.b16 %v3290
    %v3359 = vunpack.c.l.b16 %v3291
    %v3360 = vunpack.c.l.b16 %v3292
    %v3361 = vunpack.c.l.b16 %v3293
    %v3362 = vunpack.c.l.b16 %v3294
    %v3363 = vunpack.c.l.b16 %v3295
    %v3364 = vunpack.c.l.b16 %v3296
    %v3365 = vunpack.c.l.b16 %v3297
    %v3366 = vunpack.c.l.b16 %v3298
    %v3367 = vunpack.c.l.b16 %v3299
    %v3368 = vunpack.c.l.b16 %v3300
    %v3369 = vunpack.c.l.b16 %v3301
    %v3370 = vunpack.c.l.b16 %v3302
    %v3371 = vunpack.c.l.b16 %v3303
    %v3372 = vunpack.c.l.b16 %v3304
    %v3373 = vpack.c.b16 %v3342, %v3341
    %v3374 = vpack.c.b16 %v3344, %v3343
    %v3375 = vpack.c.b16 %v3346, %v3345
    %v3376 = vpack.c.b16 %v3348, %v3347
    %v3377 = vpack.c.b16 %v3350, %v3349
    %v3378 = vpack.c.b16 %v3352, %v3351
    %v3379 = vpack.c.b16 %v3354, %v3353
    %v3380 = vpack.c.b16 %v3356, %v3355
    %v3381 = vpack.c.b16 %v3358, %v3357
    %v3382 = vpack.c.b16 %v3360, %v3359
    %v3383 = vpack.c.b16 %v3362, %v3361
    %v3384 = vpack.c.b16 %v3364, %v3363
    %v3385 = vpack.c.b16 %v3366, %v3365
    %v3386 = vpack.c.b16 %v3368, %v3367
    %v3387 = vpack.c.b16 %v3370, %v3369
    %v3388 = vpack.c.b16 %v3372, %v3371
    %3405 = vmatpush.bf16.msra.mxu0 %v3380
    %3406 = vmatpush.bf16.msra.mxu0 %v3379
    %3407 = vmatpush.bf16.msra.mxu0 %v3378
    %3408 = vmatpush.bf16.msra.mxu0 %v3377
    %3409 = vmatpush.bf16.msra.mxu0 %v3376
    %3410 = vmatpush.bf16.msra.mxu0 %v3375
    %3411 = vmatpush.bf16.msra.mxu0 %v3374
    %3412 = vmatpush.bf16.msra.mxu0 %v3373
    %3413 = vmatmul.bf16.gmra.mxu0 %v3271
    %v3414 = vpop.f32.mrf.mxu0
    %v3415 = vadd.f32 %v3307, %v3414
    %v3416 = vpop.f32.mrf.mxu0
    %v3417 = vadd.f32 %v3307, %v3416
    %3418 = vdwg.mxu0
    %3419 = vmatpush.bf16.msra.mxu0 %v3388
    %3420 = vmatpush.bf16.msra.mxu0 %v3387
    %3421 = vmatpush.bf16.msra.mxu0 %v3386
    %3422 = vmatpush.bf16.msra.mxu0 %v3385
    %3423 = vmatpush.bf16.msra.mxu0 %v3384
    %3424 = vmatpush.bf16.msra.mxu0 %v3383
    %3425 = vmatpush.bf16.msra.mxu0 %v3382
    %3426 = vmatpush.bf16.msra.mxu0 %v3381
    %3427 = vmatmul.bf16.gmra.mxu0 %v3272
    %v3428 = vpop.f32.mrf.mxu0
    %v3429 = vadd.f32 %v3415, %v3428
    %v3430 = vpop.f32.mrf.mxu0
    %v3431 = vadd.f32 %v3417, %v3430
    %3432 = vdwg.mxu0
    %v3433 = vmax.f32 %v3429, 0.0
    %v3434 = vmax.f32 %v3431, 0.0
    %3435 = vst [vmem:[#allocation16] sm:$0xff] %v3433
    %3436 = vst [vmem:[#allocation16 + $0x8] sm:$0xff] %v3434
    // Predicated region
    $region78: #{tpu_custom_call.1} parent=1 // pred_check
      _
    $region79: #{tpu_custom_call.1} parent=1 // pred_check_branch
      %3438 = sbr.rel (0) target = $region81
    $region80: #{tpu_custom_call.1} parent=1 // pred_region
      %3440 = vsyncadd [#allocation4], 0
      %s3441 = sshll.u32 [#allocation16], 4
      %s3442 = int_to_ptr.vmem [resolvable:$true] %s3441
      %s3443 = sshll.u32 %s11, 4
      %s3444 = int_to_ptr.hbm [resolvable:$true] %s3443
      %3449 = dma.vmem_to_hbm [thread:$0]  %s3442, 256, %s3444, [#allocation4], 128, 128, 8
    $region81: #{tpu_custom_call.1} parent=1 // pred_fallthru
      _
    // Predicated region
    $region82: #{tpu_custom_call.1} parent=1 // pred_check
      _
    $region83: #{tpu_custom_call.1} parent=1 // pred_check_branch
      %3451 = sbr.rel (0) target = $region85
    $region84: #{tpu_custom_call.1} parent=1 // pred_region
      %3453 = dma.done [#allocation4], 256
    $region85: #{tpu_custom_call.1} parent=1 // pred_fallthru
      _
    %3454 = vsyncpa [#allocation3], 1
    %3455 = vsyncpa [#allocation6], 1
    %3456 = vsyncpa [#allocation9], 1
    %3457 = vsyncpa [#allocation12], 1
    %3458 = vsyncpa [#allocation15], 1
    %3459 = vsyncpa [#allocation4], 1

</llo_original>
